<compile_context>
chip_gen: v7x
topology: tpu7x:2x2x1
jax: 0.10.0
libtpu: 0.0.40
codegen_flags: <defaults>
</compile_context>

<pallas_src>
import math
import functools

import jax
import jax.numpy as jnp
from jax import lax
from jax.experimental import pallas as pl
from jax.experimental.pallas import tpu as pltpu


# ---------------------------------------------------------------------------
# In-kernel helpers
# ---------------------------------------------------------------------------
def _layernorm(x, g, b, eps=1e-5):
    # PyTorch nn.LayerNorm (biased variance, eps=1e-5), single-pass form:
    # mean and mean-of-squares are independent reductions; gamma fused into
    # the rsqrt factor before broadcasting.  f32 math.
    mu = jnp.mean(x, axis=-1, keepdims=True)
    ms = jnp.mean(x * x, axis=-1, keepdims=True)
    inv = lax.rsqrt(ms - mu * mu + eps)
    return (x - mu) * (inv * g) + b


# ---------------------------------------------------------------------------
# Fused whole-network kernel
# ---------------------------------------------------------------------------
def fused_forward_kernel(x_ref, pe_ref, emb_w_ref,
                         wq_ref, wk_ref, wv_ref, wo_ref,
                         w1_ref, w2_ref, outw_ref, outb_ref, slab_ref,
                         emb_out_ref, out_ref,
                         *, num_layers, num_heads, batch, seq, embed_dim, ff_dim):
    E, H = embed_dim, num_heads
    hd = E // H
    BS = batch * seq
    bf16 = jnp.bfloat16
    R0 = 3 * H   # first non-per-head row of the bias slab

    # ---- embedding Linear + positional encoding (emb bias pre-folded into pe) --
    x = x_ref[...].astype(bf16)                                         # (BS, N)
    h = jnp.dot(x, emb_w_ref[...], preferred_element_type=jnp.float32) + pe_ref[...]

    # ---- encoder blocks: static unroll over layers, stacked per-layer weights --
    for l in range(num_layers):
        ln1_g = slab_ref[l, R0 + 0:R0 + 1, 0:E]
        ln1_b = slab_ref[l, R0 + 1:R0 + 2, 0:E]
        b_o   = slab_ref[l, R0 + 2:R0 + 3, 0:E]
        ln2_g = slab_ref[l, R0 + 3:R0 + 4, 0:E]
        ln2_b = slab_ref[l, R0 + 4:R0 + 5, 0:E]
        b_f1  = slab_ref[l, R0 + 5:R0 + 6, 0:ff_dim]
        b_f2  = slab_ref[l, R0 + 6:R0 + 7, 0:E]

        # --- pre-LN multi-head self-attention (per-head WEIGHT split: no
        #     activation lane slicing, no head concat) ---
        xn = _layernorm(h, ln1_g, ln1_b).astype(bf16)                  # (BS, E)
        scores, vs = [], []
        for hh in range(H):
            bq = slab_ref[l, hh:hh + 1, 0:hd]              # 1/sqrt(hd) pre-folded
            bk = slab_ref[l, H + hh:H + hh + 1, 0:hd]
            bv = slab_ref[l, 2 * H + hh:2 * H + hh + 1, 0:hd]
            q = jnp.dot(xn, wq_ref[l, hh], preferred_element_type=jnp.float32) + bq
            k = jnp.dot(xn, wk_ref[l, hh], preferred_element_type=jnp.float32) + bk
            v = jnp.dot(xn, wv_ref[l, hh], preferred_element_type=jnp.float32) + bv
            # (BS, hd) -> (B, S, hd): splits sublanes at an 8-row boundary (free).
            q = q.reshape(batch, seq, hd).astype(bf16)
            k = k.reshape(batch, seq, hd).astype(bf16)
            vs.append(v.reshape(batch, seq, hd).astype(bf16))
            scores.append(jnp.einsum('bqd,bkd->bqk', q, k,
                                     preferred_element_type=jnp.float32))  # (B,S,S)

        # One softmax chain for ALL heads (single max/exp/sum/reciprocal).
        s = jnp.stack(scores, axis=0)                                   # (H,B,S,S)
        s = s - jnp.max(s, axis=-1, keepdims=True)
        p = jnp.exp(s)
        p = (p * pl.reciprocal(jnp.sum(p, axis=-1, keepdims=True),
                               approx=True)).astype(bf16)

        # Per-head output projection accumulated into one f32 buffer (seeded with
        # the attention-output bias); p[hh] is a leading-dim static slice (free).
        attn = jnp.broadcast_to(b_o, (BS, E))
        for hh in range(H):
            o_h = jnp.einsum('bqk,bkd->bqd', p[hh], vs[hh],
                             preferred_element_type=jnp.float32)        # (B,S,hd)
            attn = attn + jnp.dot(o_h.reshape(BS, hd).astype(bf16), wo_ref[l, hh],
                                  preferred_element_type=jnp.float32)
        h = h + attn                                   # residual (dropout=identity)

        # --- pre-LN feed-forward branch ---
        xn = _layernorm(h, ln2_g, ln2_b).astype(bf16)
        ff = jnp.dot(xn, w1_ref[l], preferred_element_type=jnp.float32) + b_f1
        ff = jnp.maximum(ff, 0.0)                      # ReLU (inner dropout=identity)
        ff = jnp.dot(ff.astype(bf16), w2_ref[l],
                     preferred_element_type=jnp.float32) + b_f2
        h = h + ff                                     # residual (dropout=identity)

    # ---- outputs ---------------------------------------------------------------
    # Embeddings: E=32-lane masked store (padding in-kernel would just trade the
    # masked store for a lane-pad op at this width).
    emb_out_ref[...] = h
    # Output projection: lane-dense 128-wide padded slab -> unmasked store.
    out_ref[...] = jnp.dot(h.astype(bf16), outw_ref[...],
                           preferred_element_type=jnp.float32) + outb_ref[...]


# ---------------------------------------------------------------------------
# pallas_call wrapper
# ---------------------------------------------------------------------------
def _full_spec(shape):
    nd = len(shape)
    return pl.BlockSpec(shape, lambda i, _nd=nd: (0,) * _nd)


def pallas_forward(x2, pe2, params, cfg, B, S):
    """x2: (B*S, N) f32, pe2: (B*S, E) f32 (emb bias folded in).
    Returns (embeddings (B*S, E), output (B*S, O))."""
    BS = x2.shape[0]
    E, O, FF = cfg["EMBED_DIM"], cfg["OUTPUT_DIM"], cfg["FF_DIM"]
    L, H = cfg["NUM_LAYERS"], cfg["NUM_HEADS"]

    # Lane-dense output slab: pad output projection to a multiple of 128 lanes so
    # the final store is unmasked; slice back to O outside the kernel (glue).
    O_pad = ((O + 127) // 128) * 128
    out_w = jnp.zeros((E, O_pad), jnp.bfloat16).at[:, :O].set(params["out_w"])
    out_b = jnp.zeros((1, O_pad), jnp.float32).at[:, :O].set(params["out_b"])

    inputs = (x2, pe2, params["emb_w"],
              params["w_q"], params["w_k"], params["w_v"], params["w_o"],
              params["w_ff1"], params["w_ff2"], out_w, out_b, params["slab"])

    emb2, out2 = pl.pallas_call(
        functools.partial(fused_forward_kernel, num_layers=L, num_heads=H,
                          batch=B, seq=S, embed_dim=E, ff_dim=FF),
        out_shape=(jax.ShapeDtypeStruct((BS, E), jnp.float32),
                   jax.ShapeDtypeStruct((BS, O_pad), jnp.float32)),
        grid=(1,),  # single step; weights + activations fully VMEM resident
        in_specs=[_full_spec(a.shape) for a in inputs],
        out_specs=(_full_spec((BS, E)), _full_spec((BS, O_pad))),
        compiler_params=pltpu.CompilerParams(dimension_semantics=("arbitrary",)),
    )(*inputs)
    return emb2, out2[:, :O]


# ---------------------------------------------------------------------------
# Parameter init (deterministic, synthetic) and forward pass
# ---------------------------------------------------------------------------
def make_positional_encoding(max_len, d_model):
    pos = jnp.arange(max_len, dtype=jnp.float32)[:, None]
    div = jnp.exp(jnp.arange(0, d_model, 2, dtype=jnp.float32)
                  * (-math.log(10000.0) / d_model))
    pe = jnp.zeros((max_len, d_model), dtype=jnp.float32)
    pe = pe.at[:, 0::2].set(jnp.sin(pos * div))
    pe = pe.at[:, 1::2].set(jnp.cos(pos * div))
    return pe


def init_params(key, cfg):
    N, E, FF, O = cfg["NUM_NEURONS"], cfg["EMBED_DIM"], cfg["FF_DIM"], cfg["OUTPUT_DIM"]
    L, H = cfg["NUM_LAYERS"], cfg["NUM_HEADS"]
    hd = E // H
    assert E % H == 0 and E <= 128 and FF <= 128 and hd <= 128

    def dense(k, din, dout, scale=0.02):
        kw, kb = jax.random.split(k)
        return (scale * jax.random.normal(kw, (din, dout), jnp.float32),
                scale * jax.random.normal(kb, (dout,), jnp.float32))

    keys = jax.random.split(key, 2 + L)
    emb_w, emb_b = dense(keys[0], N, E)
    out_w, out_b = dense(keys[1], E, O)

    q_scale = 1.0 / math.sqrt(hd)                      # folded into w_q / b_q
    nrows = ((3 * H + 7 + 7) // 8) * 8                 # bias-slab rows (8-aligned)
    w_q, w_k, w_v, w_o = [], [], [], []
    w_ff1, w_ff2, slabs = [], [], []
    for li in range(L):
        lk = jax.random.split(keys[2 + li], 4)
        wqkv, bqkv = dense(lk[0], E, 3 * E)            # [q;k;v] packed along out dim
        wo, bo = dense(lk[1], E, E)
        wf1, bf1 = dense(lk[2], E, FF)
        wf2, bf2 = dense(lk[3], FF, E)

        # Host-side per-head split of the attention weights (heads -> leading axis).
        wq = wqkv[:, 0 * E:1 * E].reshape(E, H, hd).transpose(1, 0, 2) * q_scale
        wk = wqkv[:, 1 * E:2 * E].reshape(E, H, hd).transpose(1, 0, 2)
        wv = wqkv[:, 2 * E:3 * E].reshape(E, H, hd).transpose(1, 0, 2)
        bq = bqkv[0 * E:1 * E].reshape(H, hd) * q_scale
        bk = bqkv[1 * E:2 * E].reshape(H, hd)
        bv = bqkv[2 * E:3 * E].reshape(H, hd)
        woh = wo.reshape(H, hd, E)

        # Pack all tiny f32 params into one lane-padded slab (single DMA).
        slab = jnp.zeros((nrows, 128), jnp.float32)
        slab = slab.at[0:H, :hd].set(bq)
        slab = slab.at[H:2 * H, :hd].set(bk)
        slab = slab.at[2 * H:3 * H, :hd].set(bv)
        R0 = 3 * H
        slab = slab.at[R0 + 0, :E].set(jnp.ones((E,), jnp.float32))   # ln1 gamma
        slab = slab.at[R0 + 1, :E].set(jnp.zeros((E,), jnp.float32))  # ln1 beta
        slab = slab.at[R0 + 2, :E].set(bo)                            # attn out bias
        slab = slab.at[R0 + 3, :E].set(jnp.ones((E,), jnp.float32))   # ln2 gamma
        slab = slab.at[R0 + 4, :E].set(jnp.zeros((E,), jnp.float32))  # ln2 beta
        slab = slab.at[R0 + 5, :FF].set(bf1)                          # ffn1 bias
        slab = slab.at[R0 + 6, :E].set(bf2)                           # ffn2 bias

        w_q.append(wq); w_k.append(wk); w_v.append(wv); w_o.append(woh)
        w_ff1.append(wf1); w_ff2.append(wf2); slabs.append(slab)

    params = {
        "emb_w": emb_w.astype(jnp.bfloat16),
        "emb_b": emb_b.reshape(1, E),                  # folded into pe2 in wrapper
        "out_w": out_w.astype(jnp.bfloat16),
        "out_b": out_b.reshape(1, O),
        "w_q": jnp.stack(w_q).astype(jnp.bfloat16),    # (L, H, E, hd)
        "w_k": jnp.stack(w_k).astype(jnp.bfloat16),    # (L, H, E, hd)
        "w_v": jnp.stack(w_v).astype(jnp.bfloat16),    # (L, H, E, hd)
        "w_o": jnp.stack(w_o).astype(jnp.bfloat16),    # (L, H, hd, E)
        "w_ff1": jnp.stack(w_ff1).astype(jnp.bfloat16),
        "w_ff2": jnp.stack(w_ff2).astype(jnp.bfloat16),
        "slab": jnp.stack(slabs),                      # (L, nrows, 128) f32
    }
    return params


def brain_transformer_forward(x, params, cfg, task="multi"):
    """x: (B, S, NUM_NEURONS) float32.  Returns dict like the PyTorch module."""
    B, S, N = x.shape
    E, O = cfg["EMBED_DIM"], cfg["OUTPUT_DIM"]
    pe = make_positional_encoding(S, E)                   # constant buffer (glue)
    pe2 = jnp.tile(pe, (B, 1)) + params["emb_b"]          # fold batch + emb bias
    x2 = x.reshape(B * S, N)
    emb2, out2 = pallas_forward(x2, pe2, params, cfg, B, S)
    embeddings = emb2.reshape(B, S, E)
    output = out2.reshape(B, S, O)
    results = {"embeddings": embeddings, "output": output, "task_output": None}
    if task == "classification":
        results["task_output"] = jnp.mean(output, axis=1)  # glue reduction
    else:
        results["task_output"] = output
    return results


# ---------------------------------------------------------------------------
if __name__ == "__main__":
    cfg = dict(NUM_NEURONS=16, EMBED_DIM=32, NUM_HEADS=4, FF_DIM=64,
               NUM_LAYERS=2, OUTPUT_DIM=8, DROPOUT_RATE=0.1)
    B, S = 2, 8

    key = jax.random.PRNGKey(0)
    kx, kp = jax.random.split(key)
    x = jax.random.normal(kx, (B, S, cfg["NUM_NEURONS"]), dtype=jnp.float32)
    params = init_params(kp, cfg)

    results = brain_transformer_forward(x, params, cfg, task="multi")
    jax.block_until_ready(results["embeddings"])
    jax.block_until_ready(results["output"])
    jax.block_until_ready(results["task_output"])

    assert results["embeddings"].shape == (B, S, cfg["EMBED_DIM"])
    assert results["output"].shape == (B, S, cfg["OUTPUT_DIM"])
    assert results["task_output"].shape == (B, S, cfg["OUTPUT_DIM"])
    print("KERNEL_OK")
</pallas_src>

<mosaic_0001>
module attributes {stable_mosaic.version = 11 : i64} {
  func.func @fused_forward_kernel(%arg0: i32, %arg1: memref<16x16xf32, #tpu.memory_space<vmem>>, %arg2: memref<16x32xf32, #tpu.memory_space<vmem>>, %arg3: memref<16x32xbf16, #tpu.memory_space<vmem>>, %arg4: memref<2x4x32x8xbf16, #tpu.memory_space<vmem>>, %arg5: memref<2x4x32x8xbf16, #tpu.memory_space<vmem>>, %arg6: memref<2x4x32x8xbf16, #tpu.memory_space<vmem>>, %arg7: memref<2x4x8x32xbf16, #tpu.memory_space<vmem>>, %arg8: memref<2x32x64xbf16, #tpu.memory_space<vmem>>, %arg9: memref<2x64x32xbf16, #tpu.memory_space<vmem>>, %arg10: memref<32x128xbf16, #tpu.memory_space<vmem>>, %arg11: memref<1x128xf32, #tpu.memory_space<vmem>>, %arg12: memref<2x24x128xf32, #tpu.memory_space<vmem>>, %arg13: memref<16x32xf32, #tpu.memory_space<vmem>>, %arg14: memref<16x128xf32, #tpu.memory_space<vmem>>) attributes {dimension_semantics = [#tpu.dimension_semantics<arbitrary>], iteration_bounds = array<i64: 1>, scalar_prefetch = 0 : i64, scratch_operands = 0 : i64, tpu.core_type = #tpu.core_type<tc>, window_params = [{pipeline_mode = #tpu.pipeline_mode<synchronous>, transform_indices = @transform_0, window_bounds = array<i64: 16, 16>}, {pipeline_mode = #tpu.pipeline_mode<synchronous>, transform_indices = @transform_1, window_bounds = array<i64: 16, 32>}, {pipeline_mode = #tpu.pipeline_mode<synchronous>, transform_indices = @transform_2, window_bounds = array<i64: 16, 32>}, {pipeline_mode = #tpu.pipeline_mode<synchronous>, transform_indices = @transform_3, window_bounds = array<i64: 2, 4, 32, 8>}, {pipeline_mode = #tpu.pipeline_mode<synchronous>, transform_indices = @transform_4, window_bounds = array<i64: 2, 4, 32, 8>}, {pipeline_mode = #tpu.pipeline_mode<synchronous>, transform_indices = @transform_5, window_bounds = array<i64: 2, 4, 32, 8>}, {pipeline_mode = #tpu.pipeline_mode<synchronous>, transform_indices = @transform_6, window_bounds = array<i64: 2, 4, 8, 32>}, {pipeline_mode = #tpu.pipeline_mode<synchronous>, transform_indices = @transform_7, window_bounds = array<i64: 2, 32, 64>}, {pipeline_mode = #tpu.pipeline_mode<synchronous>, transform_indices = @transform_8, window_bounds = array<i64: 2, 64, 32>}, {pipeline_mode = #tpu.pipeline_mode<synchronous>, transform_indices = @transform_9, window_bounds = array<i64: 32, 128>}, {pipeline_mode = #tpu.pipeline_mode<synchronous>, transform_indices = @transform_10, window_bounds = array<i64: 1, 128>}, {pipeline_mode = #tpu.pipeline_mode<synchronous>, transform_indices = @transform_11, window_bounds = array<i64: 2, 24, 128>}, {pipeline_mode = #tpu.pipeline_mode<synchronous>, transform_indices = @transform_12, window_bounds = array<i64: 16, 32>}, {pipeline_mode = #tpu.pipeline_mode<synchronous>, transform_indices = @transform_13, window_bounds = array<i64: 16, 128>}]} {
    %c0 = arith.constant 0 : index
    %c0_0 = arith.constant 0 : index
    %0 = vector.load %arg1[%c0, %c0_0] : memref<16x16xf32, #tpu.memory_space<vmem>>, vector<16x16xf32>
    %1 = arith.truncf %0 : vector<16x16xf32> to vector<16x16xbf16>
    %c0_1 = arith.constant 0 : index
    %c0_2 = arith.constant 0 : index
    %2 = vector.load %arg3[%c0_1, %c0_2] : memref<16x32xbf16, #tpu.memory_space<vmem>>, vector<16x32xbf16>
    %cst = arith.constant dense<0.000000e+00> : vector<16x32xf32>
    %3 = tpu.matmul %1, %2, %cst {dimension_numbers = #tpu.dot_dimension_numbers<[1], [0], [0], [1], [0, 0, 1, 1], [], []>} : vector<16x16xbf16>, vector<16x32xbf16>, vector<16x32xf32> -> vector<16x32xf32>
    %c0_3 = arith.constant 0 : index
    %c0_4 = arith.constant 0 : index
    %4 = vector.load %arg2[%c0_3, %c0_4] : memref<16x32xf32, #tpu.memory_space<vmem>>, vector<16x32xf32>
    %5 = arith.addf %3, %4 : vector<16x32xf32>
    %c0_5 = arith.constant 0 : index
    %c12 = arith.constant 12 : index
    %c0_6 = arith.constant 0 : index
    %6 = vector.load %arg12[%c0_5, %c12, %c0_6] : memref<2x24x128xf32, #tpu.memory_space<vmem>>, vector<1x1x32xf32>
    %7 = vector.shape_cast %6 : vector<1x1x32xf32> to vector<1x32xf32>
    %c0_7 = arith.constant 0 : index
    %c13 = arith.constant 13 : index
    %c0_8 = arith.constant 0 : index
    %8 = vector.load %arg12[%c0_7, %c13, %c0_8] : memref<2x24x128xf32, #tpu.memory_space<vmem>>, vector<1x1x32xf32>
    %9 = vector.shape_cast %8 : vector<1x1x32xf32> to vector<1x32xf32>
    %c0_9 = arith.constant 0 : index
    %c14 = arith.constant 14 : index
    %c0_10 = arith.constant 0 : index
    %10 = vector.load %arg12[%c0_9, %c14, %c0_10] : memref<2x24x128xf32, #tpu.memory_space<vmem>>, vector<1x1x32xf32>
    %11 = vector.shape_cast %10 : vector<1x1x32xf32> to vector<1x32xf32>
    %c0_11 = arith.constant 0 : index
    %c15 = arith.constant 15 : index
    %c0_12 = arith.constant 0 : index
    %12 = vector.load %arg12[%c0_11, %c15, %c0_12] : memref<2x24x128xf32, #tpu.memory_space<vmem>>, vector<1x1x32xf32>
    %13 = vector.shape_cast %12 : vector<1x1x32xf32> to vector<1x32xf32>
    %c0_13 = arith.constant 0 : index
    %c16 = arith.constant 16 : index
    %c0_14 = arith.constant 0 : index
    %14 = vector.load %arg12[%c0_13, %c16, %c0_14] : memref<2x24x128xf32, #tpu.memory_space<vmem>>, vector<1x1x32xf32>
    %15 = vector.shape_cast %14 : vector<1x1x32xf32> to vector<1x32xf32>
    %c0_15 = arith.constant 0 : index
    %c17 = arith.constant 17 : index
    %c0_16 = arith.constant 0 : index
    %16 = vector.load %arg12[%c0_15, %c17, %c0_16] : memref<2x24x128xf32, #tpu.memory_space<vmem>>, vector<1x1x64xf32>
    %17 = vector.shape_cast %16 : vector<1x1x64xf32> to vector<1x64xf32>
    %c0_17 = arith.constant 0 : index
    %c18 = arith.constant 18 : index
    %c0_18 = arith.constant 0 : index
    %18 = vector.load %arg12[%c0_17, %c18, %c0_18] : memref<2x24x128xf32, #tpu.memory_space<vmem>>, vector<1x1x32xf32>
    %19 = vector.shape_cast %18 : vector<1x1x32xf32> to vector<1x32xf32>
    %cst_19 = arith.constant dense<0.000000e+00> : vector<16xf32>
    %20 = vector.multi_reduction <add>, %5, %cst_19 [1] : vector<16x32xf32> to vector<16xf32>
    %21 = vector.shape_cast %20 : vector<16xf32> to vector<16x1xf32>
    %cst_20 = arith.constant 3.200000e+01 : f32
    %22 = vector.broadcast %cst_20 : f32 to vector<16x1xf32>
    %23 = arith.divf %21, %22 : vector<16x1xf32>
    %24 = arith.mulf %5, %5 : vector<16x32xf32>
    %cst_21 = arith.constant dense<0.000000e+00> : vector<16xf32>
    %25 = vector.multi_reduction <add>, %24, %cst_21 [1] : vector<16x32xf32> to vector<16xf32>
    %26 = vector.shape_cast %25 : vector<16xf32> to vector<16x1xf32>
    %cst_22 = arith.constant 3.200000e+01 : f32
    %27 = vector.broadcast %cst_22 : f32 to vector<16x1xf32>
    %28 = arith.divf %26, %27 : vector<16x1xf32>
    %29 = arith.mulf %23, %23 : vector<16x1xf32>
    %30 = arith.subf %28, %29 : vector<16x1xf32>
    %cst_23 = arith.constant 9.99999974E-6 : f32
    %31 = vector.broadcast %cst_23 : f32 to vector<16x1xf32>
    %32 = arith.addf %30, %31 : vector<16x1xf32>
    %33 = math.rsqrt %32 : vector<16x1xf32>
    %34 = vector.broadcast %23 : vector<16x1xf32> to vector<16x32xf32>
    %35 = arith.subf %5, %34 : vector<16x32xf32>
    %36 = vector.broadcast %33 : vector<16x1xf32> to vector<16x32xf32>
    %37 = vector.broadcast %7 : vector<1x32xf32> to vector<16x32xf32>
    %38 = arith.mulf %36, %37 : vector<16x32xf32>
    %39 = arith.mulf %35, %38 : vector<16x32xf32>
    %40 = vector.broadcast %9 : vector<1x32xf32> to vector<16x32xf32>
    %41 = arith.addf %39, %40 : vector<16x32xf32>
    %42 = arith.truncf %41 : vector<16x32xf32> to vector<16x32xbf16>
    %c0_24 = arith.constant 0 : index
    %c0_25 = arith.constant 0 : index
    %c0_26 = arith.constant 0 : index
    %43 = vector.load %arg12[%c0_24, %c0_25, %c0_26] : memref<2x24x128xf32, #tpu.memory_space<vmem>>, vector<1x1x8xf32>
    %44 = vector.shape_cast %43 : vector<1x1x8xf32> to vector<1x8xf32>
    %c0_27 = arith.constant 0 : index
    %c4 = arith.constant 4 : index
    %c0_28 = arith.constant 0 : index
    %45 = vector.load %arg12[%c0_27, %c4, %c0_28] : memref<2x24x128xf32, #tpu.memory_space<vmem>>, vector<1x1x8xf32>
    %46 = vector.shape_cast %45 : vector<1x1x8xf32> to vector<1x8xf32>
    %c0_29 = arith.constant 0 : index
    %c8 = arith.constant 8 : index
    %c0_30 = arith.constant 0 : index
    %47 = vector.load %arg12[%c0_29, %c8, %c0_30] : memref<2x24x128xf32, #tpu.memory_space<vmem>>, vector<1x1x8xf32>
    %48 = vector.shape_cast %47 : vector<1x1x8xf32> to vector<1x8xf32>
    %c0_31 = arith.constant 0 : index
    %c0_32 = arith.constant 0 : index
    %c0_33 = arith.constant 0 : index
    %c0_34 = arith.constant 0 : index
    %49 = vector.load %arg4[%c0_31, %c0_32, %c0_33, %c0_34] : memref<2x4x32x8xbf16, #tpu.memory_space<vmem>>, vector<1x1x32x8xbf16>
    %50 = vector.shape_cast %49 : vector<1x1x32x8xbf16> to vector<32x8xbf16>
    %cst_35 = arith.constant dense<0.000000e+00> : vector<16x8xf32>
    %51 = tpu.matmul %42, %50, %cst_35 {dimension_numbers = #tpu.dot_dimension_numbers<[1], [0], [0], [1], [0, 0, 1, 1], [], []>} : vector<16x32xbf16>, vector<32x8xbf16>, vector<16x8xf32> -> vector<16x8xf32>
    %52 = vector.broadcast %44 : vector<1x8xf32> to vector<16x8xf32>
    %53 = arith.addf %51, %52 : vector<16x8xf32>
    %c0_36 = arith.constant 0 : index
    %c0_37 = arith.constant 0 : index
    %c0_38 = arith.constant 0 : index
    %c0_39 = arith.constant 0 : index
    %54 = vector.load %arg5[%c0_36, %c0_37, %c0_38, %c0_39] : memref<2x4x32x8xbf16, #tpu.memory_space<vmem>>, vector<1x1x32x8xbf16>
    %55 = vector.shape_cast %54 : vector<1x1x32x8xbf16> to vector<32x8xbf16>
    %cst_40 = arith.constant dense<0.000000e+00> : vector<16x8xf32>
    %56 = tpu.matmul %42, %55, %cst_40 {dimension_numbers = #tpu.dot_dimension_numbers<[1], [0], [0], [1], [0, 0, 1, 1], [], []>} : vector<16x32xbf16>, vector<32x8xbf16>, vector<16x8xf32> -> vector<16x8xf32>
    %57 = vector.broadcast %46 : vector<1x8xf32> to vector<16x8xf32>
    %58 = arith.addf %56, %57 : vector<16x8xf32>
    %c0_41 = arith.constant 0 : index
    %c0_42 = arith.constant 0 : index
    %c0_43 = arith.constant 0 : index
    %c0_44 = arith.constant 0 : index
    %59 = vector.load %arg6[%c0_41, %c0_42, %c0_43, %c0_44] : memref<2x4x32x8xbf16, #tpu.memory_space<vmem>>, vector<1x1x32x8xbf16>
    %60 = vector.shape_cast %59 : vector<1x1x32x8xbf16> to vector<32x8xbf16>
    %cst_45 = arith.constant dense<0.000000e+00> : vector<16x8xf32>
    %61 = tpu.matmul %42, %60, %cst_45 {dimension_numbers = #tpu.dot_dimension_numbers<[1], [0], [0], [1], [0, 0, 1, 1], [], []>} : vector<16x32xbf16>, vector<32x8xbf16>, vector<16x8xf32> -> vector<16x8xf32>
    %62 = vector.broadcast %48 : vector<1x8xf32> to vector<16x8xf32>
    %63 = arith.addf %61, %62 : vector<16x8xf32>
    %64 = vector.shape_cast %53 : vector<16x8xf32> to vector<2x8x8xf32>
    %65 = arith.truncf %64 : vector<2x8x8xf32> to vector<2x8x8xbf16>
    %66 = vector.shape_cast %58 : vector<16x8xf32> to vector<2x8x8xf32>
    %67 = arith.truncf %66 : vector<2x8x8xf32> to vector<2x8x8xbf16>
    %68 = vector.shape_cast %63 : vector<16x8xf32> to vector<2x8x8xf32>
    %69 = arith.truncf %68 : vector<2x8x8xf32> to vector<2x8x8xbf16>
    "tpu.trace_start"() <{level = 10 : i32, message = "bqd,bkd->bqk"}> : () -> ()
    %cst_46 = arith.constant dense<0.000000e+00> : vector<2x8x8xf32>
    %70 = tpu.matmul %65, %67, %cst_46 {dimension_numbers = #tpu.dot_dimension_numbers<[2], [2], [1], [1], [0, 0, 0, 1, 1, 1], [0], [0]>} : vector<2x8x8xbf16>, vector<2x8x8xbf16>, vector<2x8x8xf32> -> vector<2x8x8xf32>
    "tpu.trace_stop"() : () -> ()
    %c0_47 = arith.constant 0 : index
    %c1 = arith.constant 1 : index
    %c0_48 = arith.constant 0 : index
    %71 = vector.load %arg12[%c0_47, %c1, %c0_48] : memref<2x24x128xf32, #tpu.memory_space<vmem>>, vector<1x1x8xf32>
    %72 = vector.shape_cast %71 : vector<1x1x8xf32> to vector<1x8xf32>
    %c0_49 = arith.constant 0 : index
    %c5 = arith.constant 5 : index
    %c0_50 = arith.constant 0 : index
    %73 = vector.load %arg12[%c0_49, %c5, %c0_50] : memref<2x24x128xf32, #tpu.memory_space<vmem>>, vector<1x1x8xf32>
    %74 = vector.shape_cast %73 : vector<1x1x8xf32> to vector<1x8xf32>
    %c0_51 = arith.constant 0 : index
    %c9 = arith.constant 9 : index
    %c0_52 = arith.constant 0 : index
    %75 = vector.load %arg12[%c0_51, %c9, %c0_52] : memref<2x24x128xf32, #tpu.memory_space<vmem>>, vector<1x1x8xf32>
    %76 = vector.shape_cast %75 : vector<1x1x8xf32> to vector<1x8xf32>
    %c0_53 = arith.constant 0 : index
    %c1_54 = arith.constant 1 : index
    %c0_55 = arith.constant 0 : index
    %c0_56 = arith.constant 0 : index
    %77 = vector.load %arg4[%c0_53, %c1_54, %c0_55, %c0_56] : memref<2x4x32x8xbf16, #tpu.memory_space<vmem>>, vector<1x1x32x8xbf16>
    %78 = vector.shape_cast %77 : vector<1x1x32x8xbf16> to vector<32x8xbf16>
    %cst_57 = arith.constant dense<0.000000e+00> : vector<16x8xf32>
    %79 = tpu.matmul %42, %78, %cst_57 {dimension_numbers = #tpu.dot_dimension_numbers<[1], [0], [0], [1], [0, 0, 1, 1], [], []>} : vector<16x32xbf16>, vector<32x8xbf16>, vector<16x8xf32> -> vector<16x8xf32>
    %80 = vector.broadcast %72 : vector<1x8xf32> to vector<16x8xf32>
    %81 = arith.addf %79, %80 : vector<16x8xf32>
    %c0_58 = arith.constant 0 : index
    %c1_59 = arith.constant 1 : index
    %c0_60 = arith.constant 0 : index
    %c0_61 = arith.constant 0 : index
    %82 = vector.load %arg5[%c0_58, %c1_59, %c0_60, %c0_61] : memref<2x4x32x8xbf16, #tpu.memory_space<vmem>>, vector<1x1x32x8xbf16>
    %83 = vector.shape_cast %82 : vector<1x1x32x8xbf16> to vector<32x8xbf16>
    %cst_62 = arith.constant dense<0.000000e+00> : vector<16x8xf32>
    %84 = tpu.matmul %42, %83, %cst_62 {dimension_numbers = #tpu.dot_dimension_numbers<[1], [0], [0], [1], [0, 0, 1, 1], [], []>} : vector<16x32xbf16>, vector<32x8xbf16>, vector<16x8xf32> -> vector<16x8xf32>
    %85 = vector.broadcast %74 : vector<1x8xf32> to vector<16x8xf32>
    %86 = arith.addf %84, %85 : vector<16x8xf32>
    %c0_63 = arith.constant 0 : index
    %c1_64 = arith.constant 1 : index
    %c0_65 = arith.constant 0 : index
    %c0_66 = arith.constant 0 : index
    %87 = vector.load %arg6[%c0_63, %c1_64, %c0_65, %c0_66] : memref<2x4x32x8xbf16, #tpu.memory_space<vmem>>, vector<1x1x32x8xbf16>
    %88 = vector.shape_cast %87 : vector<1x1x32x8xbf16> to vector<32x8xbf16>
    %cst_67 = arith.constant dense<0.000000e+00> : vector<16x8xf32>
    %89 = tpu.matmul %42, %88, %cst_67 {dimension_numbers = #tpu.dot_dimension_numbers<[1], [0], [0], [1], [0, 0, 1, 1], [], []>} : vector<16x32xbf16>, vector<32x8xbf16>, vector<16x8xf32> -> vector<16x8xf32>
    %90 = vector.broadcast %76 : vector<1x8xf32> to vector<16x8xf32>
    %91 = arith.addf %89, %90 : vector<16x8xf32>
    %92 = vector.shape_cast %81 : vector<16x8xf32> to vector<2x8x8xf32>
    %93 = arith.truncf %92 : vector<2x8x8xf32> to vector<2x8x8xbf16>
    %94 = vector.shape_cast %86 : vector<16x8xf32> to vector<2x8x8xf32>
    %95 = arith.truncf %94 : vector<2x8x8xf32> to vector<2x8x8xbf16>
    %96 = vector.shape_cast %91 : vector<16x8xf32> to vector<2x8x8xf32>
    %97 = arith.truncf %96 : vector<2x8x8xf32> to vector<2x8x8xbf16>
    "tpu.trace_start"() <{level = 10 : i32, message = "bqd,bkd->bqk"}> : () -> ()
    %cst_68 = arith.constant dense<0.000000e+00> : vector<2x8x8xf32>
    %98 = tpu.matmul %93, %95, %cst_68 {dimension_numbers = #tpu.dot_dimension_numbers<[2], [2], [1], [1], [0, 0, 0, 1, 1, 1], [0], [0]>} : vector<2x8x8xbf16>, vector<2x8x8xbf16>, vector<2x8x8xf32> -> vector<2x8x8xf32>
    "tpu.trace_stop"() : () -> ()
    %c0_69 = arith.constant 0 : index
    %c2 = arith.constant 2 : index
    %c0_70 = arith.constant 0 : index
    %99 = vector.load %arg12[%c0_69, %c2, %c0_70] : memref<2x24x128xf32, #tpu.memory_space<vmem>>, vector<1x1x8xf32>
    %100 = vector.shape_cast %99 : vector<1x1x8xf32> to vector<1x8xf32>
    %c0_71 = arith.constant 0 : index
    %c6 = arith.constant 6 : index
    %c0_72 = arith.constant 0 : index
    %101 = vector.load %arg12[%c0_71, %c6, %c0_72] : memref<2x24x128xf32, #tpu.memory_space<vmem>>, vector<1x1x8xf32>
    %102 = vector.shape_cast %101 : vector<1x1x8xf32> to vector<1x8xf32>
    %c0_73 = arith.constant 0 : index
    %c10 = arith.constant 10 : index
    %c0_74 = arith.constant 0 : index
    %103 = vector.load %arg12[%c0_73, %c10, %c0_74] : memref<2x24x128xf32, #tpu.memory_space<vmem>>, vector<1x1x8xf32>
    %104 = vector.shape_cast %103 : vector<1x1x8xf32> to vector<1x8xf32>
    %c0_75 = arith.constant 0 : index
    %c2_76 = arith.constant 2 : index
    %c0_77 = arith.constant 0 : index
    %c0_78 = arith.constant 0 : index
    %105 = vector.load %arg4[%c0_75, %c2_76, %c0_77, %c0_78] : memref<2x4x32x8xbf16, #tpu.memory_space<vmem>>, vector<1x1x32x8xbf16>
    %106 = vector.shape_cast %105 : vector<1x1x32x8xbf16> to vector<32x8xbf16>
    %cst_79 = arith.constant dense<0.000000e+00> : vector<16x8xf32>
    %107 = tpu.matmul %42, %106, %cst_79 {dimension_numbers = #tpu.dot_dimension_numbers<[1], [0], [0], [1], [0, 0, 1, 1], [], []>} : vector<16x32xbf16>, vector<32x8xbf16>, vector<16x8xf32> -> vector<16x8xf32>
    %108 = vector.broadcast %100 : vector<1x8xf32> to vector<16x8xf32>
    %109 = arith.addf %107, %108 : vector<16x8xf32>
    %c0_80 = arith.constant 0 : index
    %c2_81 = arith.constant 2 : index
    %c0_82 = arith.constant 0 : index
    %c0_83 = arith.constant 0 : index
    %110 = vector.load %arg5[%c0_80, %c2_81, %c0_82, %c0_83] : memref<2x4x32x8xbf16, #tpu.memory_space<vmem>>, vector<1x1x32x8xbf16>
    %111 = vector.shape_cast %110 : vector<1x1x32x8xbf16> to vector<32x8xbf16>
    %cst_84 = arith.constant dense<0.000000e+00> : vector<16x8xf32>
    %112 = tpu.matmul %42, %111, %cst_84 {dimension_numbers = #tpu.dot_dimension_numbers<[1], [0], [0], [1], [0, 0, 1, 1], [], []>} : vector<16x32xbf16>, vector<32x8xbf16>, vector<16x8xf32> -> vector<16x8xf32>
    %113 = vector.broadcast %102 : vector<1x8xf32> to vector<16x8xf32>
    %114 = arith.addf %112, %113 : vector<16x8xf32>
    %c0_85 = arith.constant 0 : index
    %c2_86 = arith.constant 2 : index
    %c0_87 = arith.constant 0 : index
    %c0_88 = arith.constant 0 : index
    %115 = vector.load %arg6[%c0_85, %c2_86, %c0_87, %c0_88] : memref<2x4x32x8xbf16, #tpu.memory_space<vmem>>, vector<1x1x32x8xbf16>
    %116 = vector.shape_cast %115 : vector<1x1x32x8xbf16> to vector<32x8xbf16>
    %cst_89 = arith.constant dense<0.000000e+00> : vector<16x8xf32>
    %117 = tpu.matmul %42, %116, %cst_89 {dimension_numbers = #tpu.dot_dimension_numbers<[1], [0], [0], [1], [0, 0, 1, 1], [], []>} : vector<16x32xbf16>, vector<32x8xbf16>, vector<16x8xf32> -> vector<16x8xf32>
    %118 = vector.broadcast %104 : vector<1x8xf32> to vector<16x8xf32>
    %119 = arith.addf %117, %118 : vector<16x8xf32>
    %120 = vector.shape_cast %109 : vector<16x8xf32> to vector<2x8x8xf32>
    %121 = arith.truncf %120 : vector<2x8x8xf32> to vector<2x8x8xbf16>
    %122 = vector.shape_cast %114 : vector<16x8xf32> to vector<2x8x8xf32>
    %123 = arith.truncf %122 : vector<2x8x8xf32> to vector<2x8x8xbf16>
    %124 = vector.shape_cast %119 : vector<16x8xf32> to vector<2x8x8xf32>
    %125 = arith.truncf %124 : vector<2x8x8xf32> to vector<2x8x8xbf16>
    "tpu.trace_start"() <{level = 10 : i32, message = "bqd,bkd->bqk"}> : () -> ()
    %cst_90 = arith.constant dense<0.000000e+00> : vector<2x8x8xf32>
    %126 = tpu.matmul %121, %123, %cst_90 {dimension_numbers = #tpu.dot_dimension_numbers<[2], [2], [1], [1], [0, 0, 0, 1, 1, 1], [0], [0]>} : vector<2x8x8xbf16>, vector<2x8x8xbf16>, vector<2x8x8xf32> -> vector<2x8x8xf32>
    "tpu.trace_stop"() : () -> ()
    %c0_91 = arith.constant 0 : index
    %c3 = arith.constant 3 : index
    %c0_92 = arith.constant 0 : index
    %127 = vector.load %arg12[%c0_91, %c3, %c0_92] : memref<2x24x128xf32, #tpu.memory_space<vmem>>, vector<1x1x8xf32>
    %128 = vector.shape_cast %127 : vector<1x1x8xf32> to vector<1x8xf32>
    %c0_93 = arith.constant 0 : index
    %c7 = arith.constant 7 : index
    %c0_94 = arith.constant 0 : index
    %129 = vector.load %arg12[%c0_93, %c7, %c0_94] : memref<2x24x128xf32, #tpu.memory_space<vmem>>, vector<1x1x8xf32>
    %130 = vector.shape_cast %129 : vector<1x1x8xf32> to vector<1x8xf32>
    %c0_95 = arith.constant 0 : index
    %c11 = arith.constant 11 : index
    %c0_96 = arith.constant 0 : index
    %131 = vector.load %arg12[%c0_95, %c11, %c0_96] : memref<2x24x128xf32, #tpu.memory_space<vmem>>, vector<1x1x8xf32>
    %132 = vector.shape_cast %131 : vector<1x1x8xf32> to vector<1x8xf32>
    %c0_97 = arith.constant 0 : index
    %c3_98 = arith.constant 3 : index
    %c0_99 = arith.constant 0 : index
    %c0_100 = arith.constant 0 : index
    %133 = vector.load %arg4[%c0_97, %c3_98, %c0_99, %c0_100] : memref<2x4x32x8xbf16, #tpu.memory_space<vmem>>, vector<1x1x32x8xbf16>
    %134 = vector.shape_cast %133 : vector<1x1x32x8xbf16> to vector<32x8xbf16>
    %cst_101 = arith.constant dense<0.000000e+00> : vector<16x8xf32>
    %135 = tpu.matmul %42, %134, %cst_101 {dimension_numbers = #tpu.dot_dimension_numbers<[1], [0], [0], [1], [0, 0, 1, 1], [], []>} : vector<16x32xbf16>, vector<32x8xbf16>, vector<16x8xf32> -> vector<16x8xf32>
    %136 = vector.broadcast %128 : vector<1x8xf32> to vector<16x8xf32>
    %137 = arith.addf %135, %136 : vector<16x8xf32>
    %c0_102 = arith.constant 0 : index
    %c3_103 = arith.constant 3 : index
    %c0_104 = arith.constant 0 : index
    %c0_105 = arith.constant 0 : index
    %138 = vector.load %arg5[%c0_102, %c3_103, %c0_104, %c0_105] : memref<2x4x32x8xbf16, #tpu.memory_space<vmem>>, vector<1x1x32x8xbf16>
    %139 = vector.shape_cast %138 : vector<1x1x32x8xbf16> to vector<32x8xbf16>
    %cst_106 = arith.constant dense<0.000000e+00> : vector<16x8xf32>
    %140 = tpu.matmul %42, %139, %cst_106 {dimension_numbers = #tpu.dot_dimension_numbers<[1], [0], [0], [1], [0, 0, 1, 1], [], []>} : vector<16x32xbf16>, vector<32x8xbf16>, vector<16x8xf32> -> vector<16x8xf32>
    %141 = vector.broadcast %130 : vector<1x8xf32> to vector<16x8xf32>
    %142 = arith.addf %140, %141 : vector<16x8xf32>
    %c0_107 = arith.constant 0 : index
    %c3_108 = arith.constant 3 : index
    %c0_109 = arith.constant 0 : index
    %c0_110 = arith.constant 0 : index
    %143 = vector.load %arg6[%c0_107, %c3_108, %c0_109, %c0_110] : memref<2x4x32x8xbf16, #tpu.memory_space<vmem>>, vector<1x1x32x8xbf16>
    %144 = vector.shape_cast %143 : vector<1x1x32x8xbf16> to vector<32x8xbf16>
    %cst_111 = arith.constant dense<0.000000e+00> : vector<16x8xf32>
    %145 = tpu.matmul %42, %144, %cst_111 {dimension_numbers = #tpu.dot_dimension_numbers<[1], [0], [0], [1], [0, 0, 1, 1], [], []>} : vector<16x32xbf16>, vector<32x8xbf16>, vector<16x8xf32> -> vector<16x8xf32>
    %146 = vector.broadcast %132 : vector<1x8xf32> to vector<16x8xf32>
    %147 = arith.addf %145, %146 : vector<16x8xf32>
    %148 = vector.shape_cast %137 : vector<16x8xf32> to vector<2x8x8xf32>
    %149 = arith.truncf %148 : vector<2x8x8xf32> to vector<2x8x8xbf16>
    %150 = vector.shape_cast %142 : vector<16x8xf32> to vector<2x8x8xf32>
    %151 = arith.truncf %150 : vector<2x8x8xf32> to vector<2x8x8xbf16>
    %152 = vector.shape_cast %147 : vector<16x8xf32> to vector<2x8x8xf32>
    %153 = arith.truncf %152 : vector<2x8x8xf32> to vector<2x8x8xbf16>
    "tpu.trace_start"() <{level = 10 : i32, message = "bqd,bkd->bqk"}> : () -> ()
    %cst_112 = arith.constant dense<0.000000e+00> : vector<2x8x8xf32>
    %154 = tpu.matmul %149, %151, %cst_112 {dimension_numbers = #tpu.dot_dimension_numbers<[2], [2], [1], [1], [0, 0, 0, 1, 1, 1], [0], [0]>} : vector<2x8x8xbf16>, vector<2x8x8xbf16>, vector<2x8x8xf32> -> vector<2x8x8xf32>
    "tpu.trace_stop"() : () -> ()
    %155 = vector.shape_cast %70 : vector<2x8x8xf32> to vector<1x2x8x8xf32>
    %156 = vector.shape_cast %98 : vector<2x8x8xf32> to vector<1x2x8x8xf32>
    %157 = vector.shape_cast %126 : vector<2x8x8xf32> to vector<1x2x8x8xf32>
    %158 = vector.shape_cast %154 : vector<2x8x8xf32> to vector<1x2x8x8xf32>
    %159 = tpu.concatenate %155, %156, %157, %158 in 0 : vector<1x2x8x8xf32>, vector<1x2x8x8xf32>, vector<1x2x8x8xf32>, vector<1x2x8x8xf32> -> vector<4x2x8x8xf32>
    %cst_113 = arith.constant dense<0xFF800000> : vector<4x2x8xf32>
    %160 = vector.multi_reduction <maximumf>, %159, %cst_113 [3] : vector<4x2x8x8xf32> to vector<4x2x8xf32>
    %161 = vector.shape_cast %160 : vector<4x2x8xf32> to vector<4x2x8x1xf32>
    %162 = vector.broadcast %161 : vector<4x2x8x1xf32> to vector<4x2x8x8xf32>
    %163 = arith.subf %159, %162 : vector<4x2x8x8xf32>
    %164 = math.exp %163 : vector<4x2x8x8xf32>
    %cst_114 = arith.constant dense<0.000000e+00> : vector<4x2x8xf32>
    %165 = vector.multi_reduction <add>, %164, %cst_114 [3] : vector<4x2x8x8xf32> to vector<4x2x8xf32>
    %166 = vector.shape_cast %165 : vector<4x2x8xf32> to vector<4x2x8x1xf32>
    %167 = tpu.reciprocal %166 {approx = true} : vector<4x2x8x1xf32> -> vector<4x2x8x1xf32>
    %168 = vector.broadcast %167 : vector<4x2x8x1xf32> to vector<4x2x8x8xf32>
    %169 = arith.mulf %164, %168 : vector<4x2x8x8xf32>
    %170 = arith.truncf %169 : vector<4x2x8x8xf32> to vector<4x2x8x8xbf16>
    %171 = vector.shape_cast %11 : vector<1x32xf32> to vector<1x32xf32>
    %172 = vector.broadcast %171 : vector<1x32xf32> to vector<16x32xf32>
    %173 = vector.extract_strided_slice %170 {offsets = [0, 0, 0, 0], sizes = [1, 2, 8, 8], strides = [1, 1, 1, 1]} : vector<4x2x8x8xbf16> to vector<1x2x8x8xbf16>
    %174 = vector.shape_cast %173 : vector<1x2x8x8xbf16> to vector<2x8x8xbf16>
    "tpu.trace_start"() <{level = 10 : i32, message = "bqk,bkd->bqd"}> : () -> ()
    %cst_115 = arith.constant dense<0.000000e+00> : vector<2x8x8xf32>
    %175 = tpu.matmul %174, %69, %cst_115 {dimension_numbers = #tpu.dot_dimension_numbers<[2], [1], [1], [2], [0, 0, 0, 1, 1, 2], [0], [0]>} : vector<2x8x8xbf16>, vector<2x8x8xbf16>, vector<2x8x8xf32> -> vector<2x8x8xf32>
    "tpu.trace_stop"() : () -> ()
    %176 = vector.shape_cast %175 : vector<2x8x8xf32> to vector<16x8xf32>
    %177 = arith.truncf %176 : vector<16x8xf32> to vector<16x8xbf16>
    %c0_116 = arith.constant 0 : index
    %c0_117 = arith.constant 0 : index
    %c0_118 = arith.constant 0 : index
    %c0_119 = arith.constant 0 : index
    %178 = vector.load %arg7[%c0_116, %c0_117, %c0_118, %c0_119] : memref<2x4x8x32xbf16, #tpu.memory_space<vmem>>, vector<1x1x8x32xbf16>
    %179 = vector.shape_cast %178 : vector<1x1x8x32xbf16> to vector<8x32xbf16>
    %cst_120 = arith.constant dense<0.000000e+00> : vector<16x32xf32>
    %180 = tpu.matmul %177, %179, %cst_120 {dimension_numbers = #tpu.dot_dimension_numbers<[1], [0], [0], [1], [0, 0, 1, 1], [], []>} : vector<16x8xbf16>, vector<8x32xbf16>, vector<16x32xf32> -> vector<16x32xf32>
    %181 = arith.addf %172, %180 : vector<16x32xf32>
    %182 = vector.extract_strided_slice %170 {offsets = [1, 0, 0, 0], sizes = [1, 2, 8, 8], strides = [1, 1, 1, 1]} : vector<4x2x8x8xbf16> to vector<1x2x8x8xbf16>
    %183 = vector.shape_cast %182 : vector<1x2x8x8xbf16> to vector<2x8x8xbf16>
    "tpu.trace_start"() <{level = 10 : i32, message = "bqk,bkd->bqd"}> : () -> ()
    %cst_121 = arith.constant dense<0.000000e+00> : vector<2x8x8xf32>
    %184 = tpu.matmul %183, %97, %cst_121 {dimension_numbers = #tpu.dot_dimension_numbers<[2], [1], [1], [2], [0, 0, 0, 1, 1, 2], [0], [0]>} : vector<2x8x8xbf16>, vector<2x8x8xbf16>, vector<2x8x8xf32> -> vector<2x8x8xf32>
    "tpu.trace_stop"() : () -> ()
    %185 = vector.shape_cast %184 : vector<2x8x8xf32> to vector<16x8xf32>
    %186 = arith.truncf %185 : vector<16x8xf32> to vector<16x8xbf16>
    %c0_122 = arith.constant 0 : index
    %c1_123 = arith.constant 1 : index
    %c0_124 = arith.constant 0 : index
    %c0_125 = arith.constant 0 : index
    %187 = vector.load %arg7[%c0_122, %c1_123, %c0_124, %c0_125] : memref<2x4x8x32xbf16, #tpu.memory_space<vmem>>, vector<1x1x8x32xbf16>
    %188 = vector.shape_cast %187 : vector<1x1x8x32xbf16> to vector<8x32xbf16>
    %cst_126 = arith.constant dense<0.000000e+00> : vector<16x32xf32>
    %189 = tpu.matmul %186, %188, %cst_126 {dimension_numbers = #tpu.dot_dimension_numbers<[1], [0], [0], [1], [0, 0, 1, 1], [], []>} : vector<16x8xbf16>, vector<8x32xbf16>, vector<16x32xf32> -> vector<16x32xf32>
    %190 = arith.addf %181, %189 : vector<16x32xf32>
    %191 = vector.extract_strided_slice %170 {offsets = [2, 0, 0, 0], sizes = [1, 2, 8, 8], strides = [1, 1, 1, 1]} : vector<4x2x8x8xbf16> to vector<1x2x8x8xbf16>
    %192 = vector.shape_cast %191 : vector<1x2x8x8xbf16> to vector<2x8x8xbf16>
    "tpu.trace_start"() <{level = 10 : i32, message = "bqk,bkd->bqd"}> : () -> ()
    %cst_127 = arith.constant dense<0.000000e+00> : vector<2x8x8xf32>
    %193 = tpu.matmul %192, %125, %cst_127 {dimension_numbers = #tpu.dot_dimension_numbers<[2], [1], [1], [2], [0, 0, 0, 1, 1, 2], [0], [0]>} : vector<2x8x8xbf16>, vector<2x8x8xbf16>, vector<2x8x8xf32> -> vector<2x8x8xf32>
    "tpu.trace_stop"() : () -> ()
    %194 = vector.shape_cast %193 : vector<2x8x8xf32> to vector<16x8xf32>
    %195 = arith.truncf %194 : vector<16x8xf32> to vector<16x8xbf16>
    %c0_128 = arith.constant 0 : index
    %c2_129 = arith.constant 2 : index
    %c0_130 = arith.constant 0 : index
    %c0_131 = arith.constant 0 : index
    %196 = vector.load %arg7[%c0_128, %c2_129, %c0_130, %c0_131] : memref<2x4x8x32xbf16, #tpu.memory_space<vmem>>, vector<1x1x8x32xbf16>
    %197 = vector.shape_cast %196 : vector<1x1x8x32xbf16> to vector<8x32xbf16>
    %cst_132 = arith.constant dense<0.000000e+00> : vector<16x32xf32>
    %198 = tpu.matmul %195, %197, %cst_132 {dimension_numbers = #tpu.dot_dimension_numbers<[1], [0], [0], [1], [0, 0, 1, 1], [], []>} : vector<16x8xbf16>, vector<8x32xbf16>, vector<16x32xf32> -> vector<16x32xf32>
    %199 = arith.addf %190, %198 : vector<16x32xf32>
    %200 = vector.extract_strided_slice %170 {offsets = [3, 0, 0, 0], sizes = [1, 2, 8, 8], strides = [1, 1, 1, 1]} : vector<4x2x8x8xbf16> to vector<1x2x8x8xbf16>
    %201 = vector.shape_cast %200 : vector<1x2x8x8xbf16> to vector<2x8x8xbf16>
    "tpu.trace_start"() <{level = 10 : i32, message = "bqk,bkd->bqd"}> : () -> ()
    %cst_133 = arith.constant dense<0.000000e+00> : vector<2x8x8xf32>
    %202 = tpu.matmul %201, %153, %cst_133 {dimension_numbers = #tpu.dot_dimension_numbers<[2], [1], [1], [2], [0, 0, 0, 1, 1, 2], [0], [0]>} : vector<2x8x8xbf16>, vector<2x8x8xbf16>, vector<2x8x8xf32> -> vector<2x8x8xf32>
    "tpu.trace_stop"() : () -> ()
    %203 = vector.shape_cast %202 : vector<2x8x8xf32> to vector<16x8xf32>
    %204 = arith.truncf %203 : vector<16x8xf32> to vector<16x8xbf16>
    %c0_134 = arith.constant 0 : index
    %c3_135 = arith.constant 3 : index
    %c0_136 = arith.constant 0 : index
    %c0_137 = arith.constant 0 : index
    %205 = vector.load %arg7[%c0_134, %c3_135, %c0_136, %c0_137] : memref<2x4x8x32xbf16, #tpu.memory_space<vmem>>, vector<1x1x8x32xbf16>
    %206 = vector.shape_cast %205 : vector<1x1x8x32xbf16> to vector<8x32xbf16>
    %cst_138 = arith.constant dense<0.000000e+00> : vector<16x32xf32>
    %207 = tpu.matmul %204, %206, %cst_138 {dimension_numbers = #tpu.dot_dimension_numbers<[1], [0], [0], [1], [0, 0, 1, 1], [], []>} : vector<16x8xbf16>, vector<8x32xbf16>, vector<16x32xf32> -> vector<16x32xf32>
    %208 = arith.addf %199, %207 : vector<16x32xf32>
    %209 = arith.addf %5, %208 : vector<16x32xf32>
    %cst_139 = arith.constant dense<0.000000e+00> : vector<16xf32>
    %210 = vector.multi_reduction <add>, %209, %cst_139 [1] : vector<16x32xf32> to vector<16xf32>
    %211 = vector.shape_cast %210 : vector<16xf32> to vector<16x1xf32>
    %cst_140 = arith.constant 3.200000e+01 : f32
    %212 = vector.broadcast %cst_140 : f32 to vector<16x1xf32>
    %213 = arith.divf %211, %212 : vector<16x1xf32>
    %214 = arith.mulf %209, %209 : vector<16x32xf32>
    %cst_141 = arith.constant dense<0.000000e+00> : vector<16xf32>
    %215 = vector.multi_reduction <add>, %214, %cst_141 [1] : vector<16x32xf32> to vector<16xf32>
    %216 = vector.shape_cast %215 : vector<16xf32> to vector<16x1xf32>
    %cst_142 = arith.constant 3.200000e+01 : f32
    %217 = vector.broadcast %cst_142 : f32 to vector<16x1xf32>
    %218 = arith.divf %216, %217 : vector<16x1xf32>
    %219 = arith.mulf %213, %213 : vector<16x1xf32>
    %220 = arith.subf %218, %219 : vector<16x1xf32>
    %cst_143 = arith.constant 9.99999974E-6 : f32
    %221 = vector.broadcast %cst_143 : f32 to vector<16x1xf32>
    %222 = arith.addf %220, %221 : vector<16x1xf32>
    %223 = math.rsqrt %222 : vector<16x1xf32>
    %224 = vector.broadcast %213 : vector<16x1xf32> to vector<16x32xf32>
    %225 = arith.subf %209, %224 : vector<16x32xf32>
    %226 = vector.broadcast %223 : vector<16x1xf32> to vector<16x32xf32>
    %227 = vector.broadcast %13 : vector<1x32xf32> to vector<16x32xf32>
    %228 = arith.mulf %226, %227 : vector<16x32xf32>
    %229 = arith.mulf %225, %228 : vector<16x32xf32>
    %230 = vector.broadcast %15 : vector<1x32xf32> to vector<16x32xf32>
    %231 = arith.addf %229, %230 : vector<16x32xf32>
    %232 = arith.truncf %231 : vector<16x32xf32> to vector<16x32xbf16>
    %c0_144 = arith.constant 0 : index
    %c0_145 = arith.constant 0 : index
    %c0_146 = arith.constant 0 : index
    %233 = vector.load %arg8[%c0_144, %c0_145, %c0_146] : memref<2x32x64xbf16, #tpu.memory_space<vmem>>, vector<1x32x64xbf16>
    %234 = vector.shape_cast %233 : vector<1x32x64xbf16> to vector<32x64xbf16>
    %cst_147 = arith.constant dense<0.000000e+00> : vector<16x64xf32>
    %235 = tpu.matmul %232, %234, %cst_147 {dimension_numbers = #tpu.dot_dimension_numbers<[1], [0], [0], [1], [0, 0, 1, 1], [], []>} : vector<16x32xbf16>, vector<32x64xbf16>, vector<16x64xf32> -> vector<16x64xf32>
    %236 = vector.broadcast %17 : vector<1x64xf32> to vector<16x64xf32>
    %237 = arith.addf %235, %236 : vector<16x64xf32>
    %cst_148 = arith.constant 0.000000e+00 : f32
    %238 = vector.broadcast %cst_148 : f32 to vector<16x64xf32>
    %239 = arith.maximumf %237, %238 : vector<16x64xf32>
    %240 = arith.truncf %239 : vector<16x64xf32> to vector<16x64xbf16>
    %c0_149 = arith.constant 0 : index
    %c0_150 = arith.constant 0 : index
    %c0_151 = arith.constant 0 : index
    %241 = vector.load %arg9[%c0_149, %c0_150, %c0_151] : memref<2x64x32xbf16, #tpu.memory_space<vmem>>, vector<1x64x32xbf16>
    %242 = vector.shape_cast %241 : vector<1x64x32xbf16> to vector<64x32xbf16>
    %cst_152 = arith.constant dense<0.000000e+00> : vector<16x32xf32>
    %243 = tpu.matmul %240, %242, %cst_152 {dimension_numbers = #tpu.dot_dimension_numbers<[1], [0], [0], [1], [0, 0, 1, 1], [], []>} : vector<16x64xbf16>, vector<64x32xbf16>, vector<16x32xf32> -> vector<16x32xf32>
    %244 = vector.broadcast %19 : vector<1x32xf32> to vector<16x32xf32>
    %245 = arith.addf %243, %244 : vector<16x32xf32>
    %246 = arith.addf %209, %245 : vector<16x32xf32>
    %c1_153 = arith.constant 1 : index
    %c12_154 = arith.constant 12 : index
    %c0_155 = arith.constant 0 : index
    %247 = vector.load %arg12[%c1_153, %c12_154, %c0_155] : memref<2x24x128xf32, #tpu.memory_space<vmem>>, vector<1x1x32xf32>
    %248 = vector.shape_cast %247 : vector<1x1x32xf32> to vector<1x32xf32>
    %c1_156 = arith.constant 1 : index
    %c13_157 = arith.constant 13 : index
    %c0_158 = arith.constant 0 : index
    %249 = vector.load %arg12[%c1_156, %c13_157, %c0_158] : memref<2x24x128xf32, #tpu.memory_space<vmem>>, vector<1x1x32xf32>
    %250 = vector.shape_cast %249 : vector<1x1x32xf32> to vector<1x32xf32>
    %c1_159 = arith.constant 1 : index
    %c14_160 = arith.constant 14 : index
    %c0_161 = arith.constant 0 : index
    %251 = vector.load %arg12[%c1_159, %c14_160, %c0_161] : memref<2x24x128xf32, #tpu.memory_space<vmem>>, vector<1x1x32xf32>
    %252 = vector.shape_cast %251 : vector<1x1x32xf32> to vector<1x32xf32>
    %c1_162 = arith.constant 1 : index
    %c15_163 = arith.constant 15 : index
    %c0_164 = arith.constant 0 : index
    %253 = vector.load %arg12[%c1_162, %c15_163, %c0_164] : memref<2x24x128xf32, #tpu.memory_space<vmem>>, vector<1x1x32xf32>
    %254 = vector.shape_cast %253 : vector<1x1x32xf32> to vector<1x32xf32>
    %c1_165 = arith.constant 1 : index
    %c16_166 = arith.constant 16 : index
    %c0_167 = arith.constant 0 : index
    %255 = vector.load %arg12[%c1_165, %c16_166, %c0_167] : memref<2x24x128xf32, #tpu.memory_space<vmem>>, vector<1x1x32xf32>
    %256 = vector.shape_cast %255 : vector<1x1x32xf32> to vector<1x32xf32>
    %c1_168 = arith.constant 1 : index
    %c17_169 = arith.constant 17 : index
    %c0_170 = arith.constant 0 : index
    %257 = vector.load %arg12[%c1_168, %c17_169, %c0_170] : memref<2x24x128xf32, #tpu.memory_space<vmem>>, vector<1x1x64xf32>
    %258 = vector.shape_cast %257 : vector<1x1x64xf32> to vector<1x64xf32>
    %c1_171 = arith.constant 1 : index
    %c18_172 = arith.constant 18 : index
    %c0_173 = arith.constant 0 : index
    %259 = vector.load %arg12[%c1_171, %c18_172, %c0_173] : memref<2x24x128xf32, #tpu.memory_space<vmem>>, vector<1x1x32xf32>
    %260 = vector.shape_cast %259 : vector<1x1x32xf32> to vector<1x32xf32>
    %cst_174 = arith.constant dense<0.000000e+00> : vector<16xf32>
    %261 = vector.multi_reduction <add>, %246, %cst_174 [1] : vector<16x32xf32> to vector<16xf32>
    %262 = vector.shape_cast %261 : vector<16xf32> to vector<16x1xf32>
    %cst_175 = arith.constant 3.200000e+01 : f32
    %263 = vector.broadcast %cst_175 : f32 to vector<16x1xf32>
    %264 = arith.divf %262, %263 : vector<16x1xf32>
    %265 = arith.mulf %246, %246 : vector<16x32xf32>
    %cst_176 = arith.constant dense<0.000000e+00> : vector<16xf32>
    %266 = vector.multi_reduction <add>, %265, %cst_176 [1] : vector<16x32xf32> to vector<16xf32>
    %267 = vector.shape_cast %266 : vector<16xf32> to vector<16x1xf32>
    %cst_177 = arith.constant 3.200000e+01 : f32
    %268 = vector.broadcast %cst_177 : f32 to vector<16x1xf32>
    %269 = arith.divf %267, %268 : vector<16x1xf32>
    %270 = arith.mulf %264, %264 : vector<16x1xf32>
    %271 = arith.subf %269, %270 : vector<16x1xf32>
    %cst_178 = arith.constant 9.99999974E-6 : f32
    %272 = vector.broadcast %cst_178 : f32 to vector<16x1xf32>
    %273 = arith.addf %271, %272 : vector<16x1xf32>
    %274 = math.rsqrt %273 : vector<16x1xf32>
    %275 = vector.broadcast %264 : vector<16x1xf32> to vector<16x32xf32>
    %276 = arith.subf %246, %275 : vector<16x32xf32>
    %277 = vector.broadcast %274 : vector<16x1xf32> to vector<16x32xf32>
    %278 = vector.broadcast %248 : vector<1x32xf32> to vector<16x32xf32>
    %279 = arith.mulf %277, %278 : vector<16x32xf32>
    %280 = arith.mulf %276, %279 : vector<16x32xf32>
    %281 = vector.broadcast %250 : vector<1x32xf32> to vector<16x32xf32>
    %282 = arith.addf %280, %281 : vector<16x32xf32>
    %283 = arith.truncf %282 : vector<16x32xf32> to vector<16x32xbf16>
    %c1_179 = arith.constant 1 : index
    %c0_180 = arith.constant 0 : index
    %c0_181 = arith.constant 0 : index
    %284 = vector.load %arg12[%c1_179, %c0_180, %c0_181] : memref<2x24x128xf32, #tpu.memory_space<vmem>>, vector<1x1x8xf32>
    %285 = vector.shape_cast %284 : vector<1x1x8xf32> to vector<1x8xf32>
    %c1_182 = arith.constant 1 : index
    %c4_183 = arith.constant 4 : index
    %c0_184 = arith.constant 0 : index
    %286 = vector.load %arg12[%c1_182, %c4_183, %c0_184] : memref<2x24x128xf32, #tpu.memory_space<vmem>>, vector<1x1x8xf32>
    %287 = vector.shape_cast %286 : vector<1x1x8xf32> to vector<1x8xf32>
    %c1_185 = arith.constant 1 : index
    %c8_186 = arith.constant 8 : index
    %c0_187 = arith.constant 0 : index
    %288 = vector.load %arg12[%c1_185, %c8_186, %c0_187] : memref<2x24x128xf32, #tpu.memory_space<vmem>>, vector<1x1x8xf32>
    %289 = vector.shape_cast %288 : vector<1x1x8xf32> to vector<1x8xf32>
    %c1_188 = arith.constant 1 : index
    %c0_189 = arith.constant 0 : index
    %c0_190 = arith.constant 0 : index
    %c0_191 = arith.constant 0 : index
    %290 = vector.load %arg4[%c1_188, %c0_189, %c0_190, %c0_191] : memref<2x4x32x8xbf16, #tpu.memory_space<vmem>>, vector<1x1x32x8xbf16>
    %291 = vector.shape_cast %290 : vector<1x1x32x8xbf16> to vector<32x8xbf16>
    %cst_192 = arith.constant dense<0.000000e+00> : vector<16x8xf32>
    %292 = tpu.matmul %283, %291, %cst_192 {dimension_numbers = #tpu.dot_dimension_numbers<[1], [0], [0], [1], [0, 0, 1, 1], [], []>} : vector<16x32xbf16>, vector<32x8xbf16>, vector<16x8xf32> -> vector<16x8xf32>
    %293 = vector.broadcast %285 : vector<1x8xf32> to vector<16x8xf32>
    %294 = arith.addf %292, %293 : vector<16x8xf32>
    %c1_193 = arith.constant 1 : index
    %c0_194 = arith.constant 0 : index
    %c0_195 = arith.constant 0 : index
    %c0_196 = arith.constant 0 : index
    %295 = vector.load %arg5[%c1_193, %c0_194, %c0_195, %c0_196] : memref<2x4x32x8xbf16, #tpu.memory_space<vmem>>, vector<1x1x32x8xbf16>
    %296 = vector.shape_cast %295 : vector<1x1x32x8xbf16> to vector<32x8xbf16>
    %cst_197 = arith.constant dense<0.000000e+00> : vector<16x8xf32>
    %297 = tpu.matmul %283, %296, %cst_197 {dimension_numbers = #tpu.dot_dimension_numbers<[1], [0], [0], [1], [0, 0, 1, 1], [], []>} : vector<16x32xbf16>, vector<32x8xbf16>, vector<16x8xf32> -> vector<16x8xf32>
    %298 = vector.broadcast %287 : vector<1x8xf32> to vector<16x8xf32>
    %299 = arith.addf %297, %298 : vector<16x8xf32>
    %c1_198 = arith.constant 1 : index
    %c0_199 = arith.constant 0 : index
    %c0_200 = arith.constant 0 : index
    %c0_201 = arith.constant 0 : index
    %300 = vector.load %arg6[%c1_198, %c0_199, %c0_200, %c0_201] : memref<2x4x32x8xbf16, #tpu.memory_space<vmem>>, vector<1x1x32x8xbf16>
    %301 = vector.shape_cast %300 : vector<1x1x32x8xbf16> to vector<32x8xbf16>
    %cst_202 = arith.constant dense<0.000000e+00> : vector<16x8xf32>
    %302 = tpu.matmul %283, %301, %cst_202 {dimension_numbers = #tpu.dot_dimension_numbers<[1], [0], [0], [1], [0, 0, 1, 1], [], []>} : vector<16x32xbf16>, vector<32x8xbf16>, vector<16x8xf32> -> vector<16x8xf32>
    %303 = vector.broadcast %289 : vector<1x8xf32> to vector<16x8xf32>
    %304 = arith.addf %302, %303 : vector<16x8xf32>
    %305 = vector.shape_cast %294 : vector<16x8xf32> to vector<2x8x8xf32>
    %306 = arith.truncf %305 : vector<2x8x8xf32> to vector<2x8x8xbf16>
    %307 = vector.shape_cast %299 : vector<16x8xf32> to vector<2x8x8xf32>
    %308 = arith.truncf %307 : vector<2x8x8xf32> to vector<2x8x8xbf16>
    %309 = vector.shape_cast %304 : vector<16x8xf32> to vector<2x8x8xf32>
    %310 = arith.truncf %309 : vector<2x8x8xf32> to vector<2x8x8xbf16>
    "tpu.trace_start"() <{level = 10 : i32, message = "bqd,bkd->bqk"}> : () -> ()
    %cst_203 = arith.constant dense<0.000000e+00> : vector<2x8x8xf32>
    %311 = tpu.matmul %306, %308, %cst_203 {dimension_numbers = #tpu.dot_dimension_numbers<[2], [2], [1], [1], [0, 0, 0, 1, 1, 1], [0], [0]>} : vector<2x8x8xbf16>, vector<2x8x8xbf16>, vector<2x8x8xf32> -> vector<2x8x8xf32>
    "tpu.trace_stop"() : () -> ()
    %c1_204 = arith.constant 1 : index
    %c1_205 = arith.constant 1 : index
    %c0_206 = arith.constant 0 : index
    %312 = vector.load %arg12[%c1_204, %c1_205, %c0_206] : memref<2x24x128xf32, #tpu.memory_space<vmem>>, vector<1x1x8xf32>
    %313 = vector.shape_cast %312 : vector<1x1x8xf32> to vector<1x8xf32>
    %c1_207 = arith.constant 1 : index
    %c5_208 = arith.constant 5 : index
    %c0_209 = arith.constant 0 : index
    %314 = vector.load %arg12[%c1_207, %c5_208, %c0_209] : memref<2x24x128xf32, #tpu.memory_space<vmem>>, vector<1x1x8xf32>
    %315 = vector.shape_cast %314 : vector<1x1x8xf32> to vector<1x8xf32>
    %c1_210 = arith.constant 1 : index
    %c9_211 = arith.constant 9 : index
    %c0_212 = arith.constant 0 : index
    %316 = vector.load %arg12[%c1_210, %c9_211, %c0_212] : memref<2x24x128xf32, #tpu.memory_space<vmem>>, vector<1x1x8xf32>
    %317 = vector.shape_cast %316 : vector<1x1x8xf32> to vector<1x8xf32>
    %c1_213 = arith.constant 1 : index
    %c1_214 = arith.constant 1 : index
    %c0_215 = arith.constant 0 : index
    %c0_216 = arith.constant 0 : index
    %318 = vector.load %arg4[%c1_213, %c1_214, %c0_215, %c0_216] : memref<2x4x32x8xbf16, #tpu.memory_space<vmem>>, vector<1x1x32x8xbf16>
    %319 = vector.shape_cast %318 : vector<1x1x32x8xbf16> to vector<32x8xbf16>
    %cst_217 = arith.constant dense<0.000000e+00> : vector<16x8xf32>
    %320 = tpu.matmul %283, %319, %cst_217 {dimension_numbers = #tpu.dot_dimension_numbers<[1], [0], [0], [1], [0, 0, 1, 1], [], []>} : vector<16x32xbf16>, vector<32x8xbf16>, vector<16x8xf32> -> vector<16x8xf32>
    %321 = vector.broadcast %313 : vector<1x8xf32> to vector<16x8xf32>
    %322 = arith.addf %320, %321 : vector<16x8xf32>
    %c1_218 = arith.constant 1 : index
    %c1_219 = arith.constant 1 : index
    %c0_220 = arith.constant 0 : index
    %c0_221 = arith.constant 0 : index
    %323 = vector.load %arg5[%c1_218, %c1_219, %c0_220, %c0_221] : memref<2x4x32x8xbf16, #tpu.memory_space<vmem>>, vector<1x1x32x8xbf16>
    %324 = vector.shape_cast %323 : vector<1x1x32x8xbf16> to vector<32x8xbf16>
    %cst_222 = arith.constant dense<0.000000e+00> : vector<16x8xf32>
    %325 = tpu.matmul %283, %324, %cst_222 {dimension_numbers = #tpu.dot_dimension_numbers<[1], [0], [0], [1], [0, 0, 1, 1], [], []>} : vector<16x32xbf16>, vector<32x8xbf16>, vector<16x8xf32> -> vector<16x8xf32>
    %326 = vector.broadcast %315 : vector<1x8xf32> to vector<16x8xf32>
    %327 = arith.addf %325, %326 : vector<16x8xf32>
    %c1_223 = arith.constant 1 : index
    %c1_224 = arith.constant 1 : index
    %c0_225 = arith.constant 0 : index
    %c0_226 = arith.constant 0 : index
    %328 = vector.load %arg6[%c1_223, %c1_224, %c0_225, %c0_226] : memref<2x4x32x8xbf16, #tpu.memory_space<vmem>>, vector<1x1x32x8xbf16>
    %329 = vector.shape_cast %328 : vector<1x1x32x8xbf16> to vector<32x8xbf16>
    %cst_227 = arith.constant dense<0.000000e+00> : vector<16x8xf32>
    %330 = tpu.matmul %283, %329, %cst_227 {dimension_numbers = #tpu.dot_dimension_numbers<[1], [0], [0], [1], [0, 0, 1, 1], [], []>} : vector<16x32xbf16>, vector<32x8xbf16>, vector<16x8xf32> -> vector<16x8xf32>
    %331 = vector.broadcast %317 : vector<1x8xf32> to vector<16x8xf32>
    %332 = arith.addf %330, %331 : vector<16x8xf32>
    %333 = vector.shape_cast %322 : vector<16x8xf32> to vector<2x8x8xf32>
    %334 = arith.truncf %333 : vector<2x8x8xf32> to vector<2x8x8xbf16>
    %335 = vector.shape_cast %327 : vector<16x8xf32> to vector<2x8x8xf32>
    %336 = arith.truncf %335 : vector<2x8x8xf32> to vector<2x8x8xbf16>
    %337 = vector.shape_cast %332 : vector<16x8xf32> to vector<2x8x8xf32>
    %338 = arith.truncf %337 : vector<2x8x8xf32> to vector<2x8x8xbf16>
    "tpu.trace_start"() <{level = 10 : i32, message = "bqd,bkd->bqk"}> : () -> ()
    %cst_228 = arith.constant dense<0.000000e+00> : vector<2x8x8xf32>
    %339 = tpu.matmul %334, %336, %cst_228 {dimension_numbers = #tpu.dot_dimension_numbers<[2], [2], [1], [1], [0, 0, 0, 1, 1, 1], [0], [0]>} : vector<2x8x8xbf16>, vector<2x8x8xbf16>, vector<2x8x8xf32> -> vector<2x8x8xf32>
    "tpu.trace_stop"() : () -> ()
    %c1_229 = arith.constant 1 : index
    %c2_230 = arith.constant 2 : index
    %c0_231 = arith.constant 0 : index
    %340 = vector.load %arg12[%c1_229, %c2_230, %c0_231] : memref<2x24x128xf32, #tpu.memory_space<vmem>>, vector<1x1x8xf32>
    %341 = vector.shape_cast %340 : vector<1x1x8xf32> to vector<1x8xf32>
    %c1_232 = arith.constant 1 : index
    %c6_233 = arith.constant 6 : index
    %c0_234 = arith.constant 0 : index
    %342 = vector.load %arg12[%c1_232, %c6_233, %c0_234] : memref<2x24x128xf32, #tpu.memory_space<vmem>>, vector<1x1x8xf32>
    %343 = vector.shape_cast %342 : vector<1x1x8xf32> to vector<1x8xf32>
    %c1_235 = arith.constant 1 : index
    %c10_236 = arith.constant 10 : index
    %c0_237 = arith.constant 0 : index
    %344 = vector.load %arg12[%c1_235, %c10_236, %c0_237] : memref<2x24x128xf32, #tpu.memory_space<vmem>>, vector<1x1x8xf32>
    %345 = vector.shape_cast %344 : vector<1x1x8xf32> to vector<1x8xf32>
    %c1_238 = arith.constant 1 : index
    %c2_239 = arith.constant 2 : index
    %c0_240 = arith.constant 0 : index
    %c0_241 = arith.constant 0 : index
    %346 = vector.load %arg4[%c1_238, %c2_239, %c0_240, %c0_241] : memref<2x4x32x8xbf16, #tpu.memory_space<vmem>>, vector<1x1x32x8xbf16>
    %347 = vector.shape_cast %346 : vector<1x1x32x8xbf16> to vector<32x8xbf16>
    %cst_242 = arith.constant dense<0.000000e+00> : vector<16x8xf32>
    %348 = tpu.matmul %283, %347, %cst_242 {dimension_numbers = #tpu.dot_dimension_numbers<[1], [0], [0], [1], [0, 0, 1, 1], [], []>} : vector<16x32xbf16>, vector<32x8xbf16>, vector<16x8xf32> -> vector<16x8xf32>
    %349 = vector.broadcast %341 : vector<1x8xf32> to vector<16x8xf32>
    %350 = arith.addf %348, %349 : vector<16x8xf32>
    %c1_243 = arith.constant 1 : index
    %c2_244 = arith.constant 2 : index
    %c0_245 = arith.constant 0 : index
    %c0_246 = arith.constant 0 : index
    %351 = vector.load %arg5[%c1_243, %c2_244, %c0_245, %c0_246] : memref<2x4x32x8xbf16, #tpu.memory_space<vmem>>, vector<1x1x32x8xbf16>
    %352 = vector.shape_cast %351 : vector<1x1x32x8xbf16> to vector<32x8xbf16>
    %cst_247 = arith.constant dense<0.000000e+00> : vector<16x8xf32>
    %353 = tpu.matmul %283, %352, %cst_247 {dimension_numbers = #tpu.dot_dimension_numbers<[1], [0], [0], [1], [0, 0, 1, 1], [], []>} : vector<16x32xbf16>, vector<32x8xbf16>, vector<16x8xf32> -> vector<16x8xf32>
    %354 = vector.broadcast %343 : vector<1x8xf32> to vector<16x8xf32>
    %355 = arith.addf %353, %354 : vector<16x8xf32>
    %c1_248 = arith.constant 1 : index
    %c2_249 = arith.constant 2 : index
    %c0_250 = arith.constant 0 : index
    %c0_251 = arith.constant 0 : index
    %356 = vector.load %arg6[%c1_248, %c2_249, %c0_250, %c0_251] : memref<2x4x32x8xbf16, #tpu.memory_space<vmem>>, vector<1x1x32x8xbf16>
    %357 = vector.shape_cast %356 : vector<1x1x32x8xbf16> to vector<32x8xbf16>
    %cst_252 = arith.constant dense<0.000000e+00> : vector<16x8xf32>
    %358 = tpu.matmul %283, %357, %cst_252 {dimension_numbers = #tpu.dot_dimension_numbers<[1], [0], [0], [1], [0, 0, 1, 1], [], []>} : vector<16x32xbf16>, vector<32x8xbf16>, vector<16x8xf32> -> vector<16x8xf32>
    %359 = vector.broadcast %345 : vector<1x8xf32> to vector<16x8xf32>
    %360 = arith.addf %358, %359 : vector<16x8xf32>
    %361 = vector.shape_cast %350 : vector<16x8xf32> to vector<2x8x8xf32>
    %362 = arith.truncf %361 : vector<2x8x8xf32> to vector<2x8x8xbf16>
    %363 = vector.shape_cast %355 : vector<16x8xf32> to vector<2x8x8xf32>
    %364 = arith.truncf %363 : vector<2x8x8xf32> to vector<2x8x8xbf16>
    %365 = vector.shape_cast %360 : vector<16x8xf32> to vector<2x8x8xf32>
    %366 = arith.truncf %365 : vector<2x8x8xf32> to vector<2x8x8xbf16>
    "tpu.trace_start"() <{level = 10 : i32, message = "bqd,bkd->bqk"}> : () -> ()
    %cst_253 = arith.constant dense<0.000000e+00> : vector<2x8x8xf32>
    %367 = tpu.matmul %362, %364, %cst_253 {dimension_numbers = #tpu.dot_dimension_numbers<[2], [2], [1], [1], [0, 0, 0, 1, 1, 1], [0], [0]>} : vector<2x8x8xbf16>, vector<2x8x8xbf16>, vector<2x8x8xf32> -> vector<2x8x8xf32>
    "tpu.trace_stop"() : () -> ()
    %c1_254 = arith.constant 1 : index
    %c3_255 = arith.constant 3 : index
    %c0_256 = arith.constant 0 : index
    %368 = vector.load %arg12[%c1_254, %c3_255, %c0_256] : memref<2x24x128xf32, #tpu.memory_space<vmem>>, vector<1x1x8xf32>
    %369 = vector.shape_cast %368 : vector<1x1x8xf32> to vector<1x8xf32>
    %c1_257 = arith.constant 1 : index
    %c7_258 = arith.constant 7 : index
    %c0_259 = arith.constant 0 : index
    %370 = vector.load %arg12[%c1_257, %c7_258, %c0_259] : memref<2x24x128xf32, #tpu.memory_space<vmem>>, vector<1x1x8xf32>
    %371 = vector.shape_cast %370 : vector<1x1x8xf32> to vector<1x8xf32>
    %c1_260 = arith.constant 1 : index
    %c11_261 = arith.constant 11 : index
    %c0_262 = arith.constant 0 : index
    %372 = vector.load %arg12[%c1_260, %c11_261, %c0_262] : memref<2x24x128xf32, #tpu.memory_space<vmem>>, vector<1x1x8xf32>
    %373 = vector.shape_cast %372 : vector<1x1x8xf32> to vector<1x8xf32>
    %c1_263 = arith.constant 1 : index
    %c3_264 = arith.constant 3 : index
    %c0_265 = arith.constant 0 : index
    %c0_266 = arith.constant 0 : index
    %374 = vector.load %arg4[%c1_263, %c3_264, %c0_265, %c0_266] : memref<2x4x32x8xbf16, #tpu.memory_space<vmem>>, vector<1x1x32x8xbf16>
    %375 = vector.shape_cast %374 : vector<1x1x32x8xbf16> to vector<32x8xbf16>
    %cst_267 = arith.constant dense<0.000000e+00> : vector<16x8xf32>
    %376 = tpu.matmul %283, %375, %cst_267 {dimension_numbers = #tpu.dot_dimension_numbers<[1], [0], [0], [1], [0, 0, 1, 1], [], []>} : vector<16x32xbf16>, vector<32x8xbf16>, vector<16x8xf32> -> vector<16x8xf32>
    %377 = vector.broadcast %369 : vector<1x8xf32> to vector<16x8xf32>
    %378 = arith.addf %376, %377 : vector<16x8xf32>
    %c1_268 = arith.constant 1 : index
    %c3_269 = arith.constant 3 : index
    %c0_270 = arith.constant 0 : index
    %c0_271 = arith.constant 0 : index
    %379 = vector.load %arg5[%c1_268, %c3_269, %c0_270, %c0_271] : memref<2x4x32x8xbf16, #tpu.memory_space<vmem>>, vector<1x1x32x8xbf16>
    %380 = vector.shape_cast %379 : vector<1x1x32x8xbf16> to vector<32x8xbf16>
    %cst_272 = arith.constant dense<0.000000e+00> : vector<16x8xf32>
    %381 = tpu.matmul %283, %380, %cst_272 {dimension_numbers = #tpu.dot_dimension_numbers<[1], [0], [0], [1], [0, 0, 1, 1], [], []>} : vector<16x32xbf16>, vector<32x8xbf16>, vector<16x8xf32> -> vector<16x8xf32>
    %382 = vector.broadcast %371 : vector<1x8xf32> to vector<16x8xf32>
    %383 = arith.addf %381, %382 : vector<16x8xf32>
    %c1_273 = arith.constant 1 : index
    %c3_274 = arith.constant 3 : index
    %c0_275 = arith.constant 0 : index
    %c0_276 = arith.constant 0 : index
    %384 = vector.load %arg6[%c1_273, %c3_274, %c0_275, %c0_276] : memref<2x4x32x8xbf16, #tpu.memory_space<vmem>>, vector<1x1x32x8xbf16>
    %385 = vector.shape_cast %384 : vector<1x1x32x8xbf16> to vector<32x8xbf16>
    %cst_277 = arith.constant dense<0.000000e+00> : vector<16x8xf32>
    %386 = tpu.matmul %283, %385, %cst_277 {dimension_numbers = #tpu.dot_dimension_numbers<[1], [0], [0], [1], [0, 0, 1, 1], [], []>} : vector<16x32xbf16>, vector<32x8xbf16>, vector<16x8xf32> -> vector<16x8xf32>
    %387 = vector.broadcast %373 : vector<1x8xf32> to vector<16x8xf32>
    %388 = arith.addf %386, %387 : vector<16x8xf32>
    %389 = vector.shape_cast %378 : vector<16x8xf32> to vector<2x8x8xf32>
    %390 = arith.truncf %389 : vector<2x8x8xf32> to vector<2x8x8xbf16>
    %391 = vector.shape_cast %383 : vector<16x8xf32> to vector<2x8x8xf32>
    %392 = arith.truncf %391 : vector<2x8x8xf32> to vector<2x8x8xbf16>
    %393 = vector.shape_cast %388 : vector<16x8xf32> to vector<2x8x8xf32>
    %394 = arith.truncf %393 : vector<2x8x8xf32> to vector<2x8x8xbf16>
    "tpu.trace_start"() <{level = 10 : i32, message = "bqd,bkd->bqk"}> : () -> ()
    %cst_278 = arith.constant dense<0.000000e+00> : vector<2x8x8xf32>
    %395 = tpu.matmul %390, %392, %cst_278 {dimension_numbers = #tpu.dot_dimension_numbers<[2], [2], [1], [1], [0, 0, 0, 1, 1, 1], [0], [0]>} : vector<2x8x8xbf16>, vector<2x8x8xbf16>, vector<2x8x8xf32> -> vector<2x8x8xf32>
    "tpu.trace_stop"() : () -> ()
    %396 = vector.shape_cast %311 : vector<2x8x8xf32> to vector<1x2x8x8xf32>
    %397 = vector.shape_cast %339 : vector<2x8x8xf32> to vector<1x2x8x8xf32>
    %398 = vector.shape_cast %367 : vector<2x8x8xf32> to vector<1x2x8x8xf32>
    %399 = vector.shape_cast %395 : vector<2x8x8xf32> to vector<1x2x8x8xf32>
    %400 = tpu.concatenate %396, %397, %398, %399 in 0 : vector<1x2x8x8xf32>, vector<1x2x8x8xf32>, vector<1x2x8x8xf32>, vector<1x2x8x8xf32> -> vector<4x2x8x8xf32>
    %cst_279 = arith.constant dense<0xFF800000> : vector<4x2x8xf32>
    %401 = vector.multi_reduction <maximumf>, %400, %cst_279 [3] : vector<4x2x8x8xf32> to vector<4x2x8xf32>
    %402 = vector.shape_cast %401 : vector<4x2x8xf32> to vector<4x2x8x1xf32>
    %403 = vector.broadcast %402 : vector<4x2x8x1xf32> to vector<4x2x8x8xf32>
    %404 = arith.subf %400, %403 : vector<4x2x8x8xf32>
    %405 = math.exp %404 : vector<4x2x8x8xf32>
    %cst_280 = arith.constant dense<0.000000e+00> : vector<4x2x8xf32>
    %406 = vector.multi_reduction <add>, %405, %cst_280 [3] : vector<4x2x8x8xf32> to vector<4x2x8xf32>
    %407 = vector.shape_cast %406 : vector<4x2x8xf32> to vector<4x2x8x1xf32>
    %408 = tpu.reciprocal %407 {approx = true} : vector<4x2x8x1xf32> -> vector<4x2x8x1xf32>
    %409 = vector.broadcast %408 : vector<4x2x8x1xf32> to vector<4x2x8x8xf32>
    %410 = arith.mulf %405, %409 : vector<4x2x8x8xf32>
    %411 = arith.truncf %410 : vector<4x2x8x8xf32> to vector<4x2x8x8xbf16>
    %412 = vector.shape_cast %252 : vector<1x32xf32> to vector<1x32xf32>
    %413 = vector.broadcast %412 : vector<1x32xf32> to vector<16x32xf32>
    %414 = vector.extract_strided_slice %411 {offsets = [0, 0, 0, 0], sizes = [1, 2, 8, 8], strides = [1, 1, 1, 1]} : vector<4x2x8x8xbf16> to vector<1x2x8x8xbf16>
    %415 = vector.shape_cast %414 : vector<1x2x8x8xbf16> to vector<2x8x8xbf16>
    "tpu.trace_start"() <{level = 10 : i32, message = "bqk,bkd->bqd"}> : () -> ()
    %cst_281 = arith.constant dense<0.000000e+00> : vector<2x8x8xf32>
    %416 = tpu.matmul %415, %310, %cst_281 {dimension_numbers = #tpu.dot_dimension_numbers<[2], [1], [1], [2], [0, 0, 0, 1, 1, 2], [0], [0]>} : vector<2x8x8xbf16>, vector<2x8x8xbf16>, vector<2x8x8xf32> -> vector<2x8x8xf32>
    "tpu.trace_stop"() : () -> ()
    %417 = vector.shape_cast %416 : vector<2x8x8xf32> to vector<16x8xf32>
    %418 = arith.truncf %417 : vector<16x8xf32> to vector<16x8xbf16>
    %c1_282 = arith.constant 1 : index
    %c0_283 = arith.constant 0 : index
    %c0_284 = arith.constant 0 : index
    %c0_285 = arith.constant 0 : index
    %419 = vector.load %arg7[%c1_282, %c0_283, %c0_284, %c0_285] : memref<2x4x8x32xbf16, #tpu.memory_space<vmem>>, vector<1x1x8x32xbf16>
    %420 = vector.shape_cast %419 : vector<1x1x8x32xbf16> to vector<8x32xbf16>
    %cst_286 = arith.constant dense<0.000000e+00> : vector<16x32xf32>
    %421 = tpu.matmul %418, %420, %cst_286 {dimension_numbers = #tpu.dot_dimension_numbers<[1], [0], [0], [1], [0, 0, 1, 1], [], []>} : vector<16x8xbf16>, vector<8x32xbf16>, vector<16x32xf32> -> vector<16x32xf32>
    %422 = arith.addf %413, %421 : vector<16x32xf32>
    %423 = vector.extract_strided_slice %411 {offsets = [1, 0, 0, 0], sizes = [1, 2, 8, 8], strides = [1, 1, 1, 1]} : vector<4x2x8x8xbf16> to vector<1x2x8x8xbf16>
    %424 = vector.shape_cast %423 : vector<1x2x8x8xbf16> to vector<2x8x8xbf16>
    "tpu.trace_start"() <{level = 10 : i32, message = "bqk,bkd->bqd"}> : () -> ()
    %cst_287 = arith.constant dense<0.000000e+00> : vector<2x8x8xf32>
    %425 = tpu.matmul %424, %338, %cst_287 {dimension_numbers = #tpu.dot_dimension_numbers<[2], [1], [1], [2], [0, 0, 0, 1, 1, 2], [0], [0]>} : vector<2x8x8xbf16>, vector<2x8x8xbf16>, vector<2x8x8xf32> -> vector<2x8x8xf32>
    "tpu.trace_stop"() : () -> ()
    %426 = vector.shape_cast %425 : vector<2x8x8xf32> to vector<16x8xf32>
    %427 = arith.truncf %426 : vector<16x8xf32> to vector<16x8xbf16>
    %c1_288 = arith.constant 1 : index
    %c1_289 = arith.constant 1 : index
    %c0_290 = arith.constant 0 : index
    %c0_291 = arith.constant 0 : index
    %428 = vector.load %arg7[%c1_288, %c1_289, %c0_290, %c0_291] : memref<2x4x8x32xbf16, #tpu.memory_space<vmem>>, vector<1x1x8x32xbf16>
    %429 = vector.shape_cast %428 : vector<1x1x8x32xbf16> to vector<8x32xbf16>
    %cst_292 = arith.constant dense<0.000000e+00> : vector<16x32xf32>
    %430 = tpu.matmul %427, %429, %cst_292 {dimension_numbers = #tpu.dot_dimension_numbers<[1], [0], [0], [1], [0, 0, 1, 1], [], []>} : vector<16x8xbf16>, vector<8x32xbf16>, vector<16x32xf32> -> vector<16x32xf32>
    %431 = arith.addf %422, %430 : vector<16x32xf32>
    %432 = vector.extract_strided_slice %411 {offsets = [2, 0, 0, 0], sizes = [1, 2, 8, 8], strides = [1, 1, 1, 1]} : vector<4x2x8x8xbf16> to vector<1x2x8x8xbf16>
    %433 = vector.shape_cast %432 : vector<1x2x8x8xbf16> to vector<2x8x8xbf16>
    "tpu.trace_start"() <{level = 10 : i32, message = "bqk,bkd->bqd"}> : () -> ()
    %cst_293 = arith.constant dense<0.000000e+00> : vector<2x8x8xf32>
    %434 = tpu.matmul %433, %366, %cst_293 {dimension_numbers = #tpu.dot_dimension_numbers<[2], [1], [1], [2], [0, 0, 0, 1, 1, 2], [0], [0]>} : vector<2x8x8xbf16>, vector<2x8x8xbf16>, vector<2x8x8xf32> -> vector<2x8x8xf32>
    "tpu.trace_stop"() : () -> ()
    %435 = vector.shape_cast %434 : vector<2x8x8xf32> to vector<16x8xf32>
    %436 = arith.truncf %435 : vector<16x8xf32> to vector<16x8xbf16>
    %c1_294 = arith.constant 1 : index
    %c2_295 = arith.constant 2 : index
    %c0_296 = arith.constant 0 : index
    %c0_297 = arith.constant 0 : index
    %437 = vector.load %arg7[%c1_294, %c2_295, %c0_296, %c0_297] : memref<2x4x8x32xbf16, #tpu.memory_space<vmem>>, vector<1x1x8x32xbf16>
    %438 = vector.shape_cast %437 : vector<1x1x8x32xbf16> to vector<8x32xbf16>
    %cst_298 = arith.constant dense<0.000000e+00> : vector<16x32xf32>
    %439 = tpu.matmul %436, %438, %cst_298 {dimension_numbers = #tpu.dot_dimension_numbers<[1], [0], [0], [1], [0, 0, 1, 1], [], []>} : vector<16x8xbf16>, vector<8x32xbf16>, vector<16x32xf32> -> vector<16x32xf32>
    %440 = arith.addf %431, %439 : vector<16x32xf32>
    %441 = vector.extract_strided_slice %411 {offsets = [3, 0, 0, 0], sizes = [1, 2, 8, 8], strides = [1, 1, 1, 1]} : vector<4x2x8x8xbf16> to vector<1x2x8x8xbf16>
    %442 = vector.shape_cast %441 : vector<1x2x8x8xbf16> to vector<2x8x8xbf16>
    "tpu.trace_start"() <{level = 10 : i32, message = "bqk,bkd->bqd"}> : () -> ()
    %cst_299 = arith.constant dense<0.000000e+00> : vector<2x8x8xf32>
    %443 = tpu.matmul %442, %394, %cst_299 {dimension_numbers = #tpu.dot_dimension_numbers<[2], [1], [1], [2], [0, 0, 0, 1, 1, 2], [0], [0]>} : vector<2x8x8xbf16>, vector<2x8x8xbf16>, vector<2x8x8xf32> -> vector<2x8x8xf32>
    "tpu.trace_stop"() : () -> ()
    %444 = vector.shape_cast %443 : vector<2x8x8xf32> to vector<16x8xf32>
    %445 = arith.truncf %444 : vector<16x8xf32> to vector<16x8xbf16>
    %c1_300 = arith.constant 1 : index
    %c3_301 = arith.constant 3 : index
    %c0_302 = arith.constant 0 : index
    %c0_303 = arith.constant 0 : index
    %446 = vector.load %arg7[%c1_300, %c3_301, %c0_302, %c0_303] : memref<2x4x8x32xbf16, #tpu.memory_space<vmem>>, vector<1x1x8x32xbf16>
    %447 = vector.shape_cast %446 : vector<1x1x8x32xbf16> to vector<8x32xbf16>
    %cst_304 = arith.constant dense<0.000000e+00> : vector<16x32xf32>
    %448 = tpu.matmul %445, %447, %cst_304 {dimension_numbers = #tpu.dot_dimension_numbers<[1], [0], [0], [1], [0, 0, 1, 1], [], []>} : vector<16x8xbf16>, vector<8x32xbf16>, vector<16x32xf32> -> vector<16x32xf32>
    %449 = arith.addf %440, %448 : vector<16x32xf32>
    %450 = arith.addf %246, %449 : vector<16x32xf32>
    %cst_305 = arith.constant dense<0.000000e+00> : vector<16xf32>
    %451 = vector.multi_reduction <add>, %450, %cst_305 [1] : vector<16x32xf32> to vector<16xf32>
    %452 = vector.shape_cast %451 : vector<16xf32> to vector<16x1xf32>
    %cst_306 = arith.constant 3.200000e+01 : f32
    %453 = vector.broadcast %cst_306 : f32 to vector<16x1xf32>
    %454 = arith.divf %452, %453 : vector<16x1xf32>
    %455 = arith.mulf %450, %450 : vector<16x32xf32>
    %cst_307 = arith.constant dense<0.000000e+00> : vector<16xf32>
    %456 = vector.multi_reduction <add>, %455, %cst_307 [1] : vector<16x32xf32> to vector<16xf32>
    %457 = vector.shape_cast %456 : vector<16xf32> to vector<16x1xf32>
    %cst_308 = arith.constant 3.200000e+01 : f32
    %458 = vector.broadcast %cst_308 : f32 to vector<16x1xf32>
    %459 = arith.divf %457, %458 : vector<16x1xf32>
    %460 = arith.mulf %454, %454 : vector<16x1xf32>
    %461 = arith.subf %459, %460 : vector<16x1xf32>
    %cst_309 = arith.constant 9.99999974E-6 : f32
    %462 = vector.broadcast %cst_309 : f32 to vector<16x1xf32>
    %463 = arith.addf %461, %462 : vector<16x1xf32>
    %464 = math.rsqrt %463 : vector<16x1xf32>
    %465 = vector.broadcast %454 : vector<16x1xf32> to vector<16x32xf32>
    %466 = arith.subf %450, %465 : vector<16x32xf32>
    %467 = vector.broadcast %464 : vector<16x1xf32> to vector<16x32xf32>
    %468 = vector.broadcast %254 : vector<1x32xf32> to vector<16x32xf32>
    %469 = arith.mulf %467, %468 : vector<16x32xf32>
    %470 = arith.mulf %466, %469 : vector<16x32xf32>
    %471 = vector.broadcast %256 : vector<1x32xf32> to vector<16x32xf32>
    %472 = arith.addf %470, %471 : vector<16x32xf32>
    %473 = arith.truncf %472 : vector<16x32xf32> to vector<16x32xbf16>
    %c1_310 = arith.constant 1 : index
    %c0_311 = arith.constant 0 : index
    %c0_312 = arith.constant 0 : index
    %474 = vector.load %arg8[%c1_310, %c0_311, %c0_312] : memref<2x32x64xbf16, #tpu.memory_space<vmem>>, vector<1x32x64xbf16>
    %475 = vector.shape_cast %474 : vector<1x32x64xbf16> to vector<32x64xbf16>
    %cst_313 = arith.constant dense<0.000000e+00> : vector<16x64xf32>
    %476 = tpu.matmul %473, %475, %cst_313 {dimension_numbers = #tpu.dot_dimension_numbers<[1], [0], [0], [1], [0, 0, 1, 1], [], []>} : vector<16x32xbf16>, vector<32x64xbf16>, vector<16x64xf32> -> vector<16x64xf32>
    %477 = vector.broadcast %258 : vector<1x64xf32> to vector<16x64xf32>
    %478 = arith.addf %476, %477 : vector<16x64xf32>
    %cst_314 = arith.constant 0.000000e+00 : f32
    %479 = vector.broadcast %cst_314 : f32 to vector<16x64xf32>
    %480 = arith.maximumf %478, %479 : vector<16x64xf32>
    %481 = arith.truncf %480 : vector<16x64xf32> to vector<16x64xbf16>
    %c1_315 = arith.constant 1 : index
    %c0_316 = arith.constant 0 : index
    %c0_317 = arith.constant 0 : index
    %482 = vector.load %arg9[%c1_315, %c0_316, %c0_317] : memref<2x64x32xbf16, #tpu.memory_space<vmem>>, vector<1x64x32xbf16>
    %483 = vector.shape_cast %482 : vector<1x64x32xbf16> to vector<64x32xbf16>
    %cst_318 = arith.constant dense<0.000000e+00> : vector<16x32xf32>
    %484 = tpu.matmul %481, %483, %cst_318 {dimension_numbers = #tpu.dot_dimension_numbers<[1], [0], [0], [1], [0, 0, 1, 1], [], []>} : vector<16x64xbf16>, vector<64x32xbf16>, vector<16x32xf32> -> vector<16x32xf32>
    %485 = vector.broadcast %260 : vector<1x32xf32> to vector<16x32xf32>
    %486 = arith.addf %484, %485 : vector<16x32xf32>
    %487 = arith.addf %450, %486 : vector<16x32xf32>
    %c0_319 = arith.constant 0 : index
    %c0_320 = arith.constant 0 : index
    %488 = vector.load %arg13[%c0_319, %c0_320] : memref<16x32xf32, #tpu.memory_space<vmem>>, vector<16x32xf32>
    tpu.vector_store %arg13[%c0_319, %c0_320], %487 {strides = array<i32>} : memref<16x32xf32, #tpu.memory_space<vmem>>, vector<16x32xf32>,
    %489 = arith.truncf %487 : vector<16x32xf32> to vector<16x32xbf16>
    %c0_321 = arith.constant 0 : index
    %c0_322 = arith.constant 0 : index
    %490 = vector.load %arg10[%c0_321, %c0_322] : memref<32x128xbf16, #tpu.memory_space<vmem>>, vector<32x128xbf16>
    %cst_323 = arith.constant dense<0.000000e+00> : vector<16x128xf32>
    %491 = tpu.matmul %489, %490, %cst_323 {dimension_numbers = #tpu.dot_dimension_numbers<[1], [0], [0], [1], [0, 0, 1, 1], [], []>} : vector<16x32xbf16>, vector<32x128xbf16>, vector<16x128xf32> -> vector<16x128xf32>
    %c0_324 = arith.constant 0 : index
    %c0_325 = arith.constant 0 : index
    %492 = vector.load %arg11[%c0_324, %c0_325] : memref<1x128xf32, #tpu.memory_space<vmem>>, vector<1x128xf32>
    %493 = vector.broadcast %492 : vector<1x128xf32> to vector<16x128xf32>
    %494 = arith.addf %491, %493 : vector<16x128xf32>
    %c0_326 = arith.constant 0 : index
    %c0_327 = arith.constant 0 : index
    %495 = vector.load %arg14[%c0_326, %c0_327] : memref<16x128xf32, #tpu.memory_space<vmem>>, vector<16x128xf32>
    tpu.vector_store %arg14[%c0_326, %c0_327], %494 {strides = array<i32>} : memref<16x128xf32, #tpu.memory_space<vmem>>, vector<16x128xf32>,
    return
  }
  func.func @transform_0(%arg0: i32) -> (i32, i32) {
    %c0_i32 = arith.constant 0 : i32
    %c0_i32_0 = arith.constant 0 : i32
    %c0_i32_1 = arith.constant 0 : i32
    return %c0_i32, %c0_i32_0 : i32, i32
  }
  func.func @transform_1(%arg0: i32) -> (i32, i32) {
    %c0_i32 = arith.constant 0 : i32
    %c0_i32_0 = arith.constant 0 : i32
    %c0_i32_1 = arith.constant 0 : i32
    return %c0_i32, %c0_i32_0 : i32, i32
  }
  func.func @transform_2(%arg0: i32) -> (i32, i32) {
    %c0_i32 = arith.constant 0 : i32
    %c0_i32_0 = arith.constant 0 : i32
    %c0_i32_1 = arith.constant 0 : i32
    return %c0_i32, %c0_i32_0 : i32, i32
  }
  func.func @transform_3(%arg0: i32) -> (i32, i32, i32, i32) {
    %c0_i32 = arith.constant 0 : i32
    %c0_i32_0 = arith.constant 0 : i32
    %c0_i32_1 = arith.constant 0 : i32
    %c0_i32_2 = arith.constant 0 : i32
    %c0_i32_3 = arith.constant 0 : i32
    return %c0_i32, %c0_i32_0, %c0_i32_1, %c0_i32_2 : i32, i32, i32, i32
  }
  func.func @transform_4(%arg0: i32) -> (i32, i32, i32, i32) {
    %c0_i32 = arith.constant 0 : i32
    %c0_i32_0 = arith.constant 0 : i32
    %c0_i32_1 = arith.constant 0 : i32
    %c0_i32_2 = arith.constant 0 : i32
    %c0_i32_3 = arith.constant 0 : i32
    return %c0_i32, %c0_i32_0, %c0_i32_1, %c0_i32_2 : i32, i32, i32, i32
  }
  func.func @transform_5(%arg0: i32) -> (i32, i32, i32, i32) {
    %c0_i32 = arith.constant 0 : i32
    %c0_i32_0 = arith.constant 0 : i32
    %c0_i32_1 = arith.constant 0 : i32
    %c0_i32_2 = arith.constant 0 : i32
    %c0_i32_3 = arith.constant 0 : i32
    return %c0_i32, %c0_i32_0, %c0_i32_1, %c0_i32_2 : i32, i32, i32, i32
  }
  func.func @transform_6(%arg0: i32) -> (i32, i32, i32, i32) {
    %c0_i32 = arith.constant 0 : i32
    %c0_i32_0 = arith.constant 0 : i32
    %c0_i32_1 = arith.constant 0 : i32
    %c0_i32_2 = arith.constant 0 : i32
    %c0_i32_3 = arith.constant 0 : i32
    return %c0_i32, %c0_i32_0, %c0_i32_1, %c0_i32_2 : i32, i32, i32, i32
  }
  func.func @transform_7(%arg0: i32) -> (i32, i32, i32) {
    %c0_i32 = arith.constant 0 : i32
    %c0_i32_0 = arith.constant 0 : i32
    %c0_i32_1 = arith.constant 0 : i32
    %c0_i32_2 = arith.constant 0 : i32
    return %c0_i32, %c0_i32_0, %c0_i32_1 : i32, i32, i32
  }
  func.func @transform_8(%arg0: i32) -> (i32, i32, i32) {
    %c0_i32 = arith.constant 0 : i32
    %c0_i32_0 = arith.constant 0 : i32
    %c0_i32_1 = arith.constant 0 : i32
    %c0_i32_2 = arith.constant 0 : i32
    return %c0_i32, %c0_i32_0, %c0_i32_1 : i32, i32, i32
  }
  func.func @transform_9(%arg0: i32) -> (i32, i32) {
    %c0_i32 = arith.constant 0 : i32
    %c0_i32_0 = arith.constant 0 : i32
    %c0_i32_1 = arith.constant 0 : i32
    return %c0_i32, %c0_i32_0 : i32, i32
  }
  func.func @transform_10(%arg0: i32) -> (i32, i32) {
    %c0_i32 = arith.constant 0 : i32
    %c0_i32_0 = arith.constant 0 : i32
    %c0_i32_1 = arith.constant 0 : i32
    return %c0_i32, %c0_i32_0 : i32, i32
  }
  func.func @transform_11(%arg0: i32) -> (i32, i32, i32) {
    %c0_i32 = arith.constant 0 : i32
    %c0_i32_0 = arith.constant 0 : i32
    %c0_i32_1 = arith.constant 0 : i32
    %c0_i32_2 = arith.constant 0 : i32
    return %c0_i32, %c0_i32_0, %c0_i32_1 : i32, i32, i32
  }
  func.func @transform_12(%arg0: i32) -> (i32, i32) {
    %c0_i32 = arith.constant 0 : i32
    %c0_i32_0 = arith.constant 0 : i32
    %c0_i32_1 = arith.constant 0 : i32
    return %c0_i32, %c0_i32_0 : i32, i32
  }
  func.func @transform_13(%arg0: i32) -> (i32, i32) {
    %c0_i32 = arith.constant 0 : i32
    %c0_i32_0 = arith.constant 0 : i32
    %c0_i32_1 = arith.constant 0 : i32
    return %c0_i32, %c0_i32_0 : i32, i32
  }
}

</mosaic_0001>

<llo_original>
// kernel: tpu_custom_call.1
$region0: #{tpu_custom_call.1}
  #allocation0 [shape = 'u32[]', space=smem, size = 0x4, offset = 0x4, fixed_abs, tag = 'smem constant byte address 0x4 - core index']
  #allocation1 [shape = 'u32[144,128]{1,0:T(1,128)}', space=vmem, size = 0x12000, scoped, tag = 'internal scratch']
  %s0 = inlined_call_operand.vmem [shape: f32[16,16], index: 0, kind: input, shape index: {}]
  %s1 = inlined_call_operand.vmem [shape: f32[16,32], index: 1, kind: input, shape index: {}]
  %s2 = inlined_call_operand.vmem [shape: bf16[16,32], index: 2, kind: input, shape index: {}]
  %s3 = inlined_call_operand.vmem [shape: bf16[2,4,32,8], index: 3, kind: input, shape index: {}]
  %s4 = inlined_call_operand.vmem [shape: bf16[2,4,32,8], index: 4, kind: input, shape index: {}]
  %s5 = inlined_call_operand.vmem [shape: bf16[2,4,32,8], index: 5, kind: input, shape index: {}]
  %s6 = inlined_call_operand.vmem [shape: bf16[2,4,8,32], index: 6, kind: input, shape index: {}]
  %s7 = inlined_call_operand.vmem [shape: bf16[2,32,64], index: 7, kind: input, shape index: {}]
  %s8 = inlined_call_operand.vmem [shape: bf16[2,64,32], index: 8, kind: input, shape index: {}]
  %s9 = inlined_call_operand.vmem [shape: bf16[32,128], index: 9, kind: input, shape index: {}]
  %s10 = inlined_call_operand.vmem [shape: f32[1,128], index: 10, kind: input, shape index: {}]
  %s11 = inlined_call_operand.vmem [shape: f32[2,24,128], index: 11, kind: input, shape index: {}]
  %s12 = inlined_call_operand.hbm [shape: f32[16,32], index: 12, kind: output, shape index: {0}]
  %s13 = inlined_call_operand.hbm [shape: f32[16,128], index: 13, kind: output, shape index: {1}]
  %14 = xla_tuple %s12, %s13
  %s15 = sld [smem:[#allocation0]]
  $region66: #{tpu_custom_call.1} parent=0
    _
  %s17 = ssub.s32 1, %s15
  %s18 = scalar_select 0, %s17, %s15
  $region1: #{tpu_custom_call.1} parent=0
    #allocation2 [shape = 'u8[8192]{0}', space=vmem, size = 0x2000, scoped, tag = 'output window, operand 0, single buffered']
    #allocation3 [shape = 's32[1]{0}', space=sflag, size = 0x4, scoped, tag = 'scoped memory for tpu_custom_call.1']
    #allocation4 [shape = 'u8[8192]{0}', space=vmem, size = 0x2000, scoped, tag = 'output window, operand 1, single buffered']
    #allocation5 [shape = 's32[1]{0}', space=sflag, size = 0x4, scoped, tag = 'scoped memory for tpu_custom_call.1']
    %19 = vsyncpa [#allocation3], 0
    %20 = vsyncpa [#allocation5], 0
    // Predicated region
    $region2: #{tpu_custom_call.1} parent=1 // pred_check
      _
    $region3: #{tpu_custom_call.1} parent=1 // pred_check_branch
      %22 = sbr.rel (0) target = $region5
    $region4: #{tpu_custom_call.1} parent=1 // pred_region
      _
    $region5: #{tpu_custom_call.1} parent=1 // pred_fallthru
      _
    // Predicated region
    $region6: #{tpu_custom_call.1} parent=1 // pred_check
      _
    $region7: #{tpu_custom_call.1} parent=1 // pred_check_branch
      %24 = sbr.rel (0) target = $region9
    $region8: #{tpu_custom_call.1} parent=1 // pred_region
      _
    $region9: #{tpu_custom_call.1} parent=1 // pred_fallthru
      _
    // Predicated region
    $region10: #{tpu_custom_call.1} parent=1 // pred_check
      _
    $region11: #{tpu_custom_call.1} parent=1 // pred_check_branch
      %26 = sbr.rel (0) target = $region13
    $region12: #{tpu_custom_call.1} parent=1 // pred_region
      _
    $region13: #{tpu_custom_call.1} parent=1 // pred_fallthru
      _
    // Predicated region
    $region14: #{tpu_custom_call.1} parent=1 // pred_check
      _
    $region15: #{tpu_custom_call.1} parent=1 // pred_check_branch
      %28 = sbr.rel (0) target = $region17
    $region16: #{tpu_custom_call.1} parent=1 // pred_region
      _
    $region17: #{tpu_custom_call.1} parent=1 // pred_fallthru
      _
    // Predicated region
    $region18: #{tpu_custom_call.1} parent=1 // pred_check
      _
    $region19: #{tpu_custom_call.1} parent=1 // pred_check_branch
      %30 = sbr.rel (0) target = $region21
    $region20: #{tpu_custom_call.1} parent=1 // pred_region
      _
    $region21: #{tpu_custom_call.1} parent=1 // pred_fallthru
      _
    // Predicated region
    $region22: #{tpu_custom_call.1} parent=1 // pred_check
      _
    $region23: #{tpu_custom_call.1} parent=1 // pred_check_branch
      %32 = sbr.rel (0) target = $region25
    $region24: #{tpu_custom_call.1} parent=1 // pred_region
      _
    $region25: #{tpu_custom_call.1} parent=1 // pred_fallthru
      _
    // Predicated region
    $region26: #{tpu_custom_call.1} parent=1 // pred_check
      _
    $region27: #{tpu_custom_call.1} parent=1 // pred_check_branch
      %34 = sbr.rel (0) target = $region29
    $region28: #{tpu_custom_call.1} parent=1 // pred_region
      _
    $region29: #{tpu_custom_call.1} parent=1 // pred_fallthru
      _
    // Predicated region
    $region30: #{tpu_custom_call.1} parent=1 // pred_check
      _
    $region31: #{tpu_custom_call.1} parent=1 // pred_check_branch
      %36 = sbr.rel (0) target = $region33
    $region32: #{tpu_custom_call.1} parent=1 // pred_region
      _
    $region33: #{tpu_custom_call.1} parent=1 // pred_fallthru
      _
    // Predicated region
    $region34: #{tpu_custom_call.1} parent=1 // pred_check
      _
    $region35: #{tpu_custom_call.1} parent=1 // pred_check_branch
      %38 = sbr.rel (0) target = $region37
    $region36: #{tpu_custom_call.1} parent=1 // pred_region
      _
    $region37: #{tpu_custom_call.1} parent=1 // pred_fallthru
      _
    // Predicated region
    $region38: #{tpu_custom_call.1} parent=1 // pred_check
      _
    $region39: #{tpu_custom_call.1} parent=1 // pred_check_branch
      %40 = sbr.rel (0) target = $region41
    $region40: #{tpu_custom_call.1} parent=1 // pred_region
      _
    $region41: #{tpu_custom_call.1} parent=1 // pred_fallthru
      _
    // Predicated region
    $region42: #{tpu_custom_call.1} parent=1 // pred_check
      _
    $region43: #{tpu_custom_call.1} parent=1 // pred_check_branch
      %42 = sbr.rel (0) target = $region45
    $region44: #{tpu_custom_call.1} parent=1 // pred_region
      _
    $region45: #{tpu_custom_call.1} parent=1 // pred_fallthru
      _
    // Predicated region
    $region46: #{tpu_custom_call.1} parent=1 // pred_check
      _
    $region47: #{tpu_custom_call.1} parent=1 // pred_check_branch
      %44 = sbr.rel (0) target = $region49
    $region48: #{tpu_custom_call.1} parent=1 // pred_region
      _
    $region49: #{tpu_custom_call.1} parent=1 // pred_fallthru
      _
    %v46 = vld [vmem:[%s0] sm:$0xff]
    %v47 = vld [vmem:[%s0 + $0x8] sm:$0xff]
    %v48 = vpack.c.bf16 %v47, %v46
    %v49 = vld [vmem:[%s2] sm:$0xf]
    %v50 = vld [vmem:[%s2 + $0x4] sm:$0xf]
    %v51 = vld [vmem:[%s1] sm:$0xff]
    %v52 = vld [vmem:[%s1 + $0x8] sm:$0xff]
    %v55 = vunpack.c.l.b16 %v49
    %v56 = vunpack.c.l.b16 %v50
    %v57 = vpack.c.b16 %v56, %v55
    %vm59 = vcmask 130048
    %v61 = vsel %vm59, %v48, 0
    %63 = vmatprep.subr.bf16.mxu0 0
    %64 = vmatpush1.bf16.msra.mxu0 %v57
    %65 = vmatprep.subr.bf16.mxu0 0
    %66 = vmatpush1.bf16.msra.mxu0 0
    %67 = vmatprep.subr.bf16.mxu0 0
    %68 = vmatpush1.bf16.msra.mxu0 0
    %69 = vmatprep.subr.bf16.mxu0 0
    %70 = vmatpush1.bf16.msra.mxu0 0
    %71 = vmatprep.subr.bf16.mxu0 0
    %72 = vmatpush1.bf16.msra.mxu0 0
    %73 = vmatprep.subr.bf16.mxu0 0
    %74 = vmatpush1.bf16.msra.mxu0 0
    %75 = vmatprep.subr.bf16.mxu0 0
    %76 = vmatpush1.bf16.msra.mxu0 0
    %77 = vmatprep.subr.bf16.mxu0 0
    %78 = vmatpush1.bf16.msra.mxu0 0
    %79 = vmatprep.subr.bf16.mxu0 0
    %80 = vmatpush1.bf16.msra.mxu0 0
    %81 = vmatprep.subr.bf16.mxu0 0
    %82 = vmatpush1.bf16.msra.mxu0 0
    %83 = vmatprep.subr.bf16.mxu0 0
    %84 = vmatpush1.bf16.msra.mxu0 0
    %85 = vmatprep.subr.bf16.mxu0 0
    %86 = vmatpush1.bf16.msra.mxu0 0
    %87 = vmatprep.subr.bf16.mxu0 0
    %88 = vmatpush1.bf16.msra.mxu0 0
    %89 = vmatprep.subr.bf16.mxu0 0
    %90 = vmatpush1.bf16.msra.mxu0 0
    %91 = vmatprep.subr.bf16.mxu0 0
    %92 = vmatpush1.bf16.msra.mxu0 0
    %93 = vmatprep.subr.bf16.mxu0 0
    %94 = vmatpush1.bf16.msra.mxu0 0
    %95 = vmatprep.mubr.bf16.mxu0 0
    %96 = vmatmul.mubr.bf16.gmra.mrb[0].mxu0 %v61
    %v97 = vpop.f32.mrb[0].mxu0
    %v98 = vadd.f32 %v51, %v97
    %v99 = vpop.f32.mrb[0].mxu0
    %v100 = vpop.f32.mrb[0].mxu0
    %v101 = vadd.f32 %v52, %v100
    %v102 = vpop.f32.mrb[0].mxu0
    %103 = vdwg.mxu0
    %v104 = vld [vmem:[%s11 + $0xc] sm:$0x1]
    %v105 = vld [vmem:[%s11 + $0xd] sm:$0x1]
    %v106 = vld [vmem:[%s11 + $0xe] sm:$0x1]
    %v107 = vld [vmem:[%s11 + $0xf] sm:$0x1]
    %v108 = vld [vmem:[%s11 + $0x10] sm:$0x1]
    %v109 = vld [vmem:[%s11 + $0x11] sm:$0x1]
    %v110 = vld [vmem:[%s11 + $0x12] sm:$0x1]
    %vm111 = vcmask 261120
    %v112 = vsel %vm111, %v98, 0.0
    %113 = vadd.xlane.f32.xlu0 %v112
    %v114 = vpop.xlane.xlu0 %113
    %v115 = vsel %vm111, %v101, 0.0
    %116 = vadd.xlane.f32.xlu0 %v115
    %v117 = vpop.xlane.xlu0 %116
    %v118 = vrcp.pop 32.0
    %v119 = vmul.f32 %v114, %v118
    %v120 = vmul.f32 %v117, %v118
    %v121 = vmul.f32 %v98, %v98
    %v122 = vmul.f32 %v101, %v101
    %v123 = vsel %vm111, %v121, 0.0
    %124 = vadd.xlane.f32.xlu0 %v123
    %v125 = vpop.xlane.xlu0 %124
    %v126 = vsel %vm111, %v122, 0.0
    %127 = vadd.xlane.f32.xlu0 %v126
    %v128 = vpop.xlane.xlu0 %127
    %v129 = vmul.f32 %v125, %v118
    %v130 = vmul.f32 %v128, %v118
    %v131 = vmul.f32 %v119, %v119
    %v132 = vmul.f32 %v120, %v120
    %v133 = vsub.f32 %v129, %v131
    %v134 = vsub.f32 %v130, %v132
    %v135 = vadd.f32 %v133, 1e-05
    %v136 = vadd.f32 %v134, 1e-05
    %v137 = vrsqrt.pop %v135
    %v138 = vrsqrt.pop %v136
    %v139 = vsub.f32 %v98, %v119
    %v140 = vsub.f32 %v101, %v120
    %v141 = vlaneseq
    %v142 = vshrl.u32 %v141, 7
    %v143 = vsub.s32 0, %v142
    %v144 = vrot.slane %v104, %v143
    %v145 = vmul.f32 %v137, %v144
    %v146 = vmul.f32 %v138, %v144
    %v147 = vmul.f32 %v139, %v145
    %v148 = vmul.f32 %v140, %v146
    %v149 = vlaneseq
    %v150 = vshrl.u32 %v149, 7
    %v151 = vsub.s32 0, %v150
    %v152 = vrot.slane %v105, %v151
    %v153 = vadd.f32 %v147, %v152
    %v154 = vadd.f32 %v148, %v152
    %v155 = vpack.c.bf16 %v154, %v153
    %v156 = vld [vmem:[%s11] sm:$0x1]
    %v157 = vld [vmem:[%s11 + $0x4] sm:$0x1]
    %v158 = vld [vmem:[%s11 + $0x8] sm:$0x1]
    %v159 = vld [vmem:[%s3] sm:$0xf]
    %v160 = vld [vmem:[%s3 + $0x4] sm:$0xf]
    %v161 = vld [vmem:[%s3 + $0x8] sm:$0xf]
    %v162 = vld [vmem:[%s3 + $0xc] sm:$0xf]
    %v163 = vlaneseq
    %v164 = vshrl.u32 %v163, 7
    %v165 = vsub.s32 0, %v164
    %v166 = vrot.slane %v156, %v165
    %v171 = vunpack.c.l.b16 %v159
    %v172 = vunpack.c.l.b16 %v160
    %v173 = vunpack.c.l.b16 %v161
    %v174 = vunpack.c.l.b16 %v162
    %v175 = vpack.c.b16 %v172, %v171
    %v176 = vpack.c.b16 %v174, %v173
    %v180 = vsel %vm111, %v155, 0
    %182 = vmatprep.subr.bf16.mxu0 0
    %183 = vmatpush1.bf16.msra.mxu0 %v175
    %184 = vmatprep.subr.bf16.mxu0 0
    %185 = vmatpush1.bf16.msra.mxu0 %v176
    %186 = vmatprep.subr.bf16.mxu0 0
    %187 = vmatpush1.bf16.msra.mxu0 0
    %188 = vmatprep.subr.bf16.mxu0 0
    %189 = vmatpush1.bf16.msra.mxu0 0
    %190 = vmatprep.subr.bf16.mxu0 0
    %191 = vmatpush1.bf16.msra.mxu0 0
    %192 = vmatprep.subr.bf16.mxu0 0
    %193 = vmatpush1.bf16.msra.mxu0 0
    %194 = vmatprep.subr.bf16.mxu0 0
    %195 = vmatpush1.bf16.msra.mxu0 0
    %196 = vmatprep.subr.bf16.mxu0 0
    %197 = vmatpush1.bf16.msra.mxu0 0
    %198 = vmatprep.subr.bf16.mxu0 0
    %199 = vmatpush1.bf16.msra.mxu0 0
    %200 = vmatprep.subr.bf16.mxu0 0
    %201 = vmatpush1.bf16.msra.mxu0 0
    %202 = vmatprep.subr.bf16.mxu0 0
    %203 = vmatpush1.bf16.msra.mxu0 0
    %204 = vmatprep.subr.bf16.mxu0 0
    %205 = vmatpush1.bf16.msra.mxu0 0
    %206 = vmatprep.subr.bf16.mxu0 0
    %207 = vmatpush1.bf16.msra.mxu0 0
    %208 = vmatprep.subr.bf16.mxu0 0
    %209 = vmatpush1.bf16.msra.mxu0 0
    %210 = vmatprep.subr.bf16.mxu0 0
    %211 = vmatpush1.bf16.msra.mxu0 0
    %212 = vmatprep.subr.bf16.mxu0 0
    %213 = vmatpush1.bf16.msra.mxu0 0
    %214 = vmatprep.mubr.bf16.mxu0 0
    %215 = vmatmul.mubr.bf16.gmra.mrb[0].mxu0 %v180
    %v216 = vpop.f32.mrb[0].mxu0
    %v217 = vadd.f32 %v166, %v216
    %v218 = vpop.f32.mrb[0].mxu0
    %v219 = vpop.f32.mrb[0].mxu0
    %v220 = vadd.f32 %v166, %v219
    %v221 = vpop.f32.mrb[0].mxu0
    %222 = vdwg.mxu0
    %v223 = vld [vmem:[%s4] sm:$0xf]
    %v224 = vld [vmem:[%s4 + $0x4] sm:$0xf]
    %v225 = vld [vmem:[%s4 + $0x8] sm:$0xf]
    %v226 = vld [vmem:[%s4 + $0xc] sm:$0xf]
    %v227 = vlaneseq
    %v228 = vshrl.u32 %v227, 7
    %v229 = vsub.s32 0, %v228
    %v230 = vrot.slane %v157, %v229
    %v235 = vunpack.c.l.b16 %v223
    %v236 = vunpack.c.l.b16 %v224
    %v237 = vunpack.c.l.b16 %v225
    %v238 = vunpack.c.l.b16 %v226
    %v239 = vpack.c.b16 %v236, %v235
    %v240 = vpack.c.b16 %v238, %v237
    %243 = vmatprep.subr.bf16.mxu0 0
    %244 = vmatpush1.bf16.msra.mxu0 %v239
    %245 = vmatprep.subr.bf16.mxu0 0
    %246 = vmatpush1.bf16.msra.mxu0 %v240
    %247 = vmatprep.subr.bf16.mxu0 0
    %248 = vmatpush1.bf16.msra.mxu0 0
    %249 = vmatprep.subr.bf16.mxu0 0
    %250 = vmatpush1.bf16.msra.mxu0 0
    %251 = vmatprep.subr.bf16.mxu0 0
    %252 = vmatpush1.bf16.msra.mxu0 0
    %253 = vmatprep.subr.bf16.mxu0 0
    %254 = vmatpush1.bf16.msra.mxu0 0
    %255 = vmatprep.subr.bf16.mxu0 0
    %256 = vmatpush1.bf16.msra.mxu0 0
    %257 = vmatprep.subr.bf16.mxu0 0
    %258 = vmatpush1.bf16.msra.mxu0 0
    %259 = vmatprep.subr.bf16.mxu0 0
    %260 = vmatpush1.bf16.msra.mxu0 0
    %261 = vmatprep.subr.bf16.mxu0 0
    %262 = vmatpush1.bf16.msra.mxu0 0
    %263 = vmatprep.subr.bf16.mxu0 0
    %264 = vmatpush1.bf16.msra.mxu0 0
    %265 = vmatprep.subr.bf16.mxu0 0
    %266 = vmatpush1.bf16.msra.mxu0 0
    %267 = vmatprep.subr.bf16.mxu0 0
    %268 = vmatpush1.bf16.msra.mxu0 0
    %269 = vmatprep.subr.bf16.mxu0 0
    %270 = vmatpush1.bf16.msra.mxu0 0
    %271 = vmatprep.subr.bf16.mxu0 0
    %272 = vmatpush1.bf16.msra.mxu0 0
    %273 = vmatprep.subr.bf16.mxu0 0
    %274 = vmatpush1.bf16.msra.mxu0 0
    %275 = vmatprep.mubr.bf16.mxu0 0
    %276 = vmatmul.mubr.bf16.gmra.mrb[0].mxu0 %v180
    %v277 = vpop.f32.mrb[0].mxu0
    %v278 = vadd.f32 %v230, %v277
    %v279 = vpop.f32.mrb[0].mxu0
    %v280 = vpop.f32.mrb[0].mxu0
    %v281 = vadd.f32 %v230, %v280
    %v282 = vpop.f32.mrb[0].mxu0
    %283 = vdwg.mxu0
    %v284 = vld [vmem:[%s5] sm:$0xf]
    %v285 = vld [vmem:[%s5 + $0x4] sm:$0xf]
    %v286 = vld [vmem:[%s5 + $0x8] sm:$0xf]
    %v287 = vld [vmem:[%s5 + $0xc] sm:$0xf]
    %v288 = vlaneseq
    %v289 = vshrl.u32 %v288, 7
    %v290 = vsub.s32 0, %v289
    %v291 = vrot.slane %v158, %v290
    %v296 = vunpack.c.l.b16 %v284
    %v297 = vunpack.c.l.b16 %v285
    %v298 = vunpack.c.l.b16 %v286
    %v299 = vunpack.c.l.b16 %v287
    %v300 = vpack.c.b16 %v297, %v296
    %v301 = vpack.c.b16 %v299, %v298
    %304 = vmatprep.subr.bf16.mxu0 0
    %305 = vmatpush1.bf16.msra.mxu0 %v300
    %306 = vmatprep.subr.bf16.mxu0 0
    %307 = vmatpush1.bf16.msra.mxu0 %v301
    %308 = vmatprep.subr.bf16.mxu0 0
    %309 = vmatpush1.bf16.msra.mxu0 0
    %310 = vmatprep.subr.bf16.mxu0 0
    %311 = vmatpush1.bf16.msra.mxu0 0
    %312 = vmatprep.subr.bf16.mxu0 0
    %313 = vmatpush1.bf16.msra.mxu0 0
    %314 = vmatprep.subr.bf16.mxu0 0
    %315 = vmatpush1.bf16.msra.mxu0 0
    %316 = vmatprep.subr.bf16.mxu0 0
    %317 = vmatpush1.bf16.msra.mxu0 0
    %318 = vmatprep.subr.bf16.mxu0 0
    %319 = vmatpush1.bf16.msra.mxu0 0
    %320 = vmatprep.subr.bf16.mxu0 0
    %321 = vmatpush1.bf16.msra.mxu0 0
    %322 = vmatprep.subr.bf16.mxu0 0
    %323 = vmatpush1.bf16.msra.mxu0 0
    %324 = vmatprep.subr.bf16.mxu0 0
    %325 = vmatpush1.bf16.msra.mxu0 0
    %326 = vmatprep.subr.bf16.mxu0 0
    %327 = vmatpush1.bf16.msra.mxu0 0
    %328 = vmatprep.subr.bf16.mxu0 0
    %329 = vmatpush1.bf16.msra.mxu0 0
    %330 = vmatprep.subr.bf16.mxu0 0
    %331 = vmatpush1.bf16.msra.mxu0 0
    %332 = vmatprep.subr.bf16.mxu0 0
    %333 = vmatpush1.bf16.msra.mxu0 0
    %334 = vmatprep.subr.bf16.mxu0 0
    %335 = vmatpush1.bf16.msra.mxu0 0
    %336 = vmatprep.mubr.bf16.mxu0 0
    %337 = vmatmul.mubr.bf16.gmra.mrb[0].mxu0 %v180
    %v338 = vpop.f32.mrb[0].mxu0
    %v339 = vadd.f32 %v291, %v338
    %v340 = vpop.f32.mrb[0].mxu0
    %v341 = vpop.f32.mrb[0].mxu0
    %v342 = vadd.f32 %v291, %v341
    %v343 = vpop.f32.mrb[0].mxu0
    %344 = vdwg.mxu0
    %v345 = vpack.c.bf16 %v217, %v217
    %v346 = vpack.c.bf16 %v220, %v220
    %v347 = vpack.c.bf16 %v278, %v278
    %v348 = vpack.c.bf16 %v281, %v281
    %v349 = vpack.c.bf16 %v339, %v339
    %v350 = vpack.c.bf16 %v342, %v342
    %vm351 = vcmask 64512
    %v353 = vsel %vm351, %v345, 0
    %v356 = vsel %vm351, %v347, 0
    %358 = vmatprep.subr.bf16.mxu0 0
    %359 = vmatpush1.bf16.xpose.msra.mxu0 %v356
    %360 = vmatprep.subr.bf16.mxu0 0
    %361 = vmatpush1.bf16.xpose.msra.mxu0 0
    %362 = vmatprep.subr.bf16.mxu0 0
    %363 = vmatpush1.bf16.xpose.msra.mxu0 0
    %364 = vmatprep.subr.bf16.mxu0 0
    %365 = vmatpush1.bf16.xpose.msra.mxu0 0
    %366 = vmatprep.subr.bf16.mxu0 0
    %367 = vmatpush1.bf16.xpose.msra.mxu0 0
    %368 = vmatprep.subr.bf16.mxu0 0
    %369 = vmatpush1.bf16.xpose.msra.mxu0 0
    %370 = vmatprep.subr.bf16.mxu0 0
    %371 = vmatpush1.bf16.xpose.msra.mxu0 0
    %372 = vmatprep.subr.bf16.mxu0 0
    %373 = vmatpush1.bf16.xpose.msra.mxu0 0
    %374 = vmatprep.subr.bf16.mxu0 0
    %375 = vmatpush1.bf16.xpose.msra.mxu0 0
    %376 = vmatprep.subr.bf16.mxu0 0
    %377 = vmatpush1.bf16.xpose.msra.mxu0 0
    %378 = vmatprep.subr.bf16.mxu0 0
    %379 = vmatpush1.bf16.xpose.msra.mxu0 0
    %380 = vmatprep.subr.bf16.mxu0 0
    %381 = vmatpush1.bf16.xpose.msra.mxu0 0
    %382 = vmatprep.subr.bf16.mxu0 0
    %383 = vmatpush1.bf16.xpose.msra.mxu0 0
    %384 = vmatprep.subr.bf16.mxu0 0
    %385 = vmatpush1.bf16.xpose.msra.mxu0 0
    %386 = vmatprep.subr.bf16.mxu0 0
    %387 = vmatpush1.bf16.xpose.msra.mxu0 0
    %388 = vmatprep.subr.bf16.mxu0 0
    %389 = vmatpush1.bf16.xpose.msra.mxu0 0
    %390 = vmatprep.mubr.bf16.mxu0 0
    %391 = vmatmul.mubr.bf16.gmra.mrb[0].mxu0 %v353
    %v392 = vpop.f32.mrb[0].mxu0
    %v393 = vadd.f32 0.0, %v392
    %v394 = vpop.f32.mrb[0].mxu0
    %v395 = vpop.f32.mrb[0].mxu0
    %v396 = vpop.f32.mrb[0].mxu0
    %397 = vdwg.mxu0
    %v399 = vsel %vm351, %v346, 0
    %v402 = vsel %vm351, %v348, 0
    %404 = vmatprep.subr.bf16.mxu0 0
    %405 = vmatpush1.bf16.xpose.msra.mxu0 %v402
    %406 = vmatprep.subr.bf16.mxu0 0
    %407 = vmatpush1.bf16.xpose.msra.mxu0 0
    %408 = vmatprep.subr.bf16.mxu0 0
    %409 = vmatpush1.bf16.xpose.msra.mxu0 0
    %410 = vmatprep.subr.bf16.mxu0 0
    %411 = vmatpush1.bf16.xpose.msra.mxu0 0
    %412 = vmatprep.subr.bf16.mxu0 0
    %413 = vmatpush1.bf16.xpose.msra.mxu0 0
    %414 = vmatprep.subr.bf16.mxu0 0
    %415 = vmatpush1.bf16.xpose.msra.mxu0 0
    %416 = vmatprep.subr.bf16.mxu0 0
    %417 = vmatpush1.bf16.xpose.msra.mxu0 0
    %418 = vmatprep.subr.bf16.mxu0 0
    %419 = vmatpush1.bf16.xpose.msra.mxu0 0
    %420 = vmatprep.subr.bf16.mxu0 0
    %421 = vmatpush1.bf16.xpose.msra.mxu0 0
    %422 = vmatprep.subr.bf16.mxu0 0
    %423 = vmatpush1.bf16.xpose.msra.mxu0 0
    %424 = vmatprep.subr.bf16.mxu0 0
    %425 = vmatpush1.bf16.xpose.msra.mxu0 0
    %426 = vmatprep.subr.bf16.mxu0 0
    %427 = vmatpush1.bf16.xpose.msra.mxu0 0
    %428 = vmatprep.subr.bf16.mxu0 0
    %429 = vmatpush1.bf16.xpose.msra.mxu0 0
    %430 = vmatprep.subr.bf16.mxu0 0
    %431 = vmatpush1.bf16.xpose.msra.mxu0 0
    %432 = vmatprep.subr.bf16.mxu0 0
    %433 = vmatpush1.bf16.xpose.msra.mxu0 0
    %434 = vmatprep.subr.bf16.mxu0 0
    %435 = vmatpush1.bf16.xpose.msra.mxu0 0
    %436 = vmatprep.mubr.bf16.mxu0 0
    %437 = vmatmul.mubr.bf16.gmra.mrb[0].mxu0 %v399
    %v438 = vpop.f32.mrb[0].mxu0
    %v439 = vadd.f32 0.0, %v438
    %v440 = vpop.f32.mrb[0].mxu0
    %v441 = vpop.f32.mrb[0].mxu0
    %v442 = vpop.f32.mrb[0].mxu0
    %443 = vdwg.mxu0
    %v444 = vld [vmem:[%s11 + $0x1] sm:$0x1]
    %v445 = vld [vmem:[%s11 + $0x5] sm:$0x1]
    %v446 = vld [vmem:[%s11 + $0x9] sm:$0x1]
    %s447 = scalar_lea.vmem %s3, 16
    %v448 = vld [vmem:[%s447] sm:$0xf]
    %v449 = vld [vmem:[%s447 + $0x4] sm:$0xf]
    %v450 = vld [vmem:[%s447 + $0x8] sm:$0xf]
    %v451 = vld [vmem:[%s447 + $0xc] sm:$0xf]
    %v452 = vlaneseq
    %v453 = vshrl.u32 %v452, 7
    %v454 = vsub.s32 0, %v453
    %v455 = vrot.slane %v444, %v454
    %v460 = vunpack.c.l.b16 %v448
    %v461 = vunpack.c.l.b16 %v449
    %v462 = vunpack.c.l.b16 %v450
    %v463 = vunpack.c.l.b16 %v451
    %v464 = vpack.c.b16 %v461, %v460
    %v465 = vpack.c.b16 %v463, %v462
    %468 = vmatprep.subr.bf16.mxu0 0
    %469 = vmatpush1.bf16.msra.mxu0 %v464
    %470 = vmatprep.subr.bf16.mxu0 0
    %471 = vmatpush1.bf16.msra.mxu0 %v465
    %472 = vmatprep.subr.bf16.mxu0 0
    %473 = vmatpush1.bf16.msra.mxu0 0
    %474 = vmatprep.subr.bf16.mxu0 0
    %475 = vmatpush1.bf16.msra.mxu0 0
    %476 = vmatprep.subr.bf16.mxu0 0
    %477 = vmatpush1.bf16.msra.mxu0 0
    %478 = vmatprep.subr.bf16.mxu0 0
    %479 = vmatpush1.bf16.msra.mxu0 0
    %480 = vmatprep.subr.bf16.mxu0 0
    %481 = vmatpush1.bf16.msra.mxu0 0
    %482 = vmatprep.subr.bf16.mxu0 0
    %483 = vmatpush1.bf16.msra.mxu0 0
    %484 = vmatprep.subr.bf16.mxu0 0
    %485 = vmatpush1.bf16.msra.mxu0 0
    %486 = vmatprep.subr.bf16.mxu0 0
    %487 = vmatpush1.bf16.msra.mxu0 0
    %488 = vmatprep.subr.bf16.mxu0 0
    %489 = vmatpush1.bf16.msra.mxu0 0
    %490 = vmatprep.subr.bf16.mxu0 0
    %491 = vmatpush1.bf16.msra.mxu0 0
    %492 = vmatprep.subr.bf16.mxu0 0
    %493 = vmatpush1.bf16.msra.mxu0 0
    %494 = vmatprep.subr.bf16.mxu0 0
    %495 = vmatpush1.bf16.msra.mxu0 0
    %496 = vmatprep.subr.bf16.mxu0 0
    %497 = vmatpush1.bf16.msra.mxu0 0
    %498 = vmatprep.subr.bf16.mxu0 0
    %499 = vmatpush1.bf16.msra.mxu0 0
    %500 = vmatprep.mubr.bf16.mxu0 0
    %501 = vmatmul.mubr.bf16.gmra.mrb[0].mxu0 %v180
    %v502 = vpop.f32.mrb[0].mxu0
    %v503 = vadd.f32 %v455, %v502
    %v504 = vpop.f32.mrb[0].mxu0
    %v505 = vpop.f32.mrb[0].mxu0
    %v506 = vadd.f32 %v455, %v505
    %v507 = vpop.f32.mrb[0].mxu0
    %508 = vdwg.mxu0
    %s509 = scalar_lea.vmem %s4, 16
    %v510 = vld [vmem:[%s509] sm:$0xf]
    %v511 = vld [vmem:[%s509 + $0x4] sm:$0xf]
    %v512 = vld [vmem:[%s509 + $0x8] sm:$0xf]
    %v513 = vld [vmem:[%s509 + $0xc] sm:$0xf]
    %v514 = vlaneseq
    %v515 = vshrl.u32 %v514, 7
    %v516 = vsub.s32 0, %v515
    %v517 = vrot.slane %v445, %v516
    %v522 = vunpack.c.l.b16 %v510
    %v523 = vunpack.c.l.b16 %v511
    %v524 = vunpack.c.l.b16 %v512
    %v525 = vunpack.c.l.b16 %v513
    %v526 = vpack.c.b16 %v523, %v522
    %v527 = vpack.c.b16 %v525, %v524
    %530 = vmatprep.subr.bf16.mxu0 0
    %531 = vmatpush1.bf16.msra.mxu0 %v526
    %532 = vmatprep.subr.bf16.mxu0 0
    %533 = vmatpush1.bf16.msra.mxu0 %v527
    %534 = vmatprep.subr.bf16.mxu0 0
    %535 = vmatpush1.bf16.msra.mxu0 0
    %536 = vmatprep.subr.bf16.mxu0 0
    %537 = vmatpush1.bf16.msra.mxu0 0
    %538 = vmatprep.subr.bf16.mxu0 0
    %539 = vmatpush1.bf16.msra.mxu0 0
    %540 = vmatprep.subr.bf16.mxu0 0
    %541 = vmatpush1.bf16.msra.mxu0 0
    %542 = vmatprep.subr.bf16.mxu0 0
    %543 = vmatpush1.bf16.msra.mxu0 0
    %544 = vmatprep.subr.bf16.mxu0 0
    %545 = vmatpush1.bf16.msra.mxu0 0
    %546 = vmatprep.subr.bf16.mxu0 0
    %547 = vmatpush1.bf16.msra.mxu0 0
    %548 = vmatprep.subr.bf16.mxu0 0
    %549 = vmatpush1.bf16.msra.mxu0 0
    %550 = vmatprep.subr.bf16.mxu0 0
    %551 = vmatpush1.bf16.msra.mxu0 0
    %552 = vmatprep.subr.bf16.mxu0 0
    %553 = vmatpush1.bf16.msra.mxu0 0
    %554 = vmatprep.subr.bf16.mxu0 0
    %555 = vmatpush1.bf16.msra.mxu0 0
    %556 = vmatprep.subr.bf16.mxu0 0
    %557 = vmatpush1.bf16.msra.mxu0 0
    %558 = vmatprep.subr.bf16.mxu0 0
    %559 = vmatpush1.bf16.msra.mxu0 0
    %560 = vmatprep.subr.bf16.mxu0 0
    %561 = vmatpush1.bf16.msra.mxu0 0
    %562 = vmatprep.mubr.bf16.mxu0 0
    %563 = vmatmul.mubr.bf16.gmra.mrb[0].mxu0 %v180
    %v564 = vpop.f32.mrb[0].mxu0
    %v565 = vadd.f32 %v517, %v564
    %v566 = vpop.f32.mrb[0].mxu0
    %v567 = vpop.f32.mrb[0].mxu0
    %v568 = vadd.f32 %v517, %v567
    %v569 = vpop.f32.mrb[0].mxu0
    %570 = vdwg.mxu0
    %s571 = scalar_lea.vmem %s5, 16
    %v572 = vld [vmem:[%s571] sm:$0xf]
    %v573 = vld [vmem:[%s571 + $0x4] sm:$0xf]
    %v574 = vld [vmem:[%s571 + $0x8] sm:$0xf]
    %v575 = vld [vmem:[%s571 + $0xc] sm:$0xf]
    %v576 = vlaneseq
    %v577 = vshrl.u32 %v576, 7
    %v578 = vsub.s32 0, %v577
    %v579 = vrot.slane %v446, %v578
    %v584 = vunpack.c.l.b16 %v572
    %v585 = vunpack.c.l.b16 %v573
    %v586 = vunpack.c.l.b16 %v574
    %v587 = vunpack.c.l.b16 %v575
    %v588 = vpack.c.b16 %v585, %v584
    %v589 = vpack.c.b16 %v587, %v586
    %592 = vmatprep.subr.bf16.mxu0 0
    %593 = vmatpush1.bf16.msra.mxu0 %v588
    %594 = vmatprep.subr.bf16.mxu0 0
    %595 = vmatpush1.bf16.msra.mxu0 %v589
    %596 = vmatprep.subr.bf16.mxu0 0
    %597 = vmatpush1.bf16.msra.mxu0 0
    %598 = vmatprep.subr.bf16.mxu0 0
    %599 = vmatpush1.bf16.msra.mxu0 0
    %600 = vmatprep.subr.bf16.mxu0 0
    %601 = vmatpush1.bf16.msra.mxu0 0
    %602 = vmatprep.subr.bf16.mxu0 0
    %603 = vmatpush1.bf16.msra.mxu0 0
    %604 = vmatprep.subr.bf16.mxu0 0
    %605 = vmatpush1.bf16.msra.mxu0 0
    %606 = vmatprep.subr.bf16.mxu0 0
    %607 = vmatpush1.bf16.msra.mxu0 0
    %608 = vmatprep.subr.bf16.mxu0 0
    %609 = vmatpush1.bf16.msra.mxu0 0
    %610 = vmatprep.subr.bf16.mxu0 0
    %611 = vmatpush1.bf16.msra.mxu0 0
    %612 = vmatprep.subr.bf16.mxu0 0
    %613 = vmatpush1.bf16.msra.mxu0 0
    %614 = vmatprep.subr.bf16.mxu0 0
    %615 = vmatpush1.bf16.msra.mxu0 0
    %616 = vmatprep.subr.bf16.mxu0 0
    %617 = vmatpush1.bf16.msra.mxu0 0
    %618 = vmatprep.subr.bf16.mxu0 0
    %619 = vmatpush1.bf16.msra.mxu0 0
    %620 = vmatprep.subr.bf16.mxu0 0
    %621 = vmatpush1.bf16.msra.mxu0 0
    %622 = vmatprep.subr.bf16.mxu0 0
    %623 = vmatpush1.bf16.msra.mxu0 0
    %624 = vmatprep.mubr.bf16.mxu0 0
    %625 = vmatmul.mubr.bf16.gmra.mrb[0].mxu0 %v180
    %v626 = vpop.f32.mrb[0].mxu0
    %v627 = vadd.f32 %v579, %v626
    %v628 = vpop.f32.mrb[0].mxu0
    %v629 = vpop.f32.mrb[0].mxu0
    %v630 = vadd.f32 %v579, %v629
    %v631 = vpop.f32.mrb[0].mxu0
    %632 = vdwg.mxu0
    %v633 = vpack.c.bf16 %v503, %v503
    %v634 = vpack.c.bf16 %v506, %v506
    %v635 = vpack.c.bf16 %v565, %v565
    %v636 = vpack.c.bf16 %v568, %v568
    %v637 = vpack.c.bf16 %v627, %v627
    %v638 = vpack.c.bf16 %v630, %v630
    %v640 = vsel %vm351, %v633, 0
    %v643 = vsel %vm351, %v635, 0
    %645 = vmatprep.subr.bf16.mxu0 0
    %646 = vmatpush1.bf16.xpose.msra.mxu0 %v643
    %647 = vmatprep.subr.bf16.mxu0 0
    %648 = vmatpush1.bf16.xpose.msra.mxu0 0
    %649 = vmatprep.subr.bf16.mxu0 0
    %650 = vmatpush1.bf16.xpose.msra.mxu0 0
    %651 = vmatprep.subr.bf16.mxu0 0
    %652 = vmatpush1.bf16.xpose.msra.mxu0 0
    %653 = vmatprep.subr.bf16.mxu0 0
    %654 = vmatpush1.bf16.xpose.msra.mxu0 0
    %655 = vmatprep.subr.bf16.mxu0 0
    %656 = vmatpush1.bf16.xpose.msra.mxu0 0
    %657 = vmatprep.subr.bf16.mxu0 0
    %658 = vmatpush1.bf16.xpose.msra.mxu0 0
    %659 = vmatprep.subr.bf16.mxu0 0
    %660 = vmatpush1.bf16.xpose.msra.mxu0 0
    %661 = vmatprep.subr.bf16.mxu0 0
    %662 = vmatpush1.bf16.xpose.msra.mxu0 0
    %663 = vmatprep.subr.bf16.mxu0 0
    %664 = vmatpush1.bf16.xpose.msra.mxu0 0
    %665 = vmatprep.subr.bf16.mxu0 0
    %666 = vmatpush1.bf16.xpose.msra.mxu0 0
    %667 = vmatprep.subr.bf16.mxu0 0
    %668 = vmatpush1.bf16.xpose.msra.mxu0 0
    %669 = vmatprep.subr.bf16.mxu0 0
    %670 = vmatpush1.bf16.xpose.msra.mxu0 0
    %671 = vmatprep.subr.bf16.mxu0 0
    %672 = vmatpush1.bf16.xpose.msra.mxu0 0
    %673 = vmatprep.subr.bf16.mxu0 0
    %674 = vmatpush1.bf16.xpose.msra.mxu0 0
    %675 = vmatprep.subr.bf16.mxu0 0
    %676 = vmatpush1.bf16.xpose.msra.mxu0 0
    %677 = vmatprep.mubr.bf16.mxu0 0
    %678 = vmatmul.mubr.bf16.gmra.mrb[0].mxu0 %v640
    %v679 = vpop.f32.mrb[0].mxu0
    %v680 = vadd.f32 0.0, %v679
    %v681 = vpop.f32.mrb[0].mxu0
    %v682 = vpop.f32.mrb[0].mxu0
    %v683 = vpop.f32.mrb[0].mxu0
    %684 = vdwg.mxu0
    %v686 = vsel %vm351, %v634, 0
    %v689 = vsel %vm351, %v636, 0
    %691 = vmatprep.subr.bf16.mxu0 0
    %692 = vmatpush1.bf16.xpose.msra.mxu0 %v689
    %693 = vmatprep.subr.bf16.mxu0 0
    %694 = vmatpush1.bf16.xpose.msra.mxu0 0
    %695 = vmatprep.subr.bf16.mxu0 0
    %696 = vmatpush1.bf16.xpose.msra.mxu0 0
    %697 = vmatprep.subr.bf16.mxu0 0
    %698 = vmatpush1.bf16.xpose.msra.mxu0 0
    %699 = vmatprep.subr.bf16.mxu0 0
    %700 = vmatpush1.bf16.xpose.msra.mxu0 0
    %701 = vmatprep.subr.bf16.mxu0 0
    %702 = vmatpush1.bf16.xpose.msra.mxu0 0
    %703 = vmatprep.subr.bf16.mxu0 0
    %704 = vmatpush1.bf16.xpose.msra.mxu0 0
    %705 = vmatprep.subr.bf16.mxu0 0
    %706 = vmatpush1.bf16.xpose.msra.mxu0 0
    %707 = vmatprep.subr.bf16.mxu0 0
    %708 = vmatpush1.bf16.xpose.msra.mxu0 0
    %709 = vmatprep.subr.bf16.mxu0 0
    %710 = vmatpush1.bf16.xpose.msra.mxu0 0
    %711 = vmatprep.subr.bf16.mxu0 0
    %712 = vmatpush1.bf16.xpose.msra.mxu0 0
    %713 = vmatprep.subr.bf16.mxu0 0
    %714 = vmatpush1.bf16.xpose.msra.mxu0 0
    %715 = vmatprep.subr.bf16.mxu0 0
    %716 = vmatpush1.bf16.xpose.msra.mxu0 0
    %717 = vmatprep.subr.bf16.mxu0 0
    %718 = vmatpush1.bf16.xpose.msra.mxu0 0
    %719 = vmatprep.subr.bf16.mxu0 0
    %720 = vmatpush1.bf16.xpose.msra.mxu0 0
    %721 = vmatprep.subr.bf16.mxu0 0
    %722 = vmatpush1.bf16.xpose.msra.mxu0 0
    %723 = vmatprep.mubr.bf16.mxu0 0
    %724 = vmatmul.mubr.bf16.gmra.mrb[0].mxu0 %v686
    %v725 = vpop.f32.mrb[0].mxu0
    %v726 = vadd.f32 0.0, %v725
    %v727 = vpop.f32.mrb[0].mxu0
    %v728 = vpop.f32.mrb[0].mxu0
    %v729 = vpop.f32.mrb[0].mxu0
    %730 = vdwg.mxu0
    %v731 = vld [vmem:[%s11 + $0x2] sm:$0x1]
    %v732 = vld [vmem:[%s11 + $0x6] sm:$0x1]
    %v733 = vld [vmem:[%s11 + $0xa] sm:$0x1]
    %s734 = scalar_lea.vmem %s3, 32
    %v735 = vld [vmem:[%s734] sm:$0xf]
    %v736 = vld [vmem:[%s734 + $0x4] sm:$0xf]
    %v737 = vld [vmem:[%s734 + $0x8] sm:$0xf]
    %v738 = vld [vmem:[%s734 + $0xc] sm:$0xf]
    %v739 = vlaneseq
    %v740 = vshrl.u32 %v739, 7
    %v741 = vsub.s32 0, %v740
    %v742 = vrot.slane %v731, %v741
    %v747 = vunpack.c.l.b16 %v735
    %v748 = vunpack.c.l.b16 %v736
    %v749 = vunpack.c.l.b16 %v737
    %v750 = vunpack.c.l.b16 %v738
    %v751 = vpack.c.b16 %v748, %v747
    %v752 = vpack.c.b16 %v750, %v749
    %755 = vmatprep.subr.bf16.mxu0 0
    %756 = vmatpush1.bf16.msra.mxu0 %v751
    %757 = vmatprep.subr.bf16.mxu0 0
    %758 = vmatpush1.bf16.msra.mxu0 %v752
    %759 = vmatprep.subr.bf16.mxu0 0
    %760 = vmatpush1.bf16.msra.mxu0 0
    %761 = vmatprep.subr.bf16.mxu0 0
    %762 = vmatpush1.bf16.msra.mxu0 0
    %763 = vmatprep.subr.bf16.mxu0 0
    %764 = vmatpush1.bf16.msra.mxu0 0
    %765 = vmatprep.subr.bf16.mxu0 0
    %766 = vmatpush1.bf16.msra.mxu0 0
    %767 = vmatprep.subr.bf16.mxu0 0
    %768 = vmatpush1.bf16.msra.mxu0 0
    %769 = vmatprep.subr.bf16.mxu0 0
    %770 = vmatpush1.bf16.msra.mxu0 0
    %771 = vmatprep.subr.bf16.mxu0 0
    %772 = vmatpush1.bf16.msra.mxu0 0
    %773 = vmatprep.subr.bf16.mxu0 0
    %774 = vmatpush1.bf16.msra.mxu0 0
    %775 = vmatprep.subr.bf16.mxu0 0
    %776 = vmatpush1.bf16.msra.mxu0 0
    %777 = vmatprep.subr.bf16.mxu0 0
    %778 = vmatpush1.bf16.msra.mxu0 0
    %779 = vmatprep.subr.bf16.mxu0 0
    %780 = vmatpush1.bf16.msra.mxu0 0
    %781 = vmatprep.subr.bf16.mxu0 0
    %782 = vmatpush1.bf16.msra.mxu0 0
    %783 = vmatprep.subr.bf16.mxu0 0
    %784 = vmatpush1.bf16.msra.mxu0 0
    %785 = vmatprep.subr.bf16.mxu0 0
    %786 = vmatpush1.bf16.msra.mxu0 0
    %787 = vmatprep.mubr.bf16.mxu0 0
    %788 = vmatmul.mubr.bf16.gmra.mrb[0].mxu0 %v180
    %v789 = vpop.f32.mrb[0].mxu0
    %v790 = vadd.f32 %v742, %v789
    %v791 = vpop.f32.mrb[0].mxu0
    %v792 = vpop.f32.mrb[0].mxu0
    %v793 = vadd.f32 %v742, %v792
    %v794 = vpop.f32.mrb[0].mxu0
    %795 = vdwg.mxu0
    %s796 = scalar_lea.vmem %s4, 32
    %v797 = vld [vmem:[%s796] sm:$0xf]
    %v798 = vld [vmem:[%s796 + $0x4] sm:$0xf]
    %v799 = vld [vmem:[%s796 + $0x8] sm:$0xf]
    %v800 = vld [vmem:[%s796 + $0xc] sm:$0xf]
    %v801 = vlaneseq
    %v802 = vshrl.u32 %v801, 7
    %v803 = vsub.s32 0, %v802
    %v804 = vrot.slane %v732, %v803
    %v809 = vunpack.c.l.b16 %v797
    %v810 = vunpack.c.l.b16 %v798
    %v811 = vunpack.c.l.b16 %v799
    %v812 = vunpack.c.l.b16 %v800
    %v813 = vpack.c.b16 %v810, %v809
    %v814 = vpack.c.b16 %v812, %v811
    %817 = vmatprep.subr.bf16.mxu0 0
    %818 = vmatpush1.bf16.msra.mxu0 %v813
    %819 = vmatprep.subr.bf16.mxu0 0
    %820 = vmatpush1.bf16.msra.mxu0 %v814
    %821 = vmatprep.subr.bf16.mxu0 0
    %822 = vmatpush1.bf16.msra.mxu0 0
    %823 = vmatprep.subr.bf16.mxu0 0
    %824 = vmatpush1.bf16.msra.mxu0 0
    %825 = vmatprep.subr.bf16.mxu0 0
    %826 = vmatpush1.bf16.msra.mxu0 0
    %827 = vmatprep.subr.bf16.mxu0 0
    %828 = vmatpush1.bf16.msra.mxu0 0
    %829 = vmatprep.subr.bf16.mxu0 0
    %830 = vmatpush1.bf16.msra.mxu0 0
    %831 = vmatprep.subr.bf16.mxu0 0
    %832 = vmatpush1.bf16.msra.mxu0 0
    %833 = vmatprep.subr.bf16.mxu0 0
    %834 = vmatpush1.bf16.msra.mxu0 0
    %835 = vmatprep.subr.bf16.mxu0 0
    %836 = vmatpush1.bf16.msra.mxu0 0
    %837 = vmatprep.subr.bf16.mxu0 0
    %838 = vmatpush1.bf16.msra.mxu0 0
    %839 = vmatprep.subr.bf16.mxu0 0
    %840 = vmatpush1.bf16.msra.mxu0 0
    %841 = vmatprep.subr.bf16.mxu0 0
    %842 = vmatpush1.bf16.msra.mxu0 0
    %843 = vmatprep.subr.bf16.mxu0 0
    %844 = vmatpush1.bf16.msra.mxu0 0
    %845 = vmatprep.subr.bf16.mxu0 0
    %846 = vmatpush1.bf16.msra.mxu0 0
    %847 = vmatprep.subr.bf16.mxu0 0
    %848 = vmatpush1.bf16.msra.mxu0 0
    %849 = vmatprep.mubr.bf16.mxu0 0
    %850 = vmatmul.mubr.bf16.gmra.mrb[0].mxu0 %v180
    %v851 = vpop.f32.mrb[0].mxu0
    %v852 = vadd.f32 %v804, %v851
    %v853 = vpop.f32.mrb[0].mxu0
    %v854 = vpop.f32.mrb[0].mxu0
    %v855 = vadd.f32 %v804, %v854
    %v856 = vpop.f32.mrb[0].mxu0
    %857 = vdwg.mxu0
    %s858 = scalar_lea.vmem %s5, 32
    %v859 = vld [vmem:[%s858] sm:$0xf]
    %v860 = vld [vmem:[%s858 + $0x4] sm:$0xf]
    %v861 = vld [vmem:[%s858 + $0x8] sm:$0xf]
    %v862 = vld [vmem:[%s858 + $0xc] sm:$0xf]
    %v863 = vlaneseq
    %v864 = vshrl.u32 %v863, 7
    %v865 = vsub.s32 0, %v864
    %v866 = vrot.slane %v733, %v865
    %v871 = vunpack.c.l.b16 %v859
    %v872 = vunpack.c.l.b16 %v860
    %v873 = vunpack.c.l.b16 %v861
    %v874 = vunpack.c.l.b16 %v862
    %v875 = vpack.c.b16 %v872, %v871
    %v876 = vpack.c.b16 %v874, %v873
    %879 = vmatprep.subr.bf16.mxu0 0
    %880 = vmatpush1.bf16.msra.mxu0 %v875
    %881 = vmatprep.subr.bf16.mxu0 0
    %882 = vmatpush1.bf16.msra.mxu0 %v876
    %883 = vmatprep.subr.bf16.mxu0 0
    %884 = vmatpush1.bf16.msra.mxu0 0
    %885 = vmatprep.subr.bf16.mxu0 0
    %886 = vmatpush1.bf16.msra.mxu0 0
    %887 = vmatprep.subr.bf16.mxu0 0
    %888 = vmatpush1.bf16.msra.mxu0 0
    %889 = vmatprep.subr.bf16.mxu0 0
    %890 = vmatpush1.bf16.msra.mxu0 0
    %891 = vmatprep.subr.bf16.mxu0 0
    %892 = vmatpush1.bf16.msra.mxu0 0
    %893 = vmatprep.subr.bf16.mxu0 0
    %894 = vmatpush1.bf16.msra.mxu0 0
    %895 = vmatprep.subr.bf16.mxu0 0
    %896 = vmatpush1.bf16.msra.mxu0 0
    %897 = vmatprep.subr.bf16.mxu0 0
    %898 = vmatpush1.bf16.msra.mxu0 0
    %899 = vmatprep.subr.bf16.mxu0 0
    %900 = vmatpush1.bf16.msra.mxu0 0
    %901 = vmatprep.subr.bf16.mxu0 0
    %902 = vmatpush1.bf16.msra.mxu0 0
    %903 = vmatprep.subr.bf16.mxu0 0
    %904 = vmatpush1.bf16.msra.mxu0 0
    %905 = vmatprep.subr.bf16.mxu0 0
    %906 = vmatpush1.bf16.msra.mxu0 0
    %907 = vmatprep.subr.bf16.mxu0 0
    %908 = vmatpush1.bf16.msra.mxu0 0
    %909 = vmatprep.subr.bf16.mxu0 0
    %910 = vmatpush1.bf16.msra.mxu0 0
    %911 = vmatprep.mubr.bf16.mxu0 0
    %912 = vmatmul.mubr.bf16.gmra.mrb[0].mxu0 %v180
    %v913 = vpop.f32.mrb[0].mxu0
    %v914 = vadd.f32 %v866, %v913
    %v915 = vpop.f32.mrb[0].mxu0
    %v916 = vpop.f32.mrb[0].mxu0
    %v917 = vadd.f32 %v866, %v916
    %v918 = vpop.f32.mrb[0].mxu0
    %919 = vdwg.mxu0
    %v920 = vpack.c.bf16 %v790, %v790
    %v921 = vpack.c.bf16 %v793, %v793
    %v922 = vpack.c.bf16 %v852, %v852
    %v923 = vpack.c.bf16 %v855, %v855
    %v924 = vpack.c.bf16 %v914, %v914
    %v925 = vpack.c.bf16 %v917, %v917
    %v927 = vsel %vm351, %v920, 0
    %v930 = vsel %vm351, %v922, 0
    %932 = vmatprep.subr.bf16.mxu0 0
    %933 = vmatpush1.bf16.xpose.msra.mxu0 %v930
    %934 = vmatprep.subr.bf16.mxu0 0
    %935 = vmatpush1.bf16.xpose.msra.mxu0 0
    %936 = vmatprep.subr.bf16.mxu0 0
    %937 = vmatpush1.bf16.xpose.msra.mxu0 0
    %938 = vmatprep.subr.bf16.mxu0 0
    %939 = vmatpush1.bf16.xpose.msra.mxu0 0
    %940 = vmatprep.subr.bf16.mxu0 0
    %941 = vmatpush1.bf16.xpose.msra.mxu0 0
    %942 = vmatprep.subr.bf16.mxu0 0
    %943 = vmatpush1.bf16.xpose.msra.mxu0 0
    %944 = vmatprep.subr.bf16.mxu0 0
    %945 = vmatpush1.bf16.xpose.msra.mxu0 0
    %946 = vmatprep.subr.bf16.mxu0 0
    %947 = vmatpush1.bf16.xpose.msra.mxu0 0
    %948 = vmatprep.subr.bf16.mxu0 0
    %949 = vmatpush1.bf16.xpose.msra.mxu0 0
    %950 = vmatprep.subr.bf16.mxu0 0
    %951 = vmatpush1.bf16.xpose.msra.mxu0 0
    %952 = vmatprep.subr.bf16.mxu0 0
    %953 = vmatpush1.bf16.xpose.msra.mxu0 0
    %954 = vmatprep.subr.bf16.mxu0 0
    %955 = vmatpush1.bf16.xpose.msra.mxu0 0
    %956 = vmatprep.subr.bf16.mxu0 0
    %957 = vmatpush1.bf16.xpose.msra.mxu0 0
    %958 = vmatprep.subr.bf16.mxu0 0
    %959 = vmatpush1.bf16.xpose.msra.mxu0 0
    %960 = vmatprep.subr.bf16.mxu0 0
    %961 = vmatpush1.bf16.xpose.msra.mxu0 0
    %962 = vmatprep.subr.bf16.mxu0 0
    %963 = vmatpush1.bf16.xpose.msra.mxu0 0
    %964 = vmatprep.mubr.bf16.mxu0 0
    %965 = vmatmul.mubr.bf16.gmra.mrb[0].mxu0 %v927
    %v966 = vpop.f32.mrb[0].mxu0
    %v967 = vadd.f32 0.0, %v966
    %v968 = vpop.f32.mrb[0].mxu0
    %v969 = vpop.f32.mrb[0].mxu0
    %v970 = vpop.f32.mrb[0].mxu0
    %971 = vdwg.mxu0
    %v973 = vsel %vm351, %v921, 0
    %v976 = vsel %vm351, %v923, 0
    %978 = vmatprep.subr.bf16.mxu0 0
    %979 = vmatpush1.bf16.xpose.msra.mxu0 %v976
    %980 = vmatprep.subr.bf16.mxu0 0
    %981 = vmatpush1.bf16.xpose.msra.mxu0 0
    %982 = vmatprep.subr.bf16.mxu0 0
    %983 = vmatpush1.bf16.xpose.msra.mxu0 0
    %984 = vmatprep.subr.bf16.mxu0 0
    %985 = vmatpush1.bf16.xpose.msra.mxu0 0
    %986 = vmatprep.subr.bf16.mxu0 0
    %987 = vmatpush1.bf16.xpose.msra.mxu0 0
    %988 = vmatprep.subr.bf16.mxu0 0
    %989 = vmatpush1.bf16.xpose.msra.mxu0 0
    %990 = vmatprep.subr.bf16.mxu0 0
    %991 = vmatpush1.bf16.xpose.msra.mxu0 0
    %992 = vmatprep.subr.bf16.mxu0 0
    %993 = vmatpush1.bf16.xpose.msra.mxu0 0
    %994 = vmatprep.subr.bf16.mxu0 0
    %995 = vmatpush1.bf16.xpose.msra.mxu0 0
    %996 = vmatprep.subr.bf16.mxu0 0
    %997 = vmatpush1.bf16.xpose.msra.mxu0 0
    %998 = vmatprep.subr.bf16.mxu0 0
    %999 = vmatpush1.bf16.xpose.msra.mxu0 0
    %1000 = vmatprep.subr.bf16.mxu0 0
    %1001 = vmatpush1.bf16.xpose.msra.mxu0 0
    %1002 = vmatprep.subr.bf16.mxu0 0
    %1003 = vmatpush1.bf16.xpose.msra.mxu0 0
    %1004 = vmatprep.subr.bf16.mxu0 0
    %1005 = vmatpush1.bf16.xpose.msra.mxu0 0
    %1006 = vmatprep.subr.bf16.mxu0 0
    %1007 = vmatpush1.bf16.xpose.msra.mxu0 0
    %1008 = vmatprep.subr.bf16.mxu0 0
    %1009 = vmatpush1.bf16.xpose.msra.mxu0 0
    %1010 = vmatprep.mubr.bf16.mxu0 0
    %1011 = vmatmul.mubr.bf16.gmra.mrb[0].mxu0 %v973
    %v1012 = vpop.f32.mrb[0].mxu0
    %v1013 = vadd.f32 0.0, %v1012
    %v1014 = vpop.f32.mrb[0].mxu0
    %v1015 = vpop.f32.mrb[0].mxu0
    %v1016 = vpop.f32.mrb[0].mxu0
    %1017 = vdwg.mxu0
    %v1018 = vld [vmem:[%s11 + $0x3] sm:$0x1]
    %v1019 = vld [vmem:[%s11 + $0x7] sm:$0x1]
    %v1020 = vld [vmem:[%s11 + $0xb] sm:$0x1]
    %s1021 = scalar_lea.vmem %s3, 48
    %v1022 = vld [vmem:[%s1021] sm:$0xf]
    %v1023 = vld [vmem:[%s1021 + $0x4] sm:$0xf]
    %v1024 = vld [vmem:[%s1021 + $0x8] sm:$0xf]
    %v1025 = vld [vmem:[%s1021 + $0xc] sm:$0xf]
    %v1026 = vlaneseq
    %v1027 = vshrl.u32 %v1026, 7
    %v1028 = vsub.s32 0, %v1027
    %v1029 = vrot.slane %v1018, %v1028
    %v1034 = vunpack.c.l.b16 %v1022
    %v1035 = vunpack.c.l.b16 %v1023
    %v1036 = vunpack.c.l.b16 %v1024
    %v1037 = vunpack.c.l.b16 %v1025
    %v1038 = vpack.c.b16 %v1035, %v1034
    %v1039 = vpack.c.b16 %v1037, %v1036
    %1042 = vmatprep.subr.bf16.mxu0 0
    %1043 = vmatpush1.bf16.msra.mxu0 %v1038
    %1044 = vmatprep.subr.bf16.mxu0 0
    %1045 = vmatpush1.bf16.msra.mxu0 %v1039
    %1046 = vmatprep.subr.bf16.mxu0 0
    %1047 = vmatpush1.bf16.msra.mxu0 0
    %1048 = vmatprep.subr.bf16.mxu0 0
    %1049 = vmatpush1.bf16.msra.mxu0 0
    %1050 = vmatprep.subr.bf16.mxu0 0
    %1051 = vmatpush1.bf16.msra.mxu0 0
    %1052 = vmatprep.subr.bf16.mxu0 0
    %1053 = vmatpush1.bf16.msra.mxu0 0
    %1054 = vmatprep.subr.bf16.mxu0 0
    %1055 = vmatpush1.bf16.msra.mxu0 0
    %1056 = vmatprep.subr.bf16.mxu0 0
    %1057 = vmatpush1.bf16.msra.mxu0 0
    %1058 = vmatprep.subr.bf16.mxu0 0
    %1059 = vmatpush1.bf16.msra.mxu0 0
    %1060 = vmatprep.subr.bf16.mxu0 0
    %1061 = vmatpush1.bf16.msra.mxu0 0
    %1062 = vmatprep.subr.bf16.mxu0 0
    %1063 = vmatpush1.bf16.msra.mxu0 0
    %1064 = vmatprep.subr.bf16.mxu0 0
    %1065 = vmatpush1.bf16.msra.mxu0 0
    %1066 = vmatprep.subr.bf16.mxu0 0
    %1067 = vmatpush1.bf16.msra.mxu0 0
    %1068 = vmatprep.subr.bf16.mxu0 0
    %1069 = vmatpush1.bf16.msra.mxu0 0
    %1070 = vmatprep.subr.bf16.mxu0 0
    %1071 = vmatpush1.bf16.msra.mxu0 0
    %1072 = vmatprep.subr.bf16.mxu0 0
    %1073 = vmatpush1.bf16.msra.mxu0 0
    %1074 = vmatprep.mubr.bf16.mxu0 0
    %1075 = vmatmul.mubr.bf16.gmra.mrb[0].mxu0 %v180
    %v1076 = vpop.f32.mrb[0].mxu0
    %v1077 = vadd.f32 %v1029, %v1076
    %v1078 = vpop.f32.mrb[0].mxu0
    %v1079 = vpop.f32.mrb[0].mxu0
    %v1080 = vadd.f32 %v1029, %v1079
    %v1081 = vpop.f32.mrb[0].mxu0
    %1082 = vdwg.mxu0
    %s1083 = scalar_lea.vmem %s4, 48
    %v1084 = vld [vmem:[%s1083] sm:$0xf]
    %v1085 = vld [vmem:[%s1083 + $0x4] sm:$0xf]
    %v1086 = vld [vmem:[%s1083 + $0x8] sm:$0xf]
    %v1087 = vld [vmem:[%s1083 + $0xc] sm:$0xf]
    %v1088 = vlaneseq
    %v1089 = vshrl.u32 %v1088, 7
    %v1090 = vsub.s32 0, %v1089
    %v1091 = vrot.slane %v1019, %v1090
    %v1096 = vunpack.c.l.b16 %v1084
    %v1097 = vunpack.c.l.b16 %v1085
    %v1098 = vunpack.c.l.b16 %v1086
    %v1099 = vunpack.c.l.b16 %v1087
    %v1100 = vpack.c.b16 %v1097, %v1096
    %v1101 = vpack.c.b16 %v1099, %v1098
    %1104 = vmatprep.subr.bf16.mxu0 0
    %1105 = vmatpush1.bf16.msra.mxu0 %v1100
    %1106 = vmatprep.subr.bf16.mxu0 0
    %1107 = vmatpush1.bf16.msra.mxu0 %v1101
    %1108 = vmatprep.subr.bf16.mxu0 0
    %1109 = vmatpush1.bf16.msra.mxu0 0
    %1110 = vmatprep.subr.bf16.mxu0 0
    %1111 = vmatpush1.bf16.msra.mxu0 0
    %1112 = vmatprep.subr.bf16.mxu0 0
    %1113 = vmatpush1.bf16.msra.mxu0 0
    %1114 = vmatprep.subr.bf16.mxu0 0
    %1115 = vmatpush1.bf16.msra.mxu0 0
    %1116 = vmatprep.subr.bf16.mxu0 0
    %1117 = vmatpush1.bf16.msra.mxu0 0
    %1118 = vmatprep.subr.bf16.mxu0 0
    %1119 = vmatpush1.bf16.msra.mxu0 0
    %1120 = vmatprep.subr.bf16.mxu0 0
    %1121 = vmatpush1.bf16.msra.mxu0 0
    %1122 = vmatprep.subr.bf16.mxu0 0
    %1123 = vmatpush1.bf16.msra.mxu0 0
    %1124 = vmatprep.subr.bf16.mxu0 0
    %1125 = vmatpush1.bf16.msra.mxu0 0
    %1126 = vmatprep.subr.bf16.mxu0 0
    %1127 = vmatpush1.bf16.msra.mxu0 0
    %1128 = vmatprep.subr.bf16.mxu0 0
    %1129 = vmatpush1.bf16.msra.mxu0 0
    %1130 = vmatprep.subr.bf16.mxu0 0
    %1131 = vmatpush1.bf16.msra.mxu0 0
    %1132 = vmatprep.subr.bf16.mxu0 0
    %1133 = vmatpush1.bf16.msra.mxu0 0
    %1134 = vmatprep.subr.bf16.mxu0 0
    %1135 = vmatpush1.bf16.msra.mxu0 0
    %1136 = vmatprep.mubr.bf16.mxu0 0
    %1137 = vmatmul.mubr.bf16.gmra.mrb[0].mxu0 %v180
    %v1138 = vpop.f32.mrb[0].mxu0
    %v1139 = vadd.f32 %v1091, %v1138
    %v1140 = vpop.f32.mrb[0].mxu0
    %v1141 = vpop.f32.mrb[0].mxu0
    %v1142 = vadd.f32 %v1091, %v1141
    %v1143 = vpop.f32.mrb[0].mxu0
    %1144 = vdwg.mxu0
    %s1145 = scalar_lea.vmem %s5, 48
    %v1146 = vld [vmem:[%s1145] sm:$0xf]
    %v1147 = vld [vmem:[%s1145 + $0x4] sm:$0xf]
    %v1148 = vld [vmem:[%s1145 + $0x8] sm:$0xf]
    %v1149 = vld [vmem:[%s1145 + $0xc] sm:$0xf]
    %v1150 = vlaneseq
    %v1151 = vshrl.u32 %v1150, 7
    %v1152 = vsub.s32 0, %v1151
    %v1153 = vrot.slane %v1020, %v1152
    %v1158 = vunpack.c.l.b16 %v1146
    %v1159 = vunpack.c.l.b16 %v1147
    %v1160 = vunpack.c.l.b16 %v1148
    %v1161 = vunpack.c.l.b16 %v1149
    %v1162 = vpack.c.b16 %v1159, %v1158
    %v1163 = vpack.c.b16 %v1161, %v1160
    %1166 = vmatprep.subr.bf16.mxu0 0
    %1167 = vmatpush1.bf16.msra.mxu0 %v1162
    %1168 = vmatprep.subr.bf16.mxu0 0
    %1169 = vmatpush1.bf16.msra.mxu0 %v1163
    %1170 = vmatprep.subr.bf16.mxu0 0
    %1171 = vmatpush1.bf16.msra.mxu0 0
    %1172 = vmatprep.subr.bf16.mxu0 0
    %1173 = vmatpush1.bf16.msra.mxu0 0
    %1174 = vmatprep.subr.bf16.mxu0 0
    %1175 = vmatpush1.bf16.msra.mxu0 0
    %1176 = vmatprep.subr.bf16.mxu0 0
    %1177 = vmatpush1.bf16.msra.mxu0 0
    %1178 = vmatprep.subr.bf16.mxu0 0
    %1179 = vmatpush1.bf16.msra.mxu0 0
    %1180 = vmatprep.subr.bf16.mxu0 0
    %1181 = vmatpush1.bf16.msra.mxu0 0
    %1182 = vmatprep.subr.bf16.mxu0 0
    %1183 = vmatpush1.bf16.msra.mxu0 0
    %1184 = vmatprep.subr.bf16.mxu0 0
    %1185 = vmatpush1.bf16.msra.mxu0 0
    %1186 = vmatprep.subr.bf16.mxu0 0
    %1187 = vmatpush1.bf16.msra.mxu0 0
    %1188 = vmatprep.subr.bf16.mxu0 0
    %1189 = vmatpush1.bf16.msra.mxu0 0
    %1190 = vmatprep.subr.bf16.mxu0 0
    %1191 = vmatpush1.bf16.msra.mxu0 0
    %1192 = vmatprep.subr.bf16.mxu0 0
    %1193 = vmatpush1.bf16.msra.mxu0 0
    %1194 = vmatprep.subr.bf16.mxu0 0
    %1195 = vmatpush1.bf16.msra.mxu0 0
    %1196 = vmatprep.subr.bf16.mxu0 0
    %1197 = vmatpush1.bf16.msra.mxu0 0
    %1198 = vmatprep.mubr.bf16.mxu0 0
    %1199 = vmatmul.mubr.bf16.gmra.mrb[0].mxu0 %v180
    %v1200 = vpop.f32.mrb[0].mxu0
    %v1201 = vadd.f32 %v1153, %v1200
    %v1202 = vpop.f32.mrb[0].mxu0
    %v1203 = vpop.f32.mrb[0].mxu0
    %v1204 = vadd.f32 %v1153, %v1203
    %v1205 = vpop.f32.mrb[0].mxu0
    %1206 = vdwg.mxu0
    %v1207 = vpack.c.bf16 %v1077, %v1077
    %v1208 = vpack.c.bf16 %v1080, %v1080
    %v1209 = vpack.c.bf16 %v1139, %v1139
    %v1210 = vpack.c.bf16 %v1142, %v1142
    %v1211 = vpack.c.bf16 %v1201, %v1201
    %v1212 = vpack.c.bf16 %v1204, %v1204
    %v1214 = vsel %vm351, %v1207, 0
    %v1217 = vsel %vm351, %v1209, 0
    %1219 = vmatprep.subr.bf16.mxu0 0
    %1220 = vmatpush1.bf16.xpose.msra.mxu0 %v1217
    %1221 = vmatprep.subr.bf16.mxu0 0
    %1222 = vmatpush1.bf16.xpose.msra.mxu0 0
    %1223 = vmatprep.subr.bf16.mxu0 0
    %1224 = vmatpush1.bf16.xpose.msra.mxu0 0
    %1225 = vmatprep.subr.bf16.mxu0 0
    %1226 = vmatpush1.bf16.xpose.msra.mxu0 0
    %1227 = vmatprep.subr.bf16.mxu0 0
    %1228 = vmatpush1.bf16.xpose.msra.mxu0 0
    %1229 = vmatprep.subr.bf16.mxu0 0
    %1230 = vmatpush1.bf16.xpose.msra.mxu0 0
    %1231 = vmatprep.subr.bf16.mxu0 0
    %1232 = vmatpush1.bf16.xpose.msra.mxu0 0
    %1233 = vmatprep.subr.bf16.mxu0 0
    %1234 = vmatpush1.bf16.xpose.msra.mxu0 0
    %1235 = vmatprep.subr.bf16.mxu0 0
    %1236 = vmatpush1.bf16.xpose.msra.mxu0 0
    %1237 = vmatprep.subr.bf16.mxu0 0
    %1238 = vmatpush1.bf16.xpose.msra.mxu0 0
    %1239 = vmatprep.subr.bf16.mxu0 0
    %1240 = vmatpush1.bf16.xpose.msra.mxu0 0
    %1241 = vmatprep.subr.bf16.mxu0 0
    %1242 = vmatpush1.bf16.xpose.msra.mxu0 0
    %1243 = vmatprep.subr.bf16.mxu0 0
    %1244 = vmatpush1.bf16.xpose.msra.mxu0 0
    %1245 = vmatprep.subr.bf16.mxu0 0
    %1246 = vmatpush1.bf16.xpose.msra.mxu0 0
    %1247 = vmatprep.subr.bf16.mxu0 0
    %1248 = vmatpush1.bf16.xpose.msra.mxu0 0
    %1249 = vmatprep.subr.bf16.mxu0 0
    %1250 = vmatpush1.bf16.xpose.msra.mxu0 0
    %1251 = vmatprep.mubr.bf16.mxu0 0
    %1252 = vmatmul.mubr.bf16.gmra.mrb[0].mxu0 %v1214
    %v1253 = vpop.f32.mrb[0].mxu0
    %v1254 = vadd.f32 0.0, %v1253
    %v1255 = vpop.f32.mrb[0].mxu0
    %v1256 = vpop.f32.mrb[0].mxu0
    %v1257 = vpop.f32.mrb[0].mxu0
    %1258 = vdwg.mxu0
    %v1260 = vsel %vm351, %v1208, 0
    %v1263 = vsel %vm351, %v1210, 0
    %1265 = vmatprep.subr.bf16.mxu0 0
    %1266 = vmatpush1.bf16.xpose.msra.mxu0 %v1263
    %1267 = vmatprep.subr.bf16.mxu0 0
    %1268 = vmatpush1.bf16.xpose.msra.mxu0 0
    %1269 = vmatprep.subr.bf16.mxu0 0
    %1270 = vmatpush1.bf16.xpose.msra.mxu0 0
    %1271 = vmatprep.subr.bf16.mxu0 0
    %1272 = vmatpush1.bf16.xpose.msra.mxu0 0
    %1273 = vmatprep.subr.bf16.mxu0 0
    %1274 = vmatpush1.bf16.xpose.msra.mxu0 0
    %1275 = vmatprep.subr.bf16.mxu0 0
    %1276 = vmatpush1.bf16.xpose.msra.mxu0 0
    %1277 = vmatprep.subr.bf16.mxu0 0
    %1278 = vmatpush1.bf16.xpose.msra.mxu0 0
    %1279 = vmatprep.subr.bf16.mxu0 0
    %1280 = vmatpush1.bf16.xpose.msra.mxu0 0
    %1281 = vmatprep.subr.bf16.mxu0 0
    %1282 = vmatpush1.bf16.xpose.msra.mxu0 0
    %1283 = vmatprep.subr.bf16.mxu0 0
    %1284 = vmatpush1.bf16.xpose.msra.mxu0 0
    %1285 = vmatprep.subr.bf16.mxu0 0
    %1286 = vmatpush1.bf16.xpose.msra.mxu0 0
    %1287 = vmatprep.subr.bf16.mxu0 0
    %1288 = vmatpush1.bf16.xpose.msra.mxu0 0
    %1289 = vmatprep.subr.bf16.mxu0 0
    %1290 = vmatpush1.bf16.xpose.msra.mxu0 0
    %1291 = vmatprep.subr.bf16.mxu0 0
    %1292 = vmatpush1.bf16.xpose.msra.mxu0 0
    %1293 = vmatprep.subr.bf16.mxu0 0
    %1294 = vmatpush1.bf16.xpose.msra.mxu0 0
    %1295 = vmatprep.subr.bf16.mxu0 0
    %1296 = vmatpush1.bf16.xpose.msra.mxu0 0
    %1297 = vmatprep.mubr.bf16.mxu0 0
    %1298 = vmatmul.mubr.bf16.gmra.mrb[0].mxu0 %v1260
    %v1299 = vpop.f32.mrb[0].mxu0
    %v1300 = vadd.f32 0.0, %v1299
    %v1301 = vpop.f32.mrb[0].mxu0
    %v1302 = vpop.f32.mrb[0].mxu0
    %v1303 = vpop.f32.mrb[0].mxu0
    %1304 = vdwg.mxu0
    %v1305 = vsel %vm351, %v393, -inf
    %1306 = vmax.xlane.f32.xlu0 %v1305
    %v1307 = vpop.xlane.xlu0 %1306
    %v1308 = vsel %vm351, %v439, -inf
    %1309 = vmax.xlane.f32.xlu0 %v1308
    %v1310 = vpop.xlane.xlu0 %1309
    %v1311 = vsel %vm351, %v680, -inf
    %1312 = vmax.xlane.f32.xlu0 %v1311
    %v1313 = vpop.xlane.xlu0 %1312
    %v1314 = vsel %vm351, %v726, -inf
    %1315 = vmax.xlane.f32.xlu0 %v1314
    %v1316 = vpop.xlane.xlu0 %1315
    %v1317 = vsel %vm351, %v967, -inf
    %1318 = vmax.xlane.f32.xlu0 %v1317
    %v1319 = vpop.xlane.xlu0 %1318
    %v1320 = vsel %vm351, %v1013, -inf
    %1321 = vmax.xlane.f32.xlu0 %v1320
    %v1322 = vpop.xlane.xlu0 %1321
    %v1323 = vsel %vm351, %v1254, -inf
    %1324 = vmax.xlane.f32.xlu0 %v1323
    %v1325 = vpop.xlane.xlu0 %1324
    %v1326 = vsel %vm351, %v1300, -inf
    %1327 = vmax.xlane.f32.xlu0 %v1326
    %v1328 = vpop.xlane.xlu0 %1327
    %v1329 = vsub.f32 %v393, %v1307
    %v1330 = vsub.f32 %v439, %v1310
    %v1331 = vsub.f32 %v680, %v1313
    %v1332 = vsub.f32 %v726, %v1316
    %v1333 = vsub.f32 %v967, %v1319
    %v1334 = vsub.f32 %v1013, %v1322
    %v1335 = vsub.f32 %v1254, %v1325
    %v1336 = vsub.f32 %v1300, %v1328
    %v1337 = vmul.f32 %v1329, 1.442695
    %v1338 = vpow.pop %v1337
    %v1339 = vmul.f32 %v1330, 1.442695
    %v1340 = vpow.pop %v1339
    %v1341 = vmul.f32 %v1331, 1.442695
    %v1342 = vpow.pop %v1341
    %v1343 = vmul.f32 %v1332, 1.442695
    %v1344 = vpow.pop %v1343
    %v1345 = vmul.f32 %v1333, 1.442695
    %v1346 = vpow.pop %v1345
    %v1347 = vmul.f32 %v1334, 1.442695
    %v1348 = vpow.pop %v1347
    %v1349 = vmul.f32 %v1335, 1.442695
    %v1350 = vpow.pop %v1349
    %v1351 = vmul.f32 %v1336, 1.442695
    %v1352 = vpow.pop %v1351
    %v1353 = vsel %vm351, %v1338, 0.0
    %1354 = vadd.xlane.f32.xlu0 %v1353
    %v1355 = vpop.xlane.xlu0 %1354
    %v1356 = vsel %vm351, %v1340, 0.0
    %1357 = vadd.xlane.f32.xlu0 %v1356
    %v1358 = vpop.xlane.xlu0 %1357
    %v1359 = vsel %vm351, %v1342, 0.0
    %1360 = vadd.xlane.f32.xlu0 %v1359
    %v1361 = vpop.xlane.xlu0 %1360
    %v1362 = vsel %vm351, %v1344, 0.0
    %1363 = vadd.xlane.f32.xlu0 %v1362
    %v1364 = vpop.xlane.xlu0 %1363
    %v1365 = vsel %vm351, %v1346, 0.0
    %1366 = vadd.xlane.f32.xlu0 %v1365
    %v1367 = vpop.xlane.xlu0 %1366
    %v1368 = vsel %vm351, %v1348, 0.0
    %1369 = vadd.xlane.f32.xlu0 %v1368
    %v1370 = vpop.xlane.xlu0 %1369
    %v1371 = vsel %vm351, %v1350, 0.0
    %1372 = vadd.xlane.f32.xlu0 %v1371
    %v1373 = vpop.xlane.xlu0 %1372
    %v1374 = vsel %vm351, %v1352, 0.0
    %1375 = vadd.xlane.f32.xlu0 %v1374
    %v1376 = vpop.xlane.xlu0 %1375
    %v1377 = vrcp.pop %v1355
    %v1378 = vrcp.pop %v1358
    %v1379 = vrcp.pop %v1361
    %v1380 = vrcp.pop %v1364
    %v1381 = vrcp.pop %v1367
    %v1382 = vrcp.pop %v1370
    %v1383 = vrcp.pop %v1373
    %v1384 = vrcp.pop %v1376
    %v1385 = vmul.f32 %v1338, %v1377
    %v1386 = vmul.f32 %v1340, %v1378
    %v1387 = vmul.f32 %v1342, %v1379
    %v1388 = vmul.f32 %v1344, %v1380
    %v1389 = vmul.f32 %v1346, %v1381
    %v1390 = vmul.f32 %v1348, %v1382
    %v1391 = vmul.f32 %v1350, %v1383
    %v1392 = vmul.f32 %v1352, %v1384
    %v1393 = vpack.c.bf16 %v1385, %v1385
    %v1394 = vpack.c.bf16 %v1386, %v1386
    %v1395 = vpack.c.bf16 %v1387, %v1387
    %v1396 = vpack.c.bf16 %v1388, %v1388
    %v1397 = vpack.c.bf16 %v1389, %v1389
    %v1398 = vpack.c.bf16 %v1390, %v1390
    %v1399 = vpack.c.bf16 %v1391, %v1391
    %v1400 = vpack.c.bf16 %v1392, %v1392
    %v1401 = vlaneseq
    %v1402 = vshrl.u32 %v1401, 7
    %v1403 = vsub.s32 0, %v1402
    %v1404 = vrot.slane %v106, %v1403
    %v1406 = vsel %vm351, %v1393, 0
    %vm1408 = vcmask 1043456
    %v1410 = vsel %vm1408, %v349, 0
    %1412 = vmatprep.subr.bf16.mxu0 0
    %1413 = vmatpush1.bf16.msra.mxu0 %v1410
    %1414 = vmatprep.subr.bf16.mxu0 0
    %1415 = vmatpush1.bf16.msra.mxu0 0
    %1416 = vmatprep.subr.bf16.mxu0 0
    %1417 = vmatpush1.bf16.msra.mxu0 0
    %1418 = vmatprep.subr.bf16.mxu0 0
    %1419 = vmatpush1.bf16.msra.mxu0 0
    %1420 = vmatprep.subr.bf16.mxu0 0
    %1421 = vmatpush1.bf16.msra.mxu0 0
    %1422 = vmatprep.subr.bf16.mxu0 0
    %1423 = vmatpush1.bf16.msra.mxu0 0
    %1424 = vmatprep.subr.bf16.mxu0 0
    %1425 = vmatpush1.bf16.msra.mxu0 0
    %1426 = vmatprep.subr.bf16.mxu0 0
    %1427 = vmatpush1.bf16.msra.mxu0 0
    %1428 = vmatprep.subr.bf16.mxu0 0
    %1429 = vmatpush1.bf16.msra.mxu0 0
    %1430 = vmatprep.subr.bf16.mxu0 0
    %1431 = vmatpush1.bf16.msra.mxu0 0
    %1432 = vmatprep.subr.bf16.mxu0 0
    %1433 = vmatpush1.bf16.msra.mxu0 0
    %1434 = vmatprep.subr.bf16.mxu0 0
    %1435 = vmatpush1.bf16.msra.mxu0 0
    %1436 = vmatprep.subr.bf16.mxu0 0
    %1437 = vmatpush1.bf16.msra.mxu0 0
    %1438 = vmatprep.subr.bf16.mxu0 0
    %1439 = vmatpush1.bf16.msra.mxu0 0
    %1440 = vmatprep.subr.bf16.mxu0 0
    %1441 = vmatpush1.bf16.msra.mxu0 0
    %1442 = vmatprep.subr.bf16.mxu0 0
    %1443 = vmatpush1.bf16.msra.mxu0 0
    %1444 = vmatprep.mubr.bf16.mxu0 0
    %1445 = vmatmul.mubr.bf16.gmra.mrb[0].mxu0 %v1406
    %v1446 = vpop.f32.mrb[0].mxu0
    %v1447 = vadd.f32 0.0, %v1446
    %v1448 = vpop.f32.mrb[0].mxu0
    %v1449 = vpop.f32.mrb[0].mxu0
    %v1450 = vpop.f32.mrb[0].mxu0
    %1451 = vdwg.mxu0
    %v1453 = vsel %vm351, %v1394, 0
    %v1456 = vsel %vm1408, %v350, 0
    %1458 = vmatprep.subr.bf16.mxu0 0
    %1459 = vmatpush1.bf16.msra.mxu0 %v1456
    %1460 = vmatprep.subr.bf16.mxu0 0
    %1461 = vmatpush1.bf16.msra.mxu0 0
    %1462 = vmatprep.subr.bf16.mxu0 0
    %1463 = vmatpush1.bf16.msra.mxu0 0
    %1464 = vmatprep.subr.bf16.mxu0 0
    %1465 = vmatpush1.bf16.msra.mxu0 0
    %1466 = vmatprep.subr.bf16.mxu0 0
    %1467 = vmatpush1.bf16.msra.mxu0 0
    %1468 = vmatprep.subr.bf16.mxu0 0
    %1469 = vmatpush1.bf16.msra.mxu0 0
    %1470 = vmatprep.subr.bf16.mxu0 0
    %1471 = vmatpush1.bf16.msra.mxu0 0
    %1472 = vmatprep.subr.bf16.mxu0 0
    %1473 = vmatpush1.bf16.msra.mxu0 0
    %1474 = vmatprep.subr.bf16.mxu0 0
    %1475 = vmatpush1.bf16.msra.mxu0 0
    %1476 = vmatprep.subr.bf16.mxu0 0
    %1477 = vmatpush1.bf16.msra.mxu0 0
    %1478 = vmatprep.subr.bf16.mxu0 0
    %1479 = vmatpush1.bf16.msra.mxu0 0
    %1480 = vmatprep.subr.bf16.mxu0 0
    %1481 = vmatpush1.bf16.msra.mxu0 0
    %1482 = vmatprep.subr.bf16.mxu0 0
    %1483 = vmatpush1.bf16.msra.mxu0 0
    %1484 = vmatprep.subr.bf16.mxu0 0
    %1485 = vmatpush1.bf16.msra.mxu0 0
    %1486 = vmatprep.subr.bf16.mxu0 0
    %1487 = vmatpush1.bf16.msra.mxu0 0
    %1488 = vmatprep.subr.bf16.mxu0 0
    %1489 = vmatpush1.bf16.msra.mxu0 0
    %1490 = vmatprep.mubr.bf16.mxu0 0
    %1491 = vmatmul.mubr.bf16.gmra.mrb[0].mxu0 %v1453
    %v1492 = vpop.f32.mrb[0].mxu0
    %v1493 = vadd.f32 0.0, %v1492
    %v1494 = vpop.f32.mrb[0].mxu0
    %v1495 = vpop.f32.mrb[0].mxu0
    %v1496 = vpop.f32.mrb[0].mxu0
    %1497 = vdwg.mxu0
    %v1498 = vpack.c.bf16 %v1493, %v1447
    %v1499 = vld [vmem:[%s6] sm:$0xf]
    %v1501 = vsel %vm351, %v1498, 0
    %v1504 = vsel %vm1408, %v1499, 0
    %1506 = vmatprep.subr.bf16.mxu0 0
    %1507 = vmatpush1.bf16.msra.mxu0 %v1504
    %1508 = vmatprep.subr.bf16.mxu0 0
    %1509 = vmatpush1.bf16.msra.mxu0 0
    %1510 = vmatprep.subr.bf16.mxu0 0
    %1511 = vmatpush1.bf16.msra.mxu0 0
    %1512 = vmatprep.subr.bf16.mxu0 0
    %1513 = vmatpush1.bf16.msra.mxu0 0
    %1514 = vmatprep.subr.bf16.mxu0 0
    %1515 = vmatpush1.bf16.msra.mxu0 0
    %1516 = vmatprep.subr.bf16.mxu0 0
    %1517 = vmatpush1.bf16.msra.mxu0 0
    %1518 = vmatprep.subr.bf16.mxu0 0
    %1519 = vmatpush1.bf16.msra.mxu0 0
    %1520 = vmatprep.subr.bf16.mxu0 0
    %1521 = vmatpush1.bf16.msra.mxu0 0
    %1522 = vmatprep.subr.bf16.mxu0 0
    %1523 = vmatpush1.bf16.msra.mxu0 0
    %1524 = vmatprep.subr.bf16.mxu0 0
    %1525 = vmatpush1.bf16.msra.mxu0 0
    %1526 = vmatprep.subr.bf16.mxu0 0
    %1527 = vmatpush1.bf16.msra.mxu0 0
    %1528 = vmatprep.subr.bf16.mxu0 0
    %1529 = vmatpush1.bf16.msra.mxu0 0
    %1530 = vmatprep.subr.bf16.mxu0 0
    %1531 = vmatpush1.bf16.msra.mxu0 0
    %1532 = vmatprep.subr.bf16.mxu0 0
    %1533 = vmatpush1.bf16.msra.mxu0 0
    %1534 = vmatprep.subr.bf16.mxu0 0
    %1535 = vmatpush1.bf16.msra.mxu0 0
    %1536 = vmatprep.subr.bf16.mxu0 0
    %1537 = vmatpush1.bf16.msra.mxu0 0
    %1538 = vmatprep.mubr.bf16.mxu0 0
    %1539 = vmatmul.mubr.bf16.gmra.mrb[0].mxu0 %v1501
    %v1540 = vpop.f32.mrb[0].mxu0
    %v1541 = vadd.f32 0.0, %v1540
    %v1542 = vpop.f32.mrb[0].mxu0
    %v1543 = vpop.f32.mrb[0].mxu0
    %v1544 = vadd.f32 0.0, %v1543
    %v1545 = vpop.f32.mrb[0].mxu0
    %1546 = vdwg.mxu0
    %v1547 = vadd.f32 %v1404, %v1541
    %v1548 = vadd.f32 %v1404, %v1544
    %v1550 = vsel %vm351, %v1395, 0
    %v1553 = vsel %vm1408, %v637, 0
    %1555 = vmatprep.subr.bf16.mxu0 0
    %1556 = vmatpush1.bf16.msra.mxu0 %v1553
    %1557 = vmatprep.subr.bf16.mxu0 0
    %1558 = vmatpush1.bf16.msra.mxu0 0
    %1559 = vmatprep.subr.bf16.mxu0 0
    %1560 = vmatpush1.bf16.msra.mxu0 0
    %1561 = vmatprep.subr.bf16.mxu0 0
    %1562 = vmatpush1.bf16.msra.mxu0 0
    %1563 = vmatprep.subr.bf16.mxu0 0
    %1564 = vmatpush1.bf16.msra.mxu0 0
    %1565 = vmatprep.subr.bf16.mxu0 0
    %1566 = vmatpush1.bf16.msra.mxu0 0
    %1567 = vmatprep.subr.bf16.mxu0 0
    %1568 = vmatpush1.bf16.msra.mxu0 0
    %1569 = vmatprep.subr.bf16.mxu0 0
    %1570 = vmatpush1.bf16.msra.mxu0 0
    %1571 = vmatprep.subr.bf16.mxu0 0
    %1572 = vmatpush1.bf16.msra.mxu0 0
    %1573 = vmatprep.subr.bf16.mxu0 0
    %1574 = vmatpush1.bf16.msra.mxu0 0
    %1575 = vmatprep.subr.bf16.mxu0 0
    %1576 = vmatpush1.bf16.msra.mxu0 0
    %1577 = vmatprep.subr.bf16.mxu0 0
    %1578 = vmatpush1.bf16.msra.mxu0 0
    %1579 = vmatprep.subr.bf16.mxu0 0
    %1580 = vmatpush1.bf16.msra.mxu0 0
    %1581 = vmatprep.subr.bf16.mxu0 0
    %1582 = vmatpush1.bf16.msra.mxu0 0
    %1583 = vmatprep.subr.bf16.mxu0 0
    %1584 = vmatpush1.bf16.msra.mxu0 0
    %1585 = vmatprep.subr.bf16.mxu0 0
    %1586 = vmatpush1.bf16.msra.mxu0 0
    %1587 = vmatprep.mubr.bf16.mxu0 0
    %1588 = vmatmul.mubr.bf16.gmra.mrb[0].mxu0 %v1550
    %v1589 = vpop.f32.mrb[0].mxu0
    %v1590 = vadd.f32 0.0, %v1589
    %v1591 = vpop.f32.mrb[0].mxu0
    %v1592 = vpop.f32.mrb[0].mxu0
    %v1593 = vpop.f32.mrb[0].mxu0
    %1594 = vdwg.mxu0
    %v1596 = vsel %vm351, %v1396, 0
    %v1599 = vsel %vm1408, %v638, 0
    %1601 = vmatprep.subr.bf16.mxu0 0
    %1602 = vmatpush1.bf16.msra.mxu0 %v1599
    %1603 = vmatprep.subr.bf16.mxu0 0
    %1604 = vmatpush1.bf16.msra.mxu0 0
    %1605 = vmatprep.subr.bf16.mxu0 0
    %1606 = vmatpush1.bf16.msra.mxu0 0
    %1607 = vmatprep.subr.bf16.mxu0 0
    %1608 = vmatpush1.bf16.msra.mxu0 0
    %1609 = vmatprep.subr.bf16.mxu0 0
    %1610 = vmatpush1.bf16.msra.mxu0 0
    %1611 = vmatprep.subr.bf16.mxu0 0
    %1612 = vmatpush1.bf16.msra.mxu0 0
    %1613 = vmatprep.subr.bf16.mxu0 0
    %1614 = vmatpush1.bf16.msra.mxu0 0
    %1615 = vmatprep.subr.bf16.mxu0 0
    %1616 = vmatpush1.bf16.msra.mxu0 0
    %1617 = vmatprep.subr.bf16.mxu0 0
    %1618 = vmatpush1.bf16.msra.mxu0 0
    %1619 = vmatprep.subr.bf16.mxu0 0
    %1620 = vmatpush1.bf16.msra.mxu0 0
    %1621 = vmatprep.subr.bf16.mxu0 0
    %1622 = vmatpush1.bf16.msra.mxu0 0
    %1623 = vmatprep.subr.bf16.mxu0 0
    %1624 = vmatpush1.bf16.msra.mxu0 0
    %1625 = vmatprep.subr.bf16.mxu0 0
    %1626 = vmatpush1.bf16.msra.mxu0 0
    %1627 = vmatprep.subr.bf16.mxu0 0
    %1628 = vmatpush1.bf16.msra.mxu0 0
    %1629 = vmatprep.subr.bf16.mxu0 0
    %1630 = vmatpush1.bf16.msra.mxu0 0
    %1631 = vmatprep.subr.bf16.mxu0 0
    %1632 = vmatpush1.bf16.msra.mxu0 0
    %1633 = vmatprep.mubr.bf16.mxu0 0
    %1634 = vmatmul.mubr.bf16.gmra.mrb[0].mxu0 %v1596
    %v1635 = vpop.f32.mrb[0].mxu0
    %v1636 = vadd.f32 0.0, %v1635
    %v1637 = vpop.f32.mrb[0].mxu0
    %v1638 = vpop.f32.mrb[0].mxu0
    %v1639 = vpop.f32.mrb[0].mxu0
    %1640 = vdwg.mxu0
    %v1641 = vpack.c.bf16 %v1636, %v1590
    %s1642 = scalar_lea.vmem %s6, 4
    %v1643 = vld [vmem:[%s1642] sm:$0xf]
    %v1645 = vsel %vm351, %v1641, 0
    %v1648 = vsel %vm1408, %v1643, 0
    %1650 = vmatprep.subr.bf16.mxu0 0
    %1651 = vmatpush1.bf16.msra.mxu0 %v1648
    %1652 = vmatprep.subr.bf16.mxu0 0
    %1653 = vmatpush1.bf16.msra.mxu0 0
    %1654 = vmatprep.subr.bf16.mxu0 0
    %1655 = vmatpush1.bf16.msra.mxu0 0
    %1656 = vmatprep.subr.bf16.mxu0 0
    %1657 = vmatpush1.bf16.msra.mxu0 0
    %1658 = vmatprep.subr.bf16.mxu0 0
    %1659 = vmatpush1.bf16.msra.mxu0 0
    %1660 = vmatprep.subr.bf16.mxu0 0
    %1661 = vmatpush1.bf16.msra.mxu0 0
    %1662 = vmatprep.subr.bf16.mxu0 0
    %1663 = vmatpush1.bf16.msra.mxu0 0
    %1664 = vmatprep.subr.bf16.mxu0 0
    %1665 = vmatpush1.bf16.msra.mxu0 0
    %1666 = vmatprep.subr.bf16.mxu0 0
    %1667 = vmatpush1.bf16.msra.mxu0 0
    %1668 = vmatprep.subr.bf16.mxu0 0
    %1669 = vmatpush1.bf16.msra.mxu0 0
    %1670 = vmatprep.subr.bf16.mxu0 0
    %1671 = vmatpush1.bf16.msra.mxu0 0
    %1672 = vmatprep.subr.bf16.mxu0 0
    %1673 = vmatpush1.bf16.msra.mxu0 0
    %1674 = vmatprep.subr.bf16.mxu0 0
    %1675 = vmatpush1.bf16.msra.mxu0 0
    %1676 = vmatprep.subr.bf16.mxu0 0
    %1677 = vmatpush1.bf16.msra.mxu0 0
    %1678 = vmatprep.subr.bf16.mxu0 0
    %1679 = vmatpush1.bf16.msra.mxu0 0
    %1680 = vmatprep.subr.bf16.mxu0 0
    %1681 = vmatpush1.bf16.msra.mxu0 0
    %1682 = vmatprep.mubr.bf16.mxu0 0
    %1683 = vmatmul.mubr.bf16.gmra.mrb[0].mxu0 %v1645
    %v1684 = vpop.f32.mrb[0].mxu0
    %v1685 = vadd.f32 0.0, %v1684
    %v1686 = vpop.f32.mrb[0].mxu0
    %v1687 = vpop.f32.mrb[0].mxu0
    %v1688 = vadd.f32 0.0, %v1687
    %v1689 = vpop.f32.mrb[0].mxu0
    %1690 = vdwg.mxu0
    %v1691 = vadd.f32 %v1547, %v1685
    %v1692 = vadd.f32 %v1548, %v1688
    %v1694 = vsel %vm351, %v1397, 0
    %v1697 = vsel %vm1408, %v924, 0
    %1699 = vmatprep.subr.bf16.mxu0 0
    %1700 = vmatpush1.bf16.msra.mxu0 %v1697
    %1701 = vmatprep.subr.bf16.mxu0 0
    %1702 = vmatpush1.bf16.msra.mxu0 0
    %1703 = vmatprep.subr.bf16.mxu0 0
    %1704 = vmatpush1.bf16.msra.mxu0 0
    %1705 = vmatprep.subr.bf16.mxu0 0
    %1706 = vmatpush1.bf16.msra.mxu0 0
    %1707 = vmatprep.subr.bf16.mxu0 0
    %1708 = vmatpush1.bf16.msra.mxu0 0
    %1709 = vmatprep.subr.bf16.mxu0 0
    %1710 = vmatpush1.bf16.msra.mxu0 0
    %1711 = vmatprep.subr.bf16.mxu0 0
    %1712 = vmatpush1.bf16.msra.mxu0 0
    %1713 = vmatprep.subr.bf16.mxu0 0
    %1714 = vmatpush1.bf16.msra.mxu0 0
    %1715 = vmatprep.subr.bf16.mxu0 0
    %1716 = vmatpush1.bf16.msra.mxu0 0
    %1717 = vmatprep.subr.bf16.mxu0 0
    %1718 = vmatpush1.bf16.msra.mxu0 0
    %1719 = vmatprep.subr.bf16.mxu0 0
    %1720 = vmatpush1.bf16.msra.mxu0 0
    %1721 = vmatprep.subr.bf16.mxu0 0
    %1722 = vmatpush1.bf16.msra.mxu0 0
    %1723 = vmatprep.subr.bf16.mxu0 0
    %1724 = vmatpush1.bf16.msra.mxu0 0
    %1725 = vmatprep.subr.bf16.mxu0 0
    %1726 = vmatpush1.bf16.msra.mxu0 0
    %1727 = vmatprep.subr.bf16.mxu0 0
    %1728 = vmatpush1.bf16.msra.mxu0 0
    %1729 = vmatprep.subr.bf16.mxu0 0
    %1730 = vmatpush1.bf16.msra.mxu0 0
    %1731 = vmatprep.mubr.bf16.mxu0 0
    %1732 = vmatmul.mubr.bf16.gmra.mrb[0].mxu0 %v1694
    %v1733 = vpop.f32.mrb[0].mxu0
    %v1734 = vadd.f32 0.0, %v1733
    %v1735 = vpop.f32.mrb[0].mxu0
    %v1736 = vpop.f32.mrb[0].mxu0
    %v1737 = vpop.f32.mrb[0].mxu0
    %1738 = vdwg.mxu0
    %v1740 = vsel %vm351, %v1398, 0
    %v1743 = vsel %vm1408, %v925, 0
    %1745 = vmatprep.subr.bf16.mxu0 0
    %1746 = vmatpush1.bf16.msra.mxu0 %v1743
    %1747 = vmatprep.subr.bf16.mxu0 0
    %1748 = vmatpush1.bf16.msra.mxu0 0
    %1749 = vmatprep.subr.bf16.mxu0 0
    %1750 = vmatpush1.bf16.msra.mxu0 0
    %1751 = vmatprep.subr.bf16.mxu0 0
    %1752 = vmatpush1.bf16.msra.mxu0 0
    %1753 = vmatprep.subr.bf16.mxu0 0
    %1754 = vmatpush1.bf16.msra.mxu0 0
    %1755 = vmatprep.subr.bf16.mxu0 0
    %1756 = vmatpush1.bf16.msra.mxu0 0
    %1757 = vmatprep.subr.bf16.mxu0 0
    %1758 = vmatpush1.bf16.msra.mxu0 0
    %1759 = vmatprep.subr.bf16.mxu0 0
    %1760 = vmatpush1.bf16.msra.mxu0 0
    %1761 = vmatprep.subr.bf16.mxu0 0
    %1762 = vmatpush1.bf16.msra.mxu0 0
    %1763 = vmatprep.subr.bf16.mxu0 0
    %1764 = vmatpush1.bf16.msra.mxu0 0
    %1765 = vmatprep.subr.bf16.mxu0 0
    %1766 = vmatpush1.bf16.msra.mxu0 0
    %1767 = vmatprep.subr.bf16.mxu0 0
    %1768 = vmatpush1.bf16.msra.mxu0 0
    %1769 = vmatprep.subr.bf16.mxu0 0
    %1770 = vmatpush1.bf16.msra.mxu0 0
    %1771 = vmatprep.subr.bf16.mxu0 0
    %1772 = vmatpush1.bf16.msra.mxu0 0
    %1773 = vmatprep.subr.bf16.mxu0 0
    %1774 = vmatpush1.bf16.msra.mxu0 0
    %1775 = vmatprep.subr.bf16.mxu0 0
    %1776 = vmatpush1.bf16.msra.mxu0 0
    %1777 = vmatprep.mubr.bf16.mxu0 0
    %1778 = vmatmul.mubr.bf16.gmra.mrb[0].mxu0 %v1740
    %v1779 = vpop.f32.mrb[0].mxu0
    %v1780 = vadd.f32 0.0, %v1779
    %v1781 = vpop.f32.mrb[0].mxu0
    %v1782 = vpop.f32.mrb[0].mxu0
    %v1783 = vpop.f32.mrb[0].mxu0
    %1784 = vdwg.mxu0
    %v1785 = vpack.c.bf16 %v1780, %v1734
    %s1786 = scalar_lea.vmem %s6, 8
    %v1787 = vld [vmem:[%s1786] sm:$0xf]
    %v1789 = vsel %vm351, %v1785, 0
    %v1792 = vsel %vm1408, %v1787, 0
    %1794 = vmatprep.subr.bf16.mxu0 0
    %1795 = vmatpush1.bf16.msra.mxu0 %v1792
    %1796 = vmatprep.subr.bf16.mxu0 0
    %1797 = vmatpush1.bf16.msra.mxu0 0
    %1798 = vmatprep.subr.bf16.mxu0 0
    %1799 = vmatpush1.bf16.msra.mxu0 0
    %1800 = vmatprep.subr.bf16.mxu0 0
    %1801 = vmatpush1.bf16.msra.mxu0 0
    %1802 = vmatprep.subr.bf16.mxu0 0
    %1803 = vmatpush1.bf16.msra.mxu0 0
    %1804 = vmatprep.subr.bf16.mxu0 0
    %1805 = vmatpush1.bf16.msra.mxu0 0
    %1806 = vmatprep.subr.bf16.mxu0 0
    %1807 = vmatpush1.bf16.msra.mxu0 0
    %1808 = vmatprep.subr.bf16.mxu0 0
    %1809 = vmatpush1.bf16.msra.mxu0 0
    %1810 = vmatprep.subr.bf16.mxu0 0
    %1811 = vmatpush1.bf16.msra.mxu0 0
    %1812 = vmatprep.subr.bf16.mxu0 0
    %1813 = vmatpush1.bf16.msra.mxu0 0
    %1814 = vmatprep.subr.bf16.mxu0 0
    %1815 = vmatpush1.bf16.msra.mxu0 0
    %1816 = vmatprep.subr.bf16.mxu0 0
    %1817 = vmatpush1.bf16.msra.mxu0 0
    %1818 = vmatprep.subr.bf16.mxu0 0
    %1819 = vmatpush1.bf16.msra.mxu0 0
    %1820 = vmatprep.subr.bf16.mxu0 0
    %1821 = vmatpush1.bf16.msra.mxu0 0
    %1822 = vmatprep.subr.bf16.mxu0 0
    %1823 = vmatpush1.bf16.msra.mxu0 0
    %1824 = vmatprep.subr.bf16.mxu0 0
    %1825 = vmatpush1.bf16.msra.mxu0 0
    %1826 = vmatprep.mubr.bf16.mxu0 0
    %1827 = vmatmul.mubr.bf16.gmra.mrb[0].mxu0 %v1789
    %v1828 = vpop.f32.mrb[0].mxu0
    %v1829 = vadd.f32 0.0, %v1828
    %v1830 = vpop.f32.mrb[0].mxu0
    %v1831 = vpop.f32.mrb[0].mxu0
    %v1832 = vadd.f32 0.0, %v1831
    %v1833 = vpop.f32.mrb[0].mxu0
    %1834 = vdwg.mxu0
    %v1835 = vadd.f32 %v1691, %v1829
    %v1836 = vadd.f32 %v1692, %v1832
    %v1838 = vsel %vm351, %v1399, 0
    %v1841 = vsel %vm1408, %v1211, 0
    %1843 = vmatprep.subr.bf16.mxu0 0
    %1844 = vmatpush1.bf16.msra.mxu0 %v1841
    %1845 = vmatprep.subr.bf16.mxu0 0
    %1846 = vmatpush1.bf16.msra.mxu0 0
    %1847 = vmatprep.subr.bf16.mxu0 0
    %1848 = vmatpush1.bf16.msra.mxu0 0
    %1849 = vmatprep.subr.bf16.mxu0 0
    %1850 = vmatpush1.bf16.msra.mxu0 0
    %1851 = vmatprep.subr.bf16.mxu0 0
    %1852 = vmatpush1.bf16.msra.mxu0 0
    %1853 = vmatprep.subr.bf16.mxu0 0
    %1854 = vmatpush1.bf16.msra.mxu0 0
    %1855 = vmatprep.subr.bf16.mxu0 0
    %1856 = vmatpush1.bf16.msra.mxu0 0
    %1857 = vmatprep.subr.bf16.mxu0 0
    %1858 = vmatpush1.bf16.msra.mxu0 0
    %1859 = vmatprep.subr.bf16.mxu0 0
    %1860 = vmatpush1.bf16.msra.mxu0 0
    %1861 = vmatprep.subr.bf16.mxu0 0
    %1862 = vmatpush1.bf16.msra.mxu0 0
    %1863 = vmatprep.subr.bf16.mxu0 0
    %1864 = vmatpush1.bf16.msra.mxu0 0
    %1865 = vmatprep.subr.bf16.mxu0 0
    %1866 = vmatpush1.bf16.msra.mxu0 0
    %1867 = vmatprep.subr.bf16.mxu0 0
    %1868 = vmatpush1.bf16.msra.mxu0 0
    %1869 = vmatprep.subr.bf16.mxu0 0
    %1870 = vmatpush1.bf16.msra.mxu0 0
    %1871 = vmatprep.subr.bf16.mxu0 0
    %1872 = vmatpush1.bf16.msra.mxu0 0
    %1873 = vmatprep.subr.bf16.mxu0 0
    %1874 = vmatpush1.bf16.msra.mxu0 0
    %1875 = vmatprep.mubr.bf16.mxu0 0
    %1876 = vmatmul.mubr.bf16.gmra.mrb[0].mxu0 %v1838
    %v1877 = vpop.f32.mrb[0].mxu0
    %v1878 = vadd.f32 0.0, %v1877
    %v1879 = vpop.f32.mrb[0].mxu0
    %v1880 = vpop.f32.mrb[0].mxu0
    %v1881 = vpop.f32.mrb[0].mxu0
    %1882 = vdwg.mxu0
    %v1884 = vsel %vm351, %v1400, 0
    %v1887 = vsel %vm1408, %v1212, 0
    %1889 = vmatprep.subr.bf16.mxu0 0
    %1890 = vmatpush1.bf16.msra.mxu0 %v1887
    %1891 = vmatprep.subr.bf16.mxu0 0
    %1892 = vmatpush1.bf16.msra.mxu0 0
    %1893 = vmatprep.subr.bf16.mxu0 0
    %1894 = vmatpush1.bf16.msra.mxu0 0
    %1895 = vmatprep.subr.bf16.mxu0 0
    %1896 = vmatpush1.bf16.msra.mxu0 0
    %1897 = vmatprep.subr.bf16.mxu0 0
    %1898 = vmatpush1.bf16.msra.mxu0 0
    %1899 = vmatprep.subr.bf16.mxu0 0
    %1900 = vmatpush1.bf16.msra.mxu0 0
    %1901 = vmatprep.subr.bf16.mxu0 0
    %1902 = vmatpush1.bf16.msra.mxu0 0
    %1903 = vmatprep.subr.bf16.mxu0 0
    %1904 = vmatpush1.bf16.msra.mxu0 0
    %1905 = vmatprep.subr.bf16.mxu0 0
    %1906 = vmatpush1.bf16.msra.mxu0 0
    %1907 = vmatprep.subr.bf16.mxu0 0
    %1908 = vmatpush1.bf16.msra.mxu0 0
    %1909 = vmatprep.subr.bf16.mxu0 0
    %1910 = vmatpush1.bf16.msra.mxu0 0
    %1911 = vmatprep.subr.bf16.mxu0 0
    %1912 = vmatpush1.bf16.msra.mxu0 0
    %1913 = vmatprep.subr.bf16.mxu0 0
    %1914 = vmatpush1.bf16.msra.mxu0 0
    %1915 = vmatprep.subr.bf16.mxu0 0
    %1916 = vmatpush1.bf16.msra.mxu0 0
    %1917 = vmatprep.subr.bf16.mxu0 0
    %1918 = vmatpush1.bf16.msra.mxu0 0
    %1919 = vmatprep.subr.bf16.mxu0 0
    %1920 = vmatpush1.bf16.msra.mxu0 0
    %1921 = vmatprep.mubr.bf16.mxu0 0
    %1922 = vmatmul.mubr.bf16.gmra.mrb[0].mxu0 %v1884
    %v1923 = vpop.f32.mrb[0].mxu0
    %v1924 = vadd.f32 0.0, %v1923
    %v1925 = vpop.f32.mrb[0].mxu0
    %v1926 = vpop.f32.mrb[0].mxu0
    %v1927 = vpop.f32.mrb[0].mxu0
    %1928 = vdwg.mxu0
    %v1929 = vpack.c.bf16 %v1924, %v1878
    %s1930 = scalar_lea.vmem %s6, 12
    %v1931 = vld [vmem:[%s1930] sm:$0xf]
    %v1933 = vsel %vm351, %v1929, 0
    %v1936 = vsel %vm1408, %v1931, 0
    %1938 = vmatprep.subr.bf16.mxu0 0
    %1939 = vmatpush1.bf16.msra.mxu0 %v1936
    %1940 = vmatprep.subr.bf16.mxu0 0
    %1941 = vmatpush1.bf16.msra.mxu0 0
    %1942 = vmatprep.subr.bf16.mxu0 0
    %1943 = vmatpush1.bf16.msra.mxu0 0
    %1944 = vmatprep.subr.bf16.mxu0 0
    %1945 = vmatpush1.bf16.msra.mxu0 0
    %1946 = vmatprep.subr.bf16.mxu0 0
    %1947 = vmatpush1.bf16.msra.mxu0 0
    %1948 = vmatprep.subr.bf16.mxu0 0
    %1949 = vmatpush1.bf16.msra.mxu0 0
    %1950 = vmatprep.subr.bf16.mxu0 0
    %1951 = vmatpush1.bf16.msra.mxu0 0
    %1952 = vmatprep.subr.bf16.mxu0 0
    %1953 = vmatpush1.bf16.msra.mxu0 0
    %1954 = vmatprep.subr.bf16.mxu0 0
    %1955 = vmatpush1.bf16.msra.mxu0 0
    %1956 = vmatprep.subr.bf16.mxu0 0
    %1957 = vmatpush1.bf16.msra.mxu0 0
    %1958 = vmatprep.subr.bf16.mxu0 0
    %1959 = vmatpush1.bf16.msra.mxu0 0
    %1960 = vmatprep.subr.bf16.mxu0 0
    %1961 = vmatpush1.bf16.msra.mxu0 0
    %1962 = vmatprep.subr.bf16.mxu0 0
    %1963 = vmatpush1.bf16.msra.mxu0 0
    %1964 = vmatprep.subr.bf16.mxu0 0
    %1965 = vmatpush1.bf16.msra.mxu0 0
    %1966 = vmatprep.subr.bf16.mxu0 0
    %1967 = vmatpush1.bf16.msra.mxu0 0
    %1968 = vmatprep.subr.bf16.mxu0 0
    %1969 = vmatpush1.bf16.msra.mxu0 0
    %1970 = vmatprep.mubr.bf16.mxu0 0
    %1971 = vmatmul.mubr.bf16.gmra.mrb[0].mxu0 %v1933
    %v1972 = vpop.f32.mrb[0].mxu0
    %v1973 = vadd.f32 0.0, %v1972
    %v1974 = vpop.f32.mrb[0].mxu0
    %v1975 = vpop.f32.mrb[0].mxu0
    %v1976 = vadd.f32 0.0, %v1975
    %v1977 = vpop.f32.mrb[0].mxu0
    %1978 = vdwg.mxu0
    %v1979 = vadd.f32 %v1835, %v1973
    %v1980 = vadd.f32 %v1836, %v1976
    %v1981 = vadd.f32 %v98, %v1979
    %v1982 = vadd.f32 %v101, %v1980
    %v1983 = vsel %vm111, %v1981, 0.0
    %1984 = vadd.xlane.f32.xlu0 %v1983
    %v1985 = vpop.xlane.xlu0 %1984
    %v1986 = vsel %vm111, %v1982, 0.0
    %1987 = vadd.xlane.f32.xlu0 %v1986
    %v1988 = vpop.xlane.xlu0 %1987
    %v1989 = vmul.f32 %v1985, %v118
    %v1990 = vmul.f32 %v1988, %v118
    %v1991 = vmul.f32 %v1981, %v1981
    %v1992 = vmul.f32 %v1982, %v1982
    %v1993 = vsel %vm111, %v1991, 0.0
    %1994 = vadd.xlane.f32.xlu0 %v1993
    %v1995 = vpop.xlane.xlu0 %1994
    %v1996 = vsel %vm111, %v1992, 0.0
    %1997 = vadd.xlane.f32.xlu0 %v1996
    %v1998 = vpop.xlane.xlu0 %1997
    %v1999 = vmul.f32 %v1995, %v118
    %v2000 = vmul.f32 %v1998, %v118
    %v2001 = vmul.f32 %v1989, %v1989
    %v2002 = vmul.f32 %v1990, %v1990
    %v2003 = vsub.f32 %v1999, %v2001
    %v2004 = vsub.f32 %v2000, %v2002
    %v2005 = vadd.f32 %v2003, 1e-05
    %v2006 = vadd.f32 %v2004, 1e-05
    %v2007 = vrsqrt.pop %v2005
    %v2008 = vrsqrt.pop %v2006
    %v2009 = vsub.f32 %v1981, %v1989
    %v2010 = vsub.f32 %v1982, %v1990
    %v2011 = vlaneseq
    %v2012 = vshrl.u32 %v2011, 7
    %v2013 = vsub.s32 0, %v2012
    %v2014 = vrot.slane %v107, %v2013
    %v2015 = vmul.f32 %v2007, %v2014
    %v2016 = vmul.f32 %v2008, %v2014
    %v2017 = vmul.f32 %v2009, %v2015
    %v2018 = vmul.f32 %v2010, %v2016
    %v2019 = vlaneseq
    %v2020 = vshrl.u32 %v2019, 7
    %v2021 = vsub.s32 0, %v2020
    %v2022 = vrot.slane %v108, %v2021
    %v2023 = vadd.f32 %v2017, %v2022
    %v2024 = vadd.f32 %v2018, %v2022
    %v2025 = vpack.c.bf16 %v2024, %v2023
    %v2026 = vld [vmem:[%s7] sm:$0xf]
    %v2027 = vld [vmem:[%s7 + $0x4] sm:$0xf]
    %v2028 = vld [vmem:[%s7 + $0x8] sm:$0xf]
    %v2029 = vld [vmem:[%s7 + $0xc] sm:$0xf]
    %v2030 = vlaneseq
    %v2031 = vshrl.u32 %v2030, 7
    %v2032 = vsub.s32 0, %v2031
    %v2033 = vrot.slane %v109, %v2032
    %v2038 = vunpack.c.l.b16 %v2026
    %v2039 = vunpack.c.l.b16 %v2027
    %v2040 = vunpack.c.l.b16 %v2028
    %v2041 = vunpack.c.l.b16 %v2029
    %v2042 = vpack.c.b16 %v2039, %v2038
    %v2043 = vpack.c.b16 %v2041, %v2040
    %v2047 = vsel %vm111, %v2025, 0
    %2049 = vmatprep.subr.bf16.mxu0 0
    %2050 = vmatpush1.bf16.msra.mxu0 %v2042
    %2051 = vmatprep.subr.bf16.mxu0 0
    %2052 = vmatpush1.bf16.msra.mxu0 %v2043
    %2053 = vmatprep.subr.bf16.mxu0 0
    %2054 = vmatpush1.bf16.msra.mxu0 0
    %2055 = vmatprep.subr.bf16.mxu0 0
    %2056 = vmatpush1.bf16.msra.mxu0 0
    %2057 = vmatprep.subr.bf16.mxu0 0
    %2058 = vmatpush1.bf16.msra.mxu0 0
    %2059 = vmatprep.subr.bf16.mxu0 0
    %2060 = vmatpush1.bf16.msra.mxu0 0
    %2061 = vmatprep.subr.bf16.mxu0 0
    %2062 = vmatpush1.bf16.msra.mxu0 0
    %2063 = vmatprep.subr.bf16.mxu0 0
    %2064 = vmatpush1.bf16.msra.mxu0 0
    %2065 = vmatprep.subr.bf16.mxu0 0
    %2066 = vmatpush1.bf16.msra.mxu0 0
    %2067 = vmatprep.subr.bf16.mxu0 0
    %2068 = vmatpush1.bf16.msra.mxu0 0
    %2069 = vmatprep.subr.bf16.mxu0 0
    %2070 = vmatpush1.bf16.msra.mxu0 0
    %2071 = vmatprep.subr.bf16.mxu0 0
    %2072 = vmatpush1.bf16.msra.mxu0 0
    %2073 = vmatprep.subr.bf16.mxu0 0
    %2074 = vmatpush1.bf16.msra.mxu0 0
    %2075 = vmatprep.subr.bf16.mxu0 0
    %2076 = vmatpush1.bf16.msra.mxu0 0
    %2077 = vmatprep.subr.bf16.mxu0 0
    %2078 = vmatpush1.bf16.msra.mxu0 0
    %2079 = vmatprep.subr.bf16.mxu0 0
    %2080 = vmatpush1.bf16.msra.mxu0 0
    %2081 = vmatprep.mubr.bf16.mxu0 0
    %2082 = vmatmul.mubr.bf16.gmra.mrb[0].mxu0 %v2047
    %v2083 = vpop.f32.mrb[0].mxu0
    %v2084 = vadd.f32 %v2033, %v2083
    %v2085 = vpop.f32.mrb[0].mxu0
    %v2086 = vpop.f32.mrb[0].mxu0
    %v2087 = vadd.f32 %v2033, %v2086
    %v2088 = vpop.f32.mrb[0].mxu0
    %2089 = vdwg.mxu0
    %v2090 = vmax.f32 %v2084, 0.0
    %v2091 = vmax.f32 %v2087, 0.0
    %v2092 = vpack.c.bf16 %v2091, %v2090
    %v2093 = vld [vmem:[%s8] sm:$0xf]
    %v2094 = vld [vmem:[%s8 + $0x4] sm:$0xf]
    %v2095 = vld [vmem:[%s8 + $0x8] sm:$0xf]
    %v2096 = vld [vmem:[%s8 + $0xc] sm:$0xf]
    %v2097 = vld [vmem:[%s8 + $0x10] sm:$0xf]
    %v2098 = vld [vmem:[%s8 + $0x14] sm:$0xf]
    %v2099 = vld [vmem:[%s8 + $0x18] sm:$0xf]
    %v2100 = vld [vmem:[%s8 + $0x1c] sm:$0xf]
    %v2101 = vlaneseq
    %v2102 = vshrl.u32 %v2101, 7
    %v2103 = vsub.s32 0, %v2102
    %v2104 = vrot.slane %v110, %v2103
    %v2113 = vunpack.c.l.b16 %v2093
    %v2114 = vunpack.c.l.b16 %v2094
    %v2115 = vunpack.c.l.b16 %v2095
    %v2116 = vunpack.c.l.b16 %v2096
    %v2117 = vunpack.c.l.b16 %v2097
    %v2118 = vunpack.c.l.b16 %v2098
    %v2119 = vunpack.c.l.b16 %v2099
    %v2120 = vunpack.c.l.b16 %v2100
    %v2121 = vpack.c.b16 %v2114, %v2113
    %v2122 = vpack.c.b16 %v2116, %v2115
    %v2123 = vpack.c.b16 %v2118, %v2117
    %v2124 = vpack.c.b16 %v2120, %v2119
    %vm2129 = vcmask 523264
    %v2131 = vsel %vm2129, %v2092, 0
    %2133 = vmatprep.subr.bf16.mxu0 0
    %2134 = vmatpush1.bf16.msra.mxu0 %v2121
    %2135 = vmatprep.subr.bf16.mxu0 0
    %2136 = vmatpush1.bf16.msra.mxu0 %v2122
    %2137 = vmatprep.subr.bf16.mxu0 0
    %2138 = vmatpush1.bf16.msra.mxu0 %v2123
    %2139 = vmatprep.subr.bf16.mxu0 0
    %2140 = vmatpush1.bf16.msra.mxu0 %v2124
    %2141 = vmatprep.subr.bf16.mxu0 0
    %2142 = vmatpush1.bf16.msra.mxu0 0
    %2143 = vmatprep.subr.bf16.mxu0 0
    %2144 = vmatpush1.bf16.msra.mxu0 0
    %2145 = vmatprep.subr.bf16.mxu0 0
    %2146 = vmatpush1.bf16.msra.mxu0 0
    %2147 = vmatprep.subr.bf16.mxu0 0
    %2148 = vmatpush1.bf16.msra.mxu0 0
    %2149 = vmatprep.subr.bf16.mxu0 0
    %2150 = vmatpush1.bf16.msra.mxu0 0
    %2151 = vmatprep.subr.bf16.mxu0 0
    %2152 = vmatpush1.bf16.msra.mxu0 0
    %2153 = vmatprep.subr.bf16.mxu0 0
    %2154 = vmatpush1.bf16.msra.mxu0 0
    %2155 = vmatprep.subr.bf16.mxu0 0
    %2156 = vmatpush1.bf16.msra.mxu0 0
    %2157 = vmatprep.subr.bf16.mxu0 0
    %2158 = vmatpush1.bf16.msra.mxu0 0
    %2159 = vmatprep.subr.bf16.mxu0 0
    %2160 = vmatpush1.bf16.msra.mxu0 0
    %2161 = vmatprep.subr.bf16.mxu0 0
    %2162 = vmatpush1.bf16.msra.mxu0 0
    %2163 = vmatprep.subr.bf16.mxu0 0
    %2164 = vmatpush1.bf16.msra.mxu0 0
    %2165 = vmatprep.mubr.bf16.mxu0 0
    %2166 = vmatmul.mubr.bf16.gmra.mrb[0].mxu0 %v2131
    %v2167 = vpop.f32.mrb[0].mxu0
    %v2168 = vadd.f32 %v2104, %v2167
    %v2169 = vpop.f32.mrb[0].mxu0
    %v2170 = vpop.f32.mrb[0].mxu0
    %v2171 = vadd.f32 %v2104, %v2170
    %v2172 = vpop.f32.mrb[0].mxu0
    %2173 = vdwg.mxu0
    %v2174 = vadd.f32 %v1981, %v2168
    %v2175 = vadd.f32 %v1982, %v2171
    %s2176 = scalar_lea.vmem %s11, 24
    %v2177 = vld [vmem:[%s2176 + $0xc] sm:$0x1]
    %v2178 = vld [vmem:[%s2176 + $0xd] sm:$0x1]
    %v2179 = vld [vmem:[%s2176 + $0xe] sm:$0x1]
    %v2180 = vld [vmem:[%s2176 + $0xf] sm:$0x1]
    %v2181 = vld [vmem:[%s2176 + $0x10] sm:$0x1]
    %v2182 = vld [vmem:[%s2176 + $0x11] sm:$0x1]
    %v2183 = vld [vmem:[%s2176 + $0x12] sm:$0x1]
    %v2184 = vsel %vm111, %v2174, 0.0
    %2185 = vadd.xlane.f32.xlu0 %v2184
    %v2186 = vpop.xlane.xlu0 %2185
    %v2187 = vsel %vm111, %v2175, 0.0
    %2188 = vadd.xlane.f32.xlu0 %v2187
    %v2189 = vpop.xlane.xlu0 %2188
    %v2190 = vmul.f32 %v2186, %v118
    %v2191 = vmul.f32 %v2189, %v118
    %v2192 = vmul.f32 %v2174, %v2174
    %v2193 = vmul.f32 %v2175, %v2175
    %v2194 = vsel %vm111, %v2192, 0.0
    %2195 = vadd.xlane.f32.xlu0 %v2194
    %v2196 = vpop.xlane.xlu0 %2195
    %v2197 = vsel %vm111, %v2193, 0.0
    %2198 = vadd.xlane.f32.xlu0 %v2197
    %v2199 = vpop.xlane.xlu0 %2198
    %v2200 = vmul.f32 %v2196, %v118
    %v2201 = vmul.f32 %v2199, %v118
    %v2202 = vmul.f32 %v2190, %v2190
    %v2203 = vmul.f32 %v2191, %v2191
    %v2204 = vsub.f32 %v2200, %v2202
    %v2205 = vsub.f32 %v2201, %v2203
    %v2206 = vadd.f32 %v2204, 1e-05
    %v2207 = vadd.f32 %v2205, 1e-05
    %v2208 = vrsqrt.pop %v2206
    %v2209 = vrsqrt.pop %v2207
    %v2210 = vsub.f32 %v2174, %v2190
    %v2211 = vsub.f32 %v2175, %v2191
    %v2212 = vlaneseq
    %v2213 = vshrl.u32 %v2212, 7
    %v2214 = vsub.s32 0, %v2213
    %v2215 = vrot.slane %v2177, %v2214
    %v2216 = vmul.f32 %v2208, %v2215
    %v2217 = vmul.f32 %v2209, %v2215
    %v2218 = vmul.f32 %v2210, %v2216
    %v2219 = vmul.f32 %v2211, %v2217
    %v2220 = vlaneseq
    %v2221 = vshrl.u32 %v2220, 7
    %v2222 = vsub.s32 0, %v2221
    %v2223 = vrot.slane %v2178, %v2222
    %v2224 = vadd.f32 %v2218, %v2223
    %v2225 = vadd.f32 %v2219, %v2223
    %v2226 = vpack.c.bf16 %v2225, %v2224
    %v2227 = vld [vmem:[%s2176] sm:$0x1]
    %v2228 = vld [vmem:[%s2176 + $0x4] sm:$0x1]
    %v2229 = vld [vmem:[%s2176 + $0x8] sm:$0x1]
    %s2230 = scalar_lea.vmem %s3, 64
    %v2231 = vld [vmem:[%s2230] sm:$0xf]
    %v2232 = vld [vmem:[%s2230 + $0x4] sm:$0xf]
    %v2233 = vld [vmem:[%s2230 + $0x8] sm:$0xf]
    %v2234 = vld [vmem:[%s2230 + $0xc] sm:$0xf]
    %v2235 = vlaneseq
    %v2236 = vshrl.u32 %v2235, 7
    %v2237 = vsub.s32 0, %v2236
    %v2238 = vrot.slane %v2227, %v2237
    %v2243 = vunpack.c.l.b16 %v2231
    %v2244 = vunpack.c.l.b16 %v2232
    %v2245 = vunpack.c.l.b16 %v2233
    %v2246 = vunpack.c.l.b16 %v2234
    %v2247 = vpack.c.b16 %v2244, %v2243
    %v2248 = vpack.c.b16 %v2246, %v2245
    %v2252 = vsel %vm111, %v2226, 0
    %2254 = vmatprep.subr.bf16.mxu0 0
    %2255 = vmatpush1.bf16.msra.mxu0 %v2247
    %2256 = vmatprep.subr.bf16.mxu0 0
    %2257 = vmatpush1.bf16.msra.mxu0 %v2248
    %2258 = vmatprep.subr.bf16.mxu0 0
    %2259 = vmatpush1.bf16.msra.mxu0 0
    %2260 = vmatprep.subr.bf16.mxu0 0
    %2261 = vmatpush1.bf16.msra.mxu0 0
    %2262 = vmatprep.subr.bf16.mxu0 0
    %2263 = vmatpush1.bf16.msra.mxu0 0
    %2264 = vmatprep.subr.bf16.mxu0 0
    %2265 = vmatpush1.bf16.msra.mxu0 0
    %2266 = vmatprep.subr.bf16.mxu0 0
    %2267 = vmatpush1.bf16.msra.mxu0 0
    %2268 = vmatprep.subr.bf16.mxu0 0
    %2269 = vmatpush1.bf16.msra.mxu0 0
    %2270 = vmatprep.subr.bf16.mxu0 0
    %2271 = vmatpush1.bf16.msra.mxu0 0
    %2272 = vmatprep.subr.bf16.mxu0 0
    %2273 = vmatpush1.bf16.msra.mxu0 0
    %2274 = vmatprep.subr.bf16.mxu0 0
    %2275 = vmatpush1.bf16.msra.mxu0 0
    %2276 = vmatprep.subr.bf16.mxu0 0
    %2277 = vmatpush1.bf16.msra.mxu0 0
    %2278 = vmatprep.subr.bf16.mxu0 0
    %2279 = vmatpush1.bf16.msra.mxu0 0
    %2280 = vmatprep.subr.bf16.mxu0 0
    %2281 = vmatpush1.bf16.msra.mxu0 0
    %2282 = vmatprep.subr.bf16.mxu0 0
    %2283 = vmatpush1.bf16.msra.mxu0 0
    %2284 = vmatprep.subr.bf16.mxu0 0
    %2285 = vmatpush1.bf16.msra.mxu0 0
    %2286 = vmatprep.mubr.bf16.mxu0 0
    %2287 = vmatmul.mubr.bf16.gmra.mrb[0].mxu0 %v2252
    %v2288 = vpop.f32.mrb[0].mxu0
    %v2289 = vadd.f32 %v2238, %v2288
    %v2290 = vpop.f32.mrb[0].mxu0
    %v2291 = vpop.f32.mrb[0].mxu0
    %v2292 = vadd.f32 %v2238, %v2291
    %v2293 = vpop.f32.mrb[0].mxu0
    %2294 = vdwg.mxu0
    %s2295 = scalar_lea.vmem %s4, 64
    %v2296 = vld [vmem:[%s2295] sm:$0xf]
    %v2297 = vld [vmem:[%s2295 + $0x4] sm:$0xf]
    %v2298 = vld [vmem:[%s2295 + $0x8] sm:$0xf]
    %v2299 = vld [vmem:[%s2295 + $0xc] sm:$0xf]
    %v2300 = vlaneseq
    %v2301 = vshrl.u32 %v2300, 7
    %v2302 = vsub.s32 0, %v2301
    %v2303 = vrot.slane %v2228, %v2302
    %v2308 = vunpack.c.l.b16 %v2296
    %v2309 = vunpack.c.l.b16 %v2297
    %v2310 = vunpack.c.l.b16 %v2298
    %v2311 = vunpack.c.l.b16 %v2299
    %v2312 = vpack.c.b16 %v2309, %v2308
    %v2313 = vpack.c.b16 %v2311, %v2310
    %2316 = vmatprep.subr.bf16.mxu0 0
    %2317 = vmatpush1.bf16.msra.mxu0 %v2312
    %2318 = vmatprep.subr.bf16.mxu0 0
    %2319 = vmatpush1.bf16.msra.mxu0 %v2313
    %2320 = vmatprep.subr.bf16.mxu0 0
    %2321 = vmatpush1.bf16.msra.mxu0 0
    %2322 = vmatprep.subr.bf16.mxu0 0
    %2323 = vmatpush1.bf16.msra.mxu0 0
    %2324 = vmatprep.subr.bf16.mxu0 0
    %2325 = vmatpush1.bf16.msra.mxu0 0
    %2326 = vmatprep.subr.bf16.mxu0 0
    %2327 = vmatpush1.bf16.msra.mxu0 0
    %2328 = vmatprep.subr.bf16.mxu0 0
    %2329 = vmatpush1.bf16.msra.mxu0 0
    %2330 = vmatprep.subr.bf16.mxu0 0
    %2331 = vmatpush1.bf16.msra.mxu0 0
    %2332 = vmatprep.subr.bf16.mxu0 0
    %2333 = vmatpush1.bf16.msra.mxu0 0
    %2334 = vmatprep.subr.bf16.mxu0 0
    %2335 = vmatpush1.bf16.msra.mxu0 0
    %2336 = vmatprep.subr.bf16.mxu0 0
    %2337 = vmatpush1.bf16.msra.mxu0 0
    %2338 = vmatprep.subr.bf16.mxu0 0
    %2339 = vmatpush1.bf16.msra.mxu0 0
    %2340 = vmatprep.subr.bf16.mxu0 0
    %2341 = vmatpush1.bf16.msra.mxu0 0
    %2342 = vmatprep.subr.bf16.mxu0 0
    %2343 = vmatpush1.bf16.msra.mxu0 0
    %2344 = vmatprep.subr.bf16.mxu0 0
    %2345 = vmatpush1.bf16.msra.mxu0 0
    %2346 = vmatprep.subr.bf16.mxu0 0
    %2347 = vmatpush1.bf16.msra.mxu0 0
    %2348 = vmatprep.mubr.bf16.mxu0 0
    %2349 = vmatmul.mubr.bf16.gmra.mrb[0].mxu0 %v2252
    %v2350 = vpop.f32.mrb[0].mxu0
    %v2351 = vadd.f32 %v2303, %v2350
    %v2352 = vpop.f32.mrb[0].mxu0
    %v2353 = vpop.f32.mrb[0].mxu0
    %v2354 = vadd.f32 %v2303, %v2353
    %v2355 = vpop.f32.mrb[0].mxu0
    %2356 = vdwg.mxu0
    %s2357 = scalar_lea.vmem %s5, 64
    %v2358 = vld [vmem:[%s2357] sm:$0xf]
    %v2359 = vld [vmem:[%s2357 + $0x4] sm:$0xf]
    %v2360 = vld [vmem:[%s2357 + $0x8] sm:$0xf]
    %v2361 = vld [vmem:[%s2357 + $0xc] sm:$0xf]
    %v2362 = vlaneseq
    %v2363 = vshrl.u32 %v2362, 7
    %v2364 = vsub.s32 0, %v2363
    %v2365 = vrot.slane %v2229, %v2364
    %v2370 = vunpack.c.l.b16 %v2358
    %v2371 = vunpack.c.l.b16 %v2359
    %v2372 = vunpack.c.l.b16 %v2360
    %v2373 = vunpack.c.l.b16 %v2361
    %v2374 = vpack.c.b16 %v2371, %v2370
    %v2375 = vpack.c.b16 %v2373, %v2372
    %2378 = vmatprep.subr.bf16.mxu0 0
    %2379 = vmatpush1.bf16.msra.mxu0 %v2374
    %2380 = vmatprep.subr.bf16.mxu0 0
    %2381 = vmatpush1.bf16.msra.mxu0 %v2375
    %2382 = vmatprep.subr.bf16.mxu0 0
    %2383 = vmatpush1.bf16.msra.mxu0 0
    %2384 = vmatprep.subr.bf16.mxu0 0
    %2385 = vmatpush1.bf16.msra.mxu0 0
    %2386 = vmatprep.subr.bf16.mxu0 0
    %2387 = vmatpush1.bf16.msra.mxu0 0
    %2388 = vmatprep.subr.bf16.mxu0 0
    %2389 = vmatpush1.bf16.msra.mxu0 0
    %2390 = vmatprep.subr.bf16.mxu0 0
    %2391 = vmatpush1.bf16.msra.mxu0 0
    %2392 = vmatprep.subr.bf16.mxu0 0
    %2393 = vmatpush1.bf16.msra.mxu0 0
    %2394 = vmatprep.subr.bf16.mxu0 0
    %2395 = vmatpush1.bf16.msra.mxu0 0
    %2396 = vmatprep.subr.bf16.mxu0 0
    %2397 = vmatpush1.bf16.msra.mxu0 0
    %2398 = vmatprep.subr.bf16.mxu0 0
    %2399 = vmatpush1.bf16.msra.mxu0 0
    %2400 = vmatprep.subr.bf16.mxu0 0
    %2401 = vmatpush1.bf16.msra.mxu0 0
    %2402 = vmatprep.subr.bf16.mxu0 0
    %2403 = vmatpush1.bf16.msra.mxu0 0
    %2404 = vmatprep.subr.bf16.mxu0 0
    %2405 = vmatpush1.bf16.msra.mxu0 0
    %2406 = vmatprep.subr.bf16.mxu0 0
    %2407 = vmatpush1.bf16.msra.mxu0 0
    %2408 = vmatprep.subr.bf16.mxu0 0
    %2409 = vmatpush1.bf16.msra.mxu0 0
    %2410 = vmatprep.mubr.bf16.mxu0 0
    %2411 = vmatmul.mubr.bf16.gmra.mrb[0].mxu0 %v2252
    %v2412 = vpop.f32.mrb[0].mxu0
    %v2413 = vadd.f32 %v2365, %v2412
    %v2414 = vpop.f32.mrb[0].mxu0
    %v2415 = vpop.f32.mrb[0].mxu0
    %v2416 = vadd.f32 %v2365, %v2415
    %v2417 = vpop.f32.mrb[0].mxu0
    %2418 = vdwg.mxu0
    %v2419 = vpack.c.bf16 %v2289, %v2289
    %v2420 = vpack.c.bf16 %v2292, %v2292
    %v2421 = vpack.c.bf16 %v2351, %v2351
    %v2422 = vpack.c.bf16 %v2354, %v2354
    %v2423 = vpack.c.bf16 %v2413, %v2413
    %v2424 = vpack.c.bf16 %v2416, %v2416
    %v2426 = vsel %vm351, %v2419, 0
    %v2429 = vsel %vm351, %v2421, 0
    %2431 = vmatprep.subr.bf16.mxu0 0
    %2432 = vmatpush1.bf16.xpose.msra.mxu0 %v2429
    %2433 = vmatprep.subr.bf16.mxu0 0
    %2434 = vmatpush1.bf16.xpose.msra.mxu0 0
    %2435 = vmatprep.subr.bf16.mxu0 0
    %2436 = vmatpush1.bf16.xpose.msra.mxu0 0
    %2437 = vmatprep.subr.bf16.mxu0 0
    %2438 = vmatpush1.bf16.xpose.msra.mxu0 0
    %2439 = vmatprep.subr.bf16.mxu0 0
    %2440 = vmatpush1.bf16.xpose.msra.mxu0 0
    %2441 = vmatprep.subr.bf16.mxu0 0
    %2442 = vmatpush1.bf16.xpose.msra.mxu0 0
    %2443 = vmatprep.subr.bf16.mxu0 0
    %2444 = vmatpush1.bf16.xpose.msra.mxu0 0
    %2445 = vmatprep.subr.bf16.mxu0 0
    %2446 = vmatpush1.bf16.xpose.msra.mxu0 0
    %2447 = vmatprep.subr.bf16.mxu0 0
    %2448 = vmatpush1.bf16.xpose.msra.mxu0 0
    %2449 = vmatprep.subr.bf16.mxu0 0
    %2450 = vmatpush1.bf16.xpose.msra.mxu0 0
    %2451 = vmatprep.subr.bf16.mxu0 0
    %2452 = vmatpush1.bf16.xpose.msra.mxu0 0
    %2453 = vmatprep.subr.bf16.mxu0 0
    %2454 = vmatpush1.bf16.xpose.msra.mxu0 0
    %2455 = vmatprep.subr.bf16.mxu0 0
    %2456 = vmatpush1.bf16.xpose.msra.mxu0 0
    %2457 = vmatprep.subr.bf16.mxu0 0
    %2458 = vmatpush1.bf16.xpose.msra.mxu0 0
    %2459 = vmatprep.subr.bf16.mxu0 0
    %2460 = vmatpush1.bf16.xpose.msra.mxu0 0
    %2461 = vmatprep.subr.bf16.mxu0 0
    %2462 = vmatpush1.bf16.xpose.msra.mxu0 0
    %2463 = vmatprep.mubr.bf16.mxu0 0
    %2464 = vmatmul.mubr.bf16.gmra.mrb[0].mxu0 %v2426
    %v2465 = vpop.f32.mrb[0].mxu0
    %v2466 = vadd.f32 0.0, %v2465
    %v2467 = vpop.f32.mrb[0].mxu0
    %v2468 = vpop.f32.mrb[0].mxu0
    %v2469 = vpop.f32.mrb[0].mxu0
    %2470 = vdwg.mxu0
    %v2472 = vsel %vm351, %v2420, 0
    %v2475 = vsel %vm351, %v2422, 0
    %2477 = vmatprep.subr.bf16.mxu0 0
    %2478 = vmatpush1.bf16.xpose.msra.mxu0 %v2475
    %2479 = vmatprep.subr.bf16.mxu0 0
    %2480 = vmatpush1.bf16.xpose.msra.mxu0 0
    %2481 = vmatprep.subr.bf16.mxu0 0
    %2482 = vmatpush1.bf16.xpose.msra.mxu0 0
    %2483 = vmatprep.subr.bf16.mxu0 0
    %2484 = vmatpush1.bf16.xpose.msra.mxu0 0
    %2485 = vmatprep.subr.bf16.mxu0 0
    %2486 = vmatpush1.bf16.xpose.msra.mxu0 0
    %2487 = vmatprep.subr.bf16.mxu0 0
    %2488 = vmatpush1.bf16.xpose.msra.mxu0 0
    %2489 = vmatprep.subr.bf16.mxu0 0
    %2490 = vmatpush1.bf16.xpose.msra.mxu0 0
    %2491 = vmatprep.subr.bf16.mxu0 0
    %2492 = vmatpush1.bf16.xpose.msra.mxu0 0
    %2493 = vmatprep.subr.bf16.mxu0 0
    %2494 = vmatpush1.bf16.xpose.msra.mxu0 0
    %2495 = vmatprep.subr.bf16.mxu0 0
    %2496 = vmatpush1.bf16.xpose.msra.mxu0 0
    %2497 = vmatprep.subr.bf16.mxu0 0
    %2498 = vmatpush1.bf16.xpose.msra.mxu0 0
    %2499 = vmatprep.subr.bf16.mxu0 0
    %2500 = vmatpush1.bf16.xpose.msra.mxu0 0
    %2501 = vmatprep.subr.bf16.mxu0 0
    %2502 = vmatpush1.bf16.xpose.msra.mxu0 0
    %2503 = vmatprep.subr.bf16.mxu0 0
    %2504 = vmatpush1.bf16.xpose.msra.mxu0 0
    %2505 = vmatprep.subr.bf16.mxu0 0
    %2506 = vmatpush1.bf16.xpose.msra.mxu0 0
    %2507 = vmatprep.subr.bf16.mxu0 0
    %2508 = vmatpush1.bf16.xpose.msra.mxu0 0
    %2509 = vmatprep.mubr.bf16.mxu0 0
    %2510 = vmatmul.mubr.bf16.gmra.mrb[0].mxu0 %v2472
    %v2511 = vpop.f32.mrb[0].mxu0
    %v2512 = vadd.f32 0.0, %v2511
    %v2513 = vpop.f32.mrb[0].mxu0
    %v2514 = vpop.f32.mrb[0].mxu0
    %v2515 = vpop.f32.mrb[0].mxu0
    %2516 = vdwg.mxu0
    %v2517 = vld [vmem:[%s2176 + $0x1] sm:$0x1]
    %v2518 = vld [vmem:[%s2176 + $0x5] sm:$0x1]
    %v2519 = vld [vmem:[%s2176 + $0x9] sm:$0x1]
    %s2520 = scalar_lea.vmem %s3, 80
    %v2521 = vld [vmem:[%s2520] sm:$0xf]
    %v2522 = vld [vmem:[%s2520 + $0x4] sm:$0xf]
    %v2523 = vld [vmem:[%s2520 + $0x8] sm:$0xf]
    %v2524 = vld [vmem:[%s2520 + $0xc] sm:$0xf]
    %v2525 = vlaneseq
    %v2526 = vshrl.u32 %v2525, 7
    %v2527 = vsub.s32 0, %v2526
    %v2528 = vrot.slane %v2517, %v2527
    %v2533 = vunpack.c.l.b16 %v2521
    %v2534 = vunpack.c.l.b16 %v2522
    %v2535 = vunpack.c.l.b16 %v2523
    %v2536 = vunpack.c.l.b16 %v2524
    %v2537 = vpack.c.b16 %v2534, %v2533
    %v2538 = vpack.c.b16 %v2536, %v2535
    %2541 = vmatprep.subr.bf16.mxu0 0
    %2542 = vmatpush1.bf16.msra.mxu0 %v2537
    %2543 = vmatprep.subr.bf16.mxu0 0
    %2544 = vmatpush1.bf16.msra.mxu0 %v2538
    %2545 = vmatprep.subr.bf16.mxu0 0
    %2546 = vmatpush1.bf16.msra.mxu0 0
    %2547 = vmatprep.subr.bf16.mxu0 0
    %2548 = vmatpush1.bf16.msra.mxu0 0
    %2549 = vmatprep.subr.bf16.mxu0 0
    %2550 = vmatpush1.bf16.msra.mxu0 0
    %2551 = vmatprep.subr.bf16.mxu0 0
    %2552 = vmatpush1.bf16.msra.mxu0 0
    %2553 = vmatprep.subr.bf16.mxu0 0
    %2554 = vmatpush1.bf16.msra.mxu0 0
    %2555 = vmatprep.subr.bf16.mxu0 0
    %2556 = vmatpush1.bf16.msra.mxu0 0
    %2557 = vmatprep.subr.bf16.mxu0 0
    %2558 = vmatpush1.bf16.msra.mxu0 0
    %2559 = vmatprep.subr.bf16.mxu0 0
    %2560 = vmatpush1.bf16.msra.mxu0 0
    %2561 = vmatprep.subr.bf16.mxu0 0
    %2562 = vmatpush1.bf16.msra.mxu0 0
    %2563 = vmatprep.subr.bf16.mxu0 0
    %2564 = vmatpush1.bf16.msra.mxu0 0
    %2565 = vmatprep.subr.bf16.mxu0 0
    %2566 = vmatpush1.bf16.msra.mxu0 0
    %2567 = vmatprep.subr.bf16.mxu0 0
    %2568 = vmatpush1.bf16.msra.mxu0 0
    %2569 = vmatprep.subr.bf16.mxu0 0
    %2570 = vmatpush1.bf16.msra.mxu0 0
    %2571 = vmatprep.subr.bf16.mxu0 0
    %2572 = vmatpush1.bf16.msra.mxu0 0
    %2573 = vmatprep.mubr.bf16.mxu0 0
    %2574 = vmatmul.mubr.bf16.gmra.mrb[0].mxu0 %v2252
    %v2575 = vpop.f32.mrb[0].mxu0
    %v2576 = vadd.f32 %v2528, %v2575
    %v2577 = vpop.f32.mrb[0].mxu0
    %v2578 = vpop.f32.mrb[0].mxu0
    %v2579 = vadd.f32 %v2528, %v2578
    %v2580 = vpop.f32.mrb[0].mxu0
    %2581 = vdwg.mxu0
    %s2582 = scalar_lea.vmem %s4, 80
    %v2583 = vld [vmem:[%s2582] sm:$0xf]
    %v2584 = vld [vmem:[%s2582 + $0x4] sm:$0xf]
    %v2585 = vld [vmem:[%s2582 + $0x8] sm:$0xf]
    %v2586 = vld [vmem:[%s2582 + $0xc] sm:$0xf]
    %v2587 = vlaneseq
    %v2588 = vshrl.u32 %v2587, 7
    %v2589 = vsub.s32 0, %v2588
    %v2590 = vrot.slane %v2518, %v2589
    %v2595 = vunpack.c.l.b16 %v2583
    %v2596 = vunpack.c.l.b16 %v2584
    %v2597 = vunpack.c.l.b16 %v2585
    %v2598 = vunpack.c.l.b16 %v2586
    %v2599 = vpack.c.b16 %v2596, %v2595
    %v2600 = vpack.c.b16 %v2598, %v2597
    %2603 = vmatprep.subr.bf16.mxu0 0
    %2604 = vmatpush1.bf16.msra.mxu0 %v2599
    %2605 = vmatprep.subr.bf16.mxu0 0
    %2606 = vmatpush1.bf16.msra.mxu0 %v2600
    %2607 = vmatprep.subr.bf16.mxu0 0
    %2608 = vmatpush1.bf16.msra.mxu0 0
    %2609 = vmatprep.subr.bf16.mxu0 0
    %2610 = vmatpush1.bf16.msra.mxu0 0
    %2611 = vmatprep.subr.bf16.mxu0 0
    %2612 = vmatpush1.bf16.msra.mxu0 0
    %2613 = vmatprep.subr.bf16.mxu0 0
    %2614 = vmatpush1.bf16.msra.mxu0 0
    %2615 = vmatprep.subr.bf16.mxu0 0
    %2616 = vmatpush1.bf16.msra.mxu0 0
    %2617 = vmatprep.subr.bf16.mxu0 0
    %2618 = vmatpush1.bf16.msra.mxu0 0
    %2619 = vmatprep.subr.bf16.mxu0 0
    %2620 = vmatpush1.bf16.msra.mxu0 0
    %2621 = vmatprep.subr.bf16.mxu0 0
    %2622 = vmatpush1.bf16.msra.mxu0 0
    %2623 = vmatprep.subr.bf16.mxu0 0
    %2624 = vmatpush1.bf16.msra.mxu0 0
    %2625 = vmatprep.subr.bf16.mxu0 0
    %2626 = vmatpush1.bf16.msra.mxu0 0
    %2627 = vmatprep.subr.bf16.mxu0 0
    %2628 = vmatpush1.bf16.msra.mxu0 0
    %2629 = vmatprep.subr.bf16.mxu0 0
    %2630 = vmatpush1.bf16.msra.mxu0 0
    %2631 = vmatprep.subr.bf16.mxu0 0
    %2632 = vmatpush1.bf16.msra.mxu0 0
    %2633 = vmatprep.subr.bf16.mxu0 0
    %2634 = vmatpush1.bf16.msra.mxu0 0
    %2635 = vmatprep.mubr.bf16.mxu0 0
    %2636 = vmatmul.mubr.bf16.gmra.mrb[0].mxu0 %v2252
    %v2637 = vpop.f32.mrb[0].mxu0
    %v2638 = vadd.f32 %v2590, %v2637
    %v2639 = vpop.f32.mrb[0].mxu0
    %v2640 = vpop.f32.mrb[0].mxu0
    %v2641 = vadd.f32 %v2590, %v2640
    %v2642 = vpop.f32.mrb[0].mxu0
    %2643 = vdwg.mxu0
    %s2644 = scalar_lea.vmem %s5, 80
    %v2645 = vld [vmem:[%s2644] sm:$0xf]
    %v2646 = vld [vmem:[%s2644 + $0x4] sm:$0xf]
    %v2647 = vld [vmem:[%s2644 + $0x8] sm:$0xf]
    %v2648 = vld [vmem:[%s2644 + $0xc] sm:$0xf]
    %v2649 = vlaneseq
    %v2650 = vshrl.u32 %v2649, 7
    %v2651 = vsub.s32 0, %v2650
    %v2652 = vrot.slane %v2519, %v2651
    %v2657 = vunpack.c.l.b16 %v2645
    %v2658 = vunpack.c.l.b16 %v2646
    %v2659 = vunpack.c.l.b16 %v2647
    %v2660 = vunpack.c.l.b16 %v2648
    %v2661 = vpack.c.b16 %v2658, %v2657
    %v2662 = vpack.c.b16 %v2660, %v2659
    %2665 = vmatprep.subr.bf16.mxu0 0
    %2666 = vmatpush1.bf16.msra.mxu0 %v2661
    %2667 = vmatprep.subr.bf16.mxu0 0
    %2668 = vmatpush1.bf16.msra.mxu0 %v2662
    %2669 = vmatprep.subr.bf16.mxu0 0
    %2670 = vmatpush1.bf16.msra.mxu0 0
    %2671 = vmatprep.subr.bf16.mxu0 0
    %2672 = vmatpush1.bf16.msra.mxu0 0
    %2673 = vmatprep.subr.bf16.mxu0 0
    %2674 = vmatpush1.bf16.msra.mxu0 0
    %2675 = vmatprep.subr.bf16.mxu0 0
    %2676 = vmatpush1.bf16.msra.mxu0 0
    %2677 = vmatprep.subr.bf16.mxu0 0
    %2678 = vmatpush1.bf16.msra.mxu0 0
    %2679 = vmatprep.subr.bf16.mxu0 0
    %2680 = vmatpush1.bf16.msra.mxu0 0
    %2681 = vmatprep.subr.bf16.mxu0 0
    %2682 = vmatpush1.bf16.msra.mxu0 0
    %2683 = vmatprep.subr.bf16.mxu0 0
    %2684 = vmatpush1.bf16.msra.mxu0 0
    %2685 = vmatprep.subr.bf16.mxu0 0
    %2686 = vmatpush1.bf16.msra.mxu0 0
    %2687 = vmatprep.subr.bf16.mxu0 0
    %2688 = vmatpush1.bf16.msra.mxu0 0
    %2689 = vmatprep.subr.bf16.mxu0 0
    %2690 = vmatpush1.bf16.msra.mxu0 0
    %2691 = vmatprep.subr.bf16.mxu0 0
    %2692 = vmatpush1.bf16.msra.mxu0 0
    %2693 = vmatprep.subr.bf16.mxu0 0
    %2694 = vmatpush1.bf16.msra.mxu0 0
    %2695 = vmatprep.subr.bf16.mxu0 0
    %2696 = vmatpush1.bf16.msra.mxu0 0
    %2697 = vmatprep.mubr.bf16.mxu0 0
    %2698 = vmatmul.mubr.bf16.gmra.mrb[0].mxu0 %v2252
    %v2699 = vpop.f32.mrb[0].mxu0
    %v2700 = vadd.f32 %v2652, %v2699
    %v2701 = vpop.f32.mrb[0].mxu0
    %v2702 = vpop.f32.mrb[0].mxu0
    %v2703 = vadd.f32 %v2652, %v2702
    %v2704 = vpop.f32.mrb[0].mxu0
    %2705 = vdwg.mxu0
    %v2706 = vpack.c.bf16 %v2576, %v2576
    %v2707 = vpack.c.bf16 %v2579, %v2579
    %v2708 = vpack.c.bf16 %v2638, %v2638
    %v2709 = vpack.c.bf16 %v2641, %v2641
    %v2710 = vpack.c.bf16 %v2700, %v2700
    %v2711 = vpack.c.bf16 %v2703, %v2703
    %v2713 = vsel %vm351, %v2706, 0
    %v2716 = vsel %vm351, %v2708, 0
    %2718 = vmatprep.subr.bf16.mxu0 0
    %2719 = vmatpush1.bf16.xpose.msra.mxu0 %v2716
    %2720 = vmatprep.subr.bf16.mxu0 0
    %2721 = vmatpush1.bf16.xpose.msra.mxu0 0
    %2722 = vmatprep.subr.bf16.mxu0 0
    %2723 = vmatpush1.bf16.xpose.msra.mxu0 0
    %2724 = vmatprep.subr.bf16.mxu0 0
    %2725 = vmatpush1.bf16.xpose.msra.mxu0 0
    %2726 = vmatprep.subr.bf16.mxu0 0
    %2727 = vmatpush1.bf16.xpose.msra.mxu0 0
    %2728 = vmatprep.subr.bf16.mxu0 0
    %2729 = vmatpush1.bf16.xpose.msra.mxu0 0
    %2730 = vmatprep.subr.bf16.mxu0 0
    %2731 = vmatpush1.bf16.xpose.msra.mxu0 0
    %2732 = vmatprep.subr.bf16.mxu0 0
    %2733 = vmatpush1.bf16.xpose.msra.mxu0 0
    %2734 = vmatprep.subr.bf16.mxu0 0
    %2735 = vmatpush1.bf16.xpose.msra.mxu0 0
    %2736 = vmatprep.subr.bf16.mxu0 0
    %2737 = vmatpush1.bf16.xpose.msra.mxu0 0
    %2738 = vmatprep.subr.bf16.mxu0 0
    %2739 = vmatpush1.bf16.xpose.msra.mxu0 0
    %2740 = vmatprep.subr.bf16.mxu0 0
    %2741 = vmatpush1.bf16.xpose.msra.mxu0 0
    %2742 = vmatprep.subr.bf16.mxu0 0
    %2743 = vmatpush1.bf16.xpose.msra.mxu0 0
    %2744 = vmatprep.subr.bf16.mxu0 0
    %2745 = vmatpush1.bf16.xpose.msra.mxu0 0
    %2746 = vmatprep.subr.bf16.mxu0 0
    %2747 = vmatpush1.bf16.xpose.msra.mxu0 0
    %2748 = vmatprep.subr.bf16.mxu0 0
    %2749 = vmatpush1.bf16.xpose.msra.mxu0 0
    %2750 = vmatprep.mubr.bf16.mxu0 0
    %2751 = vmatmul.mubr.bf16.gmra.mrb[0].mxu0 %v2713
    %v2752 = vpop.f32.mrb[0].mxu0
    %v2753 = vadd.f32 0.0, %v2752
    %v2754 = vpop.f32.mrb[0].mxu0
    %v2755 = vpop.f32.mrb[0].mxu0
    %v2756 = vpop.f32.mrb[0].mxu0
    %2757 = vdwg.mxu0
    %v2759 = vsel %vm351, %v2707, 0
    %v2762 = vsel %vm351, %v2709, 0
    %2764 = vmatprep.subr.bf16.mxu0 0
    %2765 = vmatpush1.bf16.xpose.msra.mxu0 %v2762
    %2766 = vmatprep.subr.bf16.mxu0 0
    %2767 = vmatpush1.bf16.xpose.msra.mxu0 0
    %2768 = vmatprep.subr.bf16.mxu0 0
    %2769 = vmatpush1.bf16.xpose.msra.mxu0 0
    %2770 = vmatprep.subr.bf16.mxu0 0
    %2771 = vmatpush1.bf16.xpose.msra.mxu0 0
    %2772 = vmatprep.subr.bf16.mxu0 0
    %2773 = vmatpush1.bf16.xpose.msra.mxu0 0
    %2774 = vmatprep.subr.bf16.mxu0 0
    %2775 = vmatpush1.bf16.xpose.msra.mxu0 0
    %2776 = vmatprep.subr.bf16.mxu0 0
    %2777 = vmatpush1.bf16.xpose.msra.mxu0 0
    %2778 = vmatprep.subr.bf16.mxu0 0
    %2779 = vmatpush1.bf16.xpose.msra.mxu0 0
    %2780 = vmatprep.subr.bf16.mxu0 0
    %2781 = vmatpush1.bf16.xpose.msra.mxu0 0
    %2782 = vmatprep.subr.bf16.mxu0 0
    %2783 = vmatpush1.bf16.xpose.msra.mxu0 0
    %2784 = vmatprep.subr.bf16.mxu0 0
    %2785 = vmatpush1.bf16.xpose.msra.mxu0 0
    %2786 = vmatprep.subr.bf16.mxu0 0
    %2787 = vmatpush1.bf16.xpose.msra.mxu0 0
    %2788 = vmatprep.subr.bf16.mxu0 0
    %2789 = vmatpush1.bf16.xpose.msra.mxu0 0
    %2790 = vmatprep.subr.bf16.mxu0 0
    %2791 = vmatpush1.bf16.xpose.msra.mxu0 0
    %2792 = vmatprep.subr.bf16.mxu0 0
    %2793 = vmatpush1.bf16.xpose.msra.mxu0 0
    %2794 = vmatprep.subr.bf16.mxu0 0
    %2795 = vmatpush1.bf16.xpose.msra.mxu0 0
    %2796 = vmatprep.mubr.bf16.mxu0 0
    %2797 = vmatmul.mubr.bf16.gmra.mrb[0].mxu0 %v2759
    %v2798 = vpop.f32.mrb[0].mxu0
    %v2799 = vadd.f32 0.0, %v2798
    %v2800 = vpop.f32.mrb[0].mxu0
    %v2801 = vpop.f32.mrb[0].mxu0
    %v2802 = vpop.f32.mrb[0].mxu0
    %2803 = vdwg.mxu0
    %v2804 = vld [vmem:[%s2176 + $0x2] sm:$0x1]
    %v2805 = vld [vmem:[%s2176 + $0x6] sm:$0x1]
    %v2806 = vld [vmem:[%s2176 + $0xa] sm:$0x1]
    %s2807 = scalar_lea.vmem %s3, 96
    %v2808 = vld [vmem:[%s2807] sm:$0xf]
    %v2809 = vld [vmem:[%s2807 + $0x4] sm:$0xf]
    %v2810 = vld [vmem:[%s2807 + $0x8] sm:$0xf]
    %v2811 = vld [vmem:[%s2807 + $0xc] sm:$0xf]
    %v2812 = vlaneseq
    %v2813 = vshrl.u32 %v2812, 7
    %v2814 = vsub.s32 0, %v2813
    %v2815 = vrot.slane %v2804, %v2814
    %v2820 = vunpack.c.l.b16 %v2808
    %v2821 = vunpack.c.l.b16 %v2809
    %v2822 = vunpack.c.l.b16 %v2810
    %v2823 = vunpack.c.l.b16 %v2811
    %v2824 = vpack.c.b16 %v2821, %v2820
    %v2825 = vpack.c.b16 %v2823, %v2822
    %2828 = vmatprep.subr.bf16.mxu0 0
    %2829 = vmatpush1.bf16.msra.mxu0 %v2824
    %2830 = vmatprep.subr.bf16.mxu0 0
    %2831 = vmatpush1.bf16.msra.mxu0 %v2825
    %2832 = vmatprep.subr.bf16.mxu0 0
    %2833 = vmatpush1.bf16.msra.mxu0 0
    %2834 = vmatprep.subr.bf16.mxu0 0
    %2835 = vmatpush1.bf16.msra.mxu0 0
    %2836 = vmatprep.subr.bf16.mxu0 0
    %2837 = vmatpush1.bf16.msra.mxu0 0
    %2838 = vmatprep.subr.bf16.mxu0 0
    %2839 = vmatpush1.bf16.msra.mxu0 0
    %2840 = vmatprep.subr.bf16.mxu0 0
    %2841 = vmatpush1.bf16.msra.mxu0 0
    %2842 = vmatprep.subr.bf16.mxu0 0
    %2843 = vmatpush1.bf16.msra.mxu0 0
    %2844 = vmatprep.subr.bf16.mxu0 0
    %2845 = vmatpush1.bf16.msra.mxu0 0
    %2846 = vmatprep.subr.bf16.mxu0 0
    %2847 = vmatpush1.bf16.msra.mxu0 0
    %2848 = vmatprep.subr.bf16.mxu0 0
    %2849 = vmatpush1.bf16.msra.mxu0 0
    %2850 = vmatprep.subr.bf16.mxu0 0
    %2851 = vmatpush1.bf16.msra.mxu0 0
    %2852 = vmatprep.subr.bf16.mxu0 0
    %2853 = vmatpush1.bf16.msra.mxu0 0
    %2854 = vmatprep.subr.bf16.mxu0 0
    %2855 = vmatpush1.bf16.msra.mxu0 0
    %2856 = vmatprep.subr.bf16.mxu0 0
    %2857 = vmatpush1.bf16.msra.mxu0 0
    %2858 = vmatprep.subr.bf16.mxu0 0
    %2859 = vmatpush1.bf16.msra.mxu0 0
    %2860 = vmatprep.mubr.bf16.mxu0 0
    %2861 = vmatmul.mubr.bf16.gmra.mrb[0].mxu0 %v2252
    %v2862 = vpop.f32.mrb[0].mxu0
    %v2863 = vadd.f32 %v2815, %v2862
    %v2864 = vpop.f32.mrb[0].mxu0
    %v2865 = vpop.f32.mrb[0].mxu0
    %v2866 = vadd.f32 %v2815, %v2865
    %v2867 = vpop.f32.mrb[0].mxu0
    %2868 = vdwg.mxu0
    %s2869 = scalar_lea.vmem %s4, 96
    %v2870 = vld [vmem:[%s2869] sm:$0xf]
    %v2871 = vld [vmem:[%s2869 + $0x4] sm:$0xf]
    %v2872 = vld [vmem:[%s2869 + $0x8] sm:$0xf]
    %v2873 = vld [vmem:[%s2869 + $0xc] sm:$0xf]
    %v2874 = vlaneseq
    %v2875 = vshrl.u32 %v2874, 7
    %v2876 = vsub.s32 0, %v2875
    %v2877 = vrot.slane %v2805, %v2876
    %v2882 = vunpack.c.l.b16 %v2870
    %v2883 = vunpack.c.l.b16 %v2871
    %v2884 = vunpack.c.l.b16 %v2872
    %v2885 = vunpack.c.l.b16 %v2873
    %v2886 = vpack.c.b16 %v2883, %v2882
    %v2887 = vpack.c.b16 %v2885, %v2884
    %2890 = vmatprep.subr.bf16.mxu0 0
    %2891 = vmatpush1.bf16.msra.mxu0 %v2886
    %2892 = vmatprep.subr.bf16.mxu0 0
    %2893 = vmatpush1.bf16.msra.mxu0 %v2887
    %2894 = vmatprep.subr.bf16.mxu0 0
    %2895 = vmatpush1.bf16.msra.mxu0 0
    %2896 = vmatprep.subr.bf16.mxu0 0
    %2897 = vmatpush1.bf16.msra.mxu0 0
    %2898 = vmatprep.subr.bf16.mxu0 0
    %2899 = vmatpush1.bf16.msra.mxu0 0
    %2900 = vmatprep.subr.bf16.mxu0 0
    %2901 = vmatpush1.bf16.msra.mxu0 0
    %2902 = vmatprep.subr.bf16.mxu0 0
    %2903 = vmatpush1.bf16.msra.mxu0 0
    %2904 = vmatprep.subr.bf16.mxu0 0
    %2905 = vmatpush1.bf16.msra.mxu0 0
    %2906 = vmatprep.subr.bf16.mxu0 0
    %2907 = vmatpush1.bf16.msra.mxu0 0
    %2908 = vmatprep.subr.bf16.mxu0 0
    %2909 = vmatpush1.bf16.msra.mxu0 0
    %2910 = vmatprep.subr.bf16.mxu0 0
    %2911 = vmatpush1.bf16.msra.mxu0 0
    %2912 = vmatprep.subr.bf16.mxu0 0
    %2913 = vmatpush1.bf16.msra.mxu0 0
    %2914 = vmatprep.subr.bf16.mxu0 0
    %2915 = vmatpush1.bf16.msra.mxu0 0
    %2916 = vmatprep.subr.bf16.mxu0 0
    %2917 = vmatpush1.bf16.msra.mxu0 0
    %2918 = vmatprep.subr.bf16.mxu0 0
    %2919 = vmatpush1.bf16.msra.mxu0 0
    %2920 = vmatprep.subr.bf16.mxu0 0
    %2921 = vmatpush1.bf16.msra.mxu0 0
    %2922 = vmatprep.mubr.bf16.mxu0 0
    %2923 = vmatmul.mubr.bf16.gmra.mrb[0].mxu0 %v2252
    %v2924 = vpop.f32.mrb[0].mxu0
    %v2925 = vadd.f32 %v2877, %v2924
    %v2926 = vpop.f32.mrb[0].mxu0
    %v2927 = vpop.f32.mrb[0].mxu0
    %v2928 = vadd.f32 %v2877, %v2927
    %v2929 = vpop.f32.mrb[0].mxu0
    %2930 = vdwg.mxu0
    %s2931 = scalar_lea.vmem %s5, 96
    %v2932 = vld [vmem:[%s2931] sm:$0xf]
    %v2933 = vld [vmem:[%s2931 + $0x4] sm:$0xf]
    %v2934 = vld [vmem:[%s2931 + $0x8] sm:$0xf]
    %v2935 = vld [vmem:[%s2931 + $0xc] sm:$0xf]
    %v2936 = vlaneseq
    %v2937 = vshrl.u32 %v2936, 7
    %v2938 = vsub.s32 0, %v2937
    %v2939 = vrot.slane %v2806, %v2938
    %v2944 = vunpack.c.l.b16 %v2932
    %v2945 = vunpack.c.l.b16 %v2933
    %v2946 = vunpack.c.l.b16 %v2934
    %v2947 = vunpack.c.l.b16 %v2935
    %v2948 = vpack.c.b16 %v2945, %v2944
    %v2949 = vpack.c.b16 %v2947, %v2946
    %2952 = vmatprep.subr.bf16.mxu0 0
    %2953 = vmatpush1.bf16.msra.mxu0 %v2948
    %2954 = vmatprep.subr.bf16.mxu0 0
    %2955 = vmatpush1.bf16.msra.mxu0 %v2949
    %2956 = vmatprep.subr.bf16.mxu0 0
    %2957 = vmatpush1.bf16.msra.mxu0 0
    %2958 = vmatprep.subr.bf16.mxu0 0
    %2959 = vmatpush1.bf16.msra.mxu0 0
    %2960 = vmatprep.subr.bf16.mxu0 0
    %2961 = vmatpush1.bf16.msra.mxu0 0
    %2962 = vmatprep.subr.bf16.mxu0 0
    %2963 = vmatpush1.bf16.msra.mxu0 0
    %2964 = vmatprep.subr.bf16.mxu0 0
    %2965 = vmatpush1.bf16.msra.mxu0 0
    %2966 = vmatprep.subr.bf16.mxu0 0
    %2967 = vmatpush1.bf16.msra.mxu0 0
    %2968 = vmatprep.subr.bf16.mxu0 0
    %2969 = vmatpush1.bf16.msra.mxu0 0
    %2970 = vmatprep.subr.bf16.mxu0 0
    %2971 = vmatpush1.bf16.msra.mxu0 0
    %2972 = vmatprep.subr.bf16.mxu0 0
    %2973 = vmatpush1.bf16.msra.mxu0 0
    %2974 = vmatprep.subr.bf16.mxu0 0
    %2975 = vmatpush1.bf16.msra.mxu0 0
    %2976 = vmatprep.subr.bf16.mxu0 0
    %2977 = vmatpush1.bf16.msra.mxu0 0
    %2978 = vmatprep.subr.bf16.mxu0 0
    %2979 = vmatpush1.bf16.msra.mxu0 0
    %2980 = vmatprep.subr.bf16.mxu0 0
    %2981 = vmatpush1.bf16.msra.mxu0 0
    %2982 = vmatprep.subr.bf16.mxu0 0
    %2983 = vmatpush1.bf16.msra.mxu0 0
    %2984 = vmatprep.mubr.bf16.mxu0 0
    %2985 = vmatmul.mubr.bf16.gmra.mrb[0].mxu0 %v2252
    %v2986 = vpop.f32.mrb[0].mxu0
    %v2987 = vadd.f32 %v2939, %v2986
    %v2988 = vpop.f32.mrb[0].mxu0
    %v2989 = vpop.f32.mrb[0].mxu0
    %v2990 = vadd.f32 %v2939, %v2989
    %v2991 = vpop.f32.mrb[0].mxu0
    %2992 = vdwg.mxu0
    %v2993 = vpack.c.bf16 %v2863, %v2863
    %v2994 = vpack.c.bf16 %v2866, %v2866
    %v2995 = vpack.c.bf16 %v2925, %v2925
    %v2996 = vpack.c.bf16 %v2928, %v2928
    %v2997 = vpack.c.bf16 %v2987, %v2987
    %v2998 = vpack.c.bf16 %v2990, %v2990
    %v3000 = vsel %vm351, %v2993, 0
    %v3003 = vsel %vm351, %v2995, 0
    %3005 = vmatprep.subr.bf16.mxu0 0
    %3006 = vmatpush1.bf16.xpose.msra.mxu0 %v3003
    %3007 = vmatprep.subr.bf16.mxu0 0
    %3008 = vmatpush1.bf16.xpose.msra.mxu0 0
    %3009 = vmatprep.subr.bf16.mxu0 0
    %3010 = vmatpush1.bf16.xpose.msra.mxu0 0
    %3011 = vmatprep.subr.bf16.mxu0 0
    %3012 = vmatpush1.bf16.xpose.msra.mxu0 0
    %3013 = vmatprep.subr.bf16.mxu0 0
    %3014 = vmatpush1.bf16.xpose.msra.mxu0 0
    %3015 = vmatprep.subr.bf16.mxu0 0
    %3016 = vmatpush1.bf16.xpose.msra.mxu0 0
    %3017 = vmatprep.subr.bf16.mxu0 0
    %3018 = vmatpush1.bf16.xpose.msra.mxu0 0
    %3019 = vmatprep.subr.bf16.mxu0 0
    %3020 = vmatpush1.bf16.xpose.msra.mxu0 0
    %3021 = vmatprep.subr.bf16.mxu0 0
    %3022 = vmatpush1.bf16.xpose.msra.mxu0 0
    %3023 = vmatprep.subr.bf16.mxu0 0
    %3024 = vmatpush1.bf16.xpose.msra.mxu0 0
    %3025 = vmatprep.subr.bf16.mxu0 0
    %3026 = vmatpush1.bf16.xpose.msra.mxu0 0
    %3027 = vmatprep.subr.bf16.mxu0 0
    %3028 = vmatpush1.bf16.xpose.msra.mxu0 0
    %3029 = vmatprep.subr.bf16.mxu0 0
    %3030 = vmatpush1.bf16.xpose.msra.mxu0 0
    %3031 = vmatprep.subr.bf16.mxu0 0
    %3032 = vmatpush1.bf16.xpose.msra.mxu0 0
    %3033 = vmatprep.subr.bf16.mxu0 0
    %3034 = vmatpush1.bf16.xpose.msra.mxu0 0
    %3035 = vmatprep.subr.bf16.mxu0 0
    %3036 = vmatpush1.bf16.xpose.msra.mxu0 0
    %3037 = vmatprep.mubr.bf16.mxu0 0
    %3038 = vmatmul.mubr.bf16.gmra.mrb[0].mxu0 %v3000
    %v3039 = vpop.f32.mrb[0].mxu0
    %v3040 = vadd.f32 0.0, %v3039
    %v3041 = vpop.f32.mrb[0].mxu0
    %v3042 = vpop.f32.mrb[0].mxu0
    %v3043 = vpop.f32.mrb[0].mxu0
    %3044 = vdwg.mxu0
    %v3046 = vsel %vm351, %v2994, 0
    %v3049 = vsel %vm351, %v2996, 0
    %3051 = vmatprep.subr.bf16.mxu0 0
    %3052 = vmatpush1.bf16.xpose.msra.mxu0 %v3049
    %3053 = vmatprep.subr.bf16.mxu0 0
    %3054 = vmatpush1.bf16.xpose.msra.mxu0 0
    %3055 = vmatprep.subr.bf16.mxu0 0
    %3056 = vmatpush1.bf16.xpose.msra.mxu0 0
    %3057 = vmatprep.subr.bf16.mxu0 0
    %3058 = vmatpush1.bf16.xpose.msra.mxu0 0
    %3059 = vmatprep.subr.bf16.mxu0 0
    %3060 = vmatpush1.bf16.xpose.msra.mxu0 0
    %3061 = vmatprep.subr.bf16.mxu0 0
    %3062 = vmatpush1.bf16.xpose.msra.mxu0 0
    %3063 = vmatprep.subr.bf16.mxu0 0
    %3064 = vmatpush1.bf16.xpose.msra.mxu0 0
    %3065 = vmatprep.subr.bf16.mxu0 0
    %3066 = vmatpush1.bf16.xpose.msra.mxu0 0
    %3067 = vmatprep.subr.bf16.mxu0 0
    %3068 = vmatpush1.bf16.xpose.msra.mxu0 0
    %3069 = vmatprep.subr.bf16.mxu0 0
    %3070 = vmatpush1.bf16.xpose.msra.mxu0 0
    %3071 = vmatprep.subr.bf16.mxu0 0
    %3072 = vmatpush1.bf16.xpose.msra.mxu0 0
    %3073 = vmatprep.subr.bf16.mxu0 0
    %3074 = vmatpush1.bf16.xpose.msra.mxu0 0
    %3075 = vmatprep.subr.bf16.mxu0 0
    %3076 = vmatpush1.bf16.xpose.msra.mxu0 0
    %3077 = vmatprep.subr.bf16.mxu0 0
    %3078 = vmatpush1.bf16.xpose.msra.mxu0 0
    %3079 = vmatprep.subr.bf16.mxu0 0
    %3080 = vmatpush1.bf16.xpose.msra.mxu0 0
    %3081 = vmatprep.subr.bf16.mxu0 0
    %3082 = vmatpush1.bf16.xpose.msra.mxu0 0
    %3083 = vmatprep.mubr.bf16.mxu0 0
    %3084 = vmatmul.mubr.bf16.gmra.mrb[0].mxu0 %v3046
    %v3085 = vpop.f32.mrb[0].mxu0
    %v3086 = vadd.f32 0.0, %v3085
    %v3087 = vpop.f32.mrb[0].mxu0
    %v3088 = vpop.f32.mrb[0].mxu0
    %v3089 = vpop.f32.mrb[0].mxu0
    %3090 = vdwg.mxu0
    %v3091 = vld [vmem:[%s2176 + $0x3] sm:$0x1]
    %v3092 = vld [vmem:[%s2176 + $0x7] sm:$0x1]
    %v3093 = vld [vmem:[%s2176 + $0xb] sm:$0x1]
    %s3094 = scalar_lea.vmem %s3, 112
    %v3095 = vld [vmem:[%s3094] sm:$0xf]
    %v3096 = vld [vmem:[%s3094 + $0x4] sm:$0xf]
    %v3097 = vld [vmem:[%s3094 + $0x8] sm:$0xf]
    %v3098 = vld [vmem:[%s3094 + $0xc] sm:$0xf]
    %v3099 = vlaneseq
    %v3100 = vshrl.u32 %v3099, 7
    %v3101 = vsub.s32 0, %v3100
    %v3102 = vrot.slane %v3091, %v3101
    %v3107 = vunpack.c.l.b16 %v3095
    %v3108 = vunpack.c.l.b16 %v3096
    %v3109 = vunpack.c.l.b16 %v3097
    %v3110 = vunpack.c.l.b16 %v3098
    %v3111 = vpack.c.b16 %v3108, %v3107
    %v3112 = vpack.c.b16 %v3110, %v3109
    %3115 = vmatprep.subr.bf16.mxu0 0
    %3116 = vmatpush1.bf16.msra.mxu0 %v3111
    %3117 = vmatprep.subr.bf16.mxu0 0
    %3118 = vmatpush1.bf16.msra.mxu0 %v3112
    %3119 = vmatprep.subr.bf16.mxu0 0
    %3120 = vmatpush1.bf16.msra.mxu0 0
    %3121 = vmatprep.subr.bf16.mxu0 0
    %3122 = vmatpush1.bf16.msra.mxu0 0
    %3123 = vmatprep.subr.bf16.mxu0 0
    %3124 = vmatpush1.bf16.msra.mxu0 0
    %3125 = vmatprep.subr.bf16.mxu0 0
    %3126 = vmatpush1.bf16.msra.mxu0 0
    %3127 = vmatprep.subr.bf16.mxu0 0
    %3128 = vmatpush1.bf16.msra.mxu0 0
    %3129 = vmatprep.subr.bf16.mxu0 0
    %3130 = vmatpush1.bf16.msra.mxu0 0
    %3131 = vmatprep.subr.bf16.mxu0 0
    %3132 = vmatpush1.bf16.msra.mxu0 0
    %3133 = vmatprep.subr.bf16.mxu0 0
    %3134 = vmatpush1.bf16.msra.mxu0 0
    %3135 = vmatprep.subr.bf16.mxu0 0
    %3136 = vmatpush1.bf16.msra.mxu0 0
    %3137 = vmatprep.subr.bf16.mxu0 0
    %3138 = vmatpush1.bf16.msra.mxu0 0
    %3139 = vmatprep.subr.bf16.mxu0 0
    %3140 = vmatpush1.bf16.msra.mxu0 0
    %3141 = vmatprep.subr.bf16.mxu0 0
    %3142 = vmatpush1.bf16.msra.mxu0 0
    %3143 = vmatprep.subr.bf16.mxu0 0
    %3144 = vmatpush1.bf16.msra.mxu0 0
    %3145 = vmatprep.subr.bf16.mxu0 0
    %3146 = vmatpush1.bf16.msra.mxu0 0
    %3147 = vmatprep.mubr.bf16.mxu0 0
    %3148 = vmatmul.mubr.bf16.gmra.mrb[0].mxu0 %v2252
    %v3149 = vpop.f32.mrb[0].mxu0
    %v3150 = vadd.f32 %v3102, %v3149
    %v3151 = vpop.f32.mrb[0].mxu0
    %v3152 = vpop.f32.mrb[0].mxu0
    %v3153 = vadd.f32 %v3102, %v3152
    %v3154 = vpop.f32.mrb[0].mxu0
    %3155 = vdwg.mxu0
    %s3156 = scalar_lea.vmem %s4, 112
    %v3157 = vld [vmem:[%s3156] sm:$0xf]
    %v3158 = vld [vmem:[%s3156 + $0x4] sm:$0xf]
    %v3159 = vld [vmem:[%s3156 + $0x8] sm:$0xf]
    %v3160 = vld [vmem:[%s3156 + $0xc] sm:$0xf]
    %v3161 = vlaneseq
    %v3162 = vshrl.u32 %v3161, 7
    %v3163 = vsub.s32 0, %v3162
    %v3164 = vrot.slane %v3092, %v3163
    %v3169 = vunpack.c.l.b16 %v3157
    %v3170 = vunpack.c.l.b16 %v3158
    %v3171 = vunpack.c.l.b16 %v3159
    %v3172 = vunpack.c.l.b16 %v3160
    %v3173 = vpack.c.b16 %v3170, %v3169
    %v3174 = vpack.c.b16 %v3172, %v3171
    %3177 = vmatprep.subr.bf16.mxu0 0
    %3178 = vmatpush1.bf16.msra.mxu0 %v3173
    %3179 = vmatprep.subr.bf16.mxu0 0
    %3180 = vmatpush1.bf16.msra.mxu0 %v3174
    %3181 = vmatprep.subr.bf16.mxu0 0
    %3182 = vmatpush1.bf16.msra.mxu0 0
    %3183 = vmatprep.subr.bf16.mxu0 0
    %3184 = vmatpush1.bf16.msra.mxu0 0
    %3185 = vmatprep.subr.bf16.mxu0 0
    %3186 = vmatpush1.bf16.msra.mxu0 0
    %3187 = vmatprep.subr.bf16.mxu0 0
    %3188 = vmatpush1.bf16.msra.mxu0 0
    %3189 = vmatprep.subr.bf16.mxu0 0
    %3190 = vmatpush1.bf16.msra.mxu0 0
    %3191 = vmatprep.subr.bf16.mxu0 0
    %3192 = vmatpush1.bf16.msra.mxu0 0
    %3193 = vmatprep.subr.bf16.mxu0 0
    %3194 = vmatpush1.bf16.msra.mxu0 0
    %3195 = vmatprep.subr.bf16.mxu0 0
    %3196 = vmatpush1.bf16.msra.mxu0 0
    %3197 = vmatprep.subr.bf16.mxu0 0
    %3198 = vmatpush1.bf16.msra.mxu0 0
    %3199 = vmatprep.subr.bf16.mxu0 0
    %3200 = vmatpush1.bf16.msra.mxu0 0
    %3201 = vmatprep.subr.bf16.mxu0 0
    %3202 = vmatpush1.bf16.msra.mxu0 0
    %3203 = vmatprep.subr.bf16.mxu0 0
    %3204 = vmatpush1.bf16.msra.mxu0 0
    %3205 = vmatprep.subr.bf16.mxu0 0
    %3206 = vmatpush1.bf16.msra.mxu0 0
    %3207 = vmatprep.subr.bf16.mxu0 0
    %3208 = vmatpush1.bf16.msra.mxu0 0
    %3209 = vmatprep.mubr.bf16.mxu0 0
    %3210 = vmatmul.mubr.bf16.gmra.mrb[0].mxu0 %v2252
    %v3211 = vpop.f32.mrb[0].mxu0
    %v3212 = vadd.f32 %v3164, %v3211
    %v3213 = vpop.f32.mrb[0].mxu0
    %v3214 = vpop.f32.mrb[0].mxu0
    %v3215 = vadd.f32 %v3164, %v3214
    %v3216 = vpop.f32.mrb[0].mxu0
    %3217 = vdwg.mxu0
    %s3218 = scalar_lea.vmem %s5, 112
    %v3219 = vld [vmem:[%s3218] sm:$0xf]
    %v3220 = vld [vmem:[%s3218 + $0x4] sm:$0xf]
    %v3221 = vld [vmem:[%s3218 + $0x8] sm:$0xf]
    %v3222 = vld [vmem:[%s3218 + $0xc] sm:$0xf]
    %v3223 = vlaneseq
    %v3224 = vshrl.u32 %v3223, 7
    %v3225 = vsub.s32 0, %v3224
    %v3226 = vrot.slane %v3093, %v3225
    %v3231 = vunpack.c.l.b16 %v3219
    %v3232 = vunpack.c.l.b16 %v3220
    %v3233 = vunpack.c.l.b16 %v3221
    %v3234 = vunpack.c.l.b16 %v3222
    %v3235 = vpack.c.b16 %v3232, %v3231
    %v3236 = vpack.c.b16 %v3234, %v3233
    %3239 = vmatprep.subr.bf16.mxu0 0
    %3240 = vmatpush1.bf16.msra.mxu0 %v3235
    %3241 = vmatprep.subr.bf16.mxu0 0
    %3242 = vmatpush1.bf16.msra.mxu0 %v3236
    %3243 = vmatprep.subr.bf16.mxu0 0
    %3244 = vmatpush1.bf16.msra.mxu0 0
    %3245 = vmatprep.subr.bf16.mxu0 0
    %3246 = vmatpush1.bf16.msra.mxu0 0
    %3247 = vmatprep.subr.bf16.mxu0 0
    %3248 = vmatpush1.bf16.msra.mxu0 0
    %3249 = vmatprep.subr.bf16.mxu0 0
    %3250 = vmatpush1.bf16.msra.mxu0 0
    %3251 = vmatprep.subr.bf16.mxu0 0
    %3252 = vmatpush1.bf16.msra.mxu0 0
    %3253 = vmatprep.subr.bf16.mxu0 0
    %3254 = vmatpush1.bf16.msra.mxu0 0
    %3255 = vmatprep.subr.bf16.mxu0 0
    %3256 = vmatpush1.bf16.msra.mxu0 0
    %3257 = vmatprep.subr.bf16.mxu0 0
    %3258 = vmatpush1.bf16.msra.mxu0 0
    %3259 = vmatprep.subr.bf16.mxu0 0
    %3260 = vmatpush1.bf16.msra.mxu0 0
    %3261 = vmatprep.subr.bf16.mxu0 0
    %3262 = vmatpush1.bf16.msra.mxu0 0
    %3263 = vmatprep.subr.bf16.mxu0 0
    %3264 = vmatpush1.bf16.msra.mxu0 0
    %3265 = vmatprep.subr.bf16.mxu0 0
    %3266 = vmatpush1.bf16.msra.mxu0 0
    %3267 = vmatprep.subr.bf16.mxu0 0
    %3268 = vmatpush1.bf16.msra.mxu0 0
    %3269 = vmatprep.subr.bf16.mxu0 0
    %3270 = vmatpush1.bf16.msra.mxu0 0
    %3271 = vmatprep.mubr.bf16.mxu0 0
    %3272 = vmatmul.mubr.bf16.gmra.mrb[0].mxu0 %v2252
    %v3273 = vpop.f32.mrb[0].mxu0
    %v3274 = vadd.f32 %v3226, %v3273
    %v3275 = vpop.f32.mrb[0].mxu0
    %v3276 = vpop.f32.mrb[0].mxu0
    %v3277 = vadd.f32 %v3226, %v3276
    %v3278 = vpop.f32.mrb[0].mxu0
    %3279 = vdwg.mxu0
    %v3280 = vpack.c.bf16 %v3150, %v3150
    %v3281 = vpack.c.bf16 %v3153, %v3153
    %v3282 = vpack.c.bf16 %v3212, %v3212
    %v3283 = vpack.c.bf16 %v3215, %v3215
    %v3284 = vpack.c.bf16 %v3274, %v3274
    %v3285 = vpack.c.bf16 %v3277, %v3277
    %v3287 = vsel %vm351, %v3280, 0
    %v3290 = vsel %vm351, %v3282, 0
    %3292 = vmatprep.subr.bf16.mxu0 0
    %3293 = vmatpush1.bf16.xpose.msra.mxu0 %v3290
    %3294 = vmatprep.subr.bf16.mxu0 0
    %3295 = vmatpush1.bf16.xpose.msra.mxu0 0
    %3296 = vmatprep.subr.bf16.mxu0 0
    %3297 = vmatpush1.bf16.xpose.msra.mxu0 0
    %3298 = vmatprep.subr.bf16.mxu0 0
    %3299 = vmatpush1.bf16.xpose.msra.mxu0 0
    %3300 = vmatprep.subr.bf16.mxu0 0
    %3301 = vmatpush1.bf16.xpose.msra.mxu0 0
    %3302 = vmatprep.subr.bf16.mxu0 0
    %3303 = vmatpush1.bf16.xpose.msra.mxu0 0
    %3304 = vmatprep.subr.bf16.mxu0 0
    %3305 = vmatpush1.bf16.xpose.msra.mxu0 0
    %3306 = vmatprep.subr.bf16.mxu0 0
    %3307 = vmatpush1.bf16.xpose.msra.mxu0 0
    %3308 = vmatprep.subr.bf16.mxu0 0
    %3309 = vmatpush1.bf16.xpose.msra.mxu0 0
    %3310 = vmatprep.subr.bf16.mxu0 0
    %3311 = vmatpush1.bf16.xpose.msra.mxu0 0
    %3312 = vmatprep.subr.bf16.mxu0 0
    %3313 = vmatpush1.bf16.xpose.msra.mxu0 0
    %3314 = vmatprep.subr.bf16.mxu0 0
    %3315 = vmatpush1.bf16.xpose.msra.mxu0 0
    %3316 = vmatprep.subr.bf16.mxu0 0
    %3317 = vmatpush1.bf16.xpose.msra.mxu0 0
    %3318 = vmatprep.subr.bf16.mxu0 0
    %3319 = vmatpush1.bf16.xpose.msra.mxu0 0
    %3320 = vmatprep.subr.bf16.mxu0 0
    %3321 = vmatpush1.bf16.xpose.msra.mxu0 0
    %3322 = vmatprep.subr.bf16.mxu0 0
    %3323 = vmatpush1.bf16.xpose.msra.mxu0 0
    %3324 = vmatprep.mubr.bf16.mxu0 0
    %3325 = vmatmul.mubr.bf16.gmra.mrb[0].mxu0 %v3287
    %v3326 = vpop.f32.mrb[0].mxu0
    %v3327 = vadd.f32 0.0, %v3326
    %v3328 = vpop.f32.mrb[0].mxu0
    %v3329 = vpop.f32.mrb[0].mxu0
    %v3330 = vpop.f32.mrb[0].mxu0
    %3331 = vdwg.mxu0
    %v3333 = vsel %vm351, %v3281, 0
    %v3336 = vsel %vm351, %v3283, 0
    %3338 = vmatprep.subr.bf16.mxu0 0
    %3339 = vmatpush1.bf16.xpose.msra.mxu0 %v3336
    %3340 = vmatprep.subr.bf16.mxu0 0
    %3341 = vmatpush1.bf16.xpose.msra.mxu0 0
    %3342 = vmatprep.subr.bf16.mxu0 0
    %3343 = vmatpush1.bf16.xpose.msra.mxu0 0
    %3344 = vmatprep.subr.bf16.mxu0 0
    %3345 = vmatpush1.bf16.xpose.msra.mxu0 0
    %3346 = vmatprep.subr.bf16.mxu0 0
    %3347 = vmatpush1.bf16.xpose.msra.mxu0 0
    %3348 = vmatprep.subr.bf16.mxu0 0
    %3349 = vmatpush1.bf16.xpose.msra.mxu0 0
    %3350 = vmatprep.subr.bf16.mxu0 0
    %3351 = vmatpush1.bf16.xpose.msra.mxu0 0
    %3352 = vmatprep.subr.bf16.mxu0 0
    %3353 = vmatpush1.bf16.xpose.msra.mxu0 0
    %3354 = vmatprep.subr.bf16.mxu0 0
    %3355 = vmatpush1.bf16.xpose.msra.mxu0 0
    %3356 = vmatprep.subr.bf16.mxu0 0
    %3357 = vmatpush1.bf16.xpose.msra.mxu0 0
    %3358 = vmatprep.subr.bf16.mxu0 0
    %3359 = vmatpush1.bf16.xpose.msra.mxu0 0
    %3360 = vmatprep.subr.bf16.mxu0 0
    %3361 = vmatpush1.bf16.xpose.msra.mxu0 0
    %3362 = vmatprep.subr.bf16.mxu0 0
    %3363 = vmatpush1.bf16.xpose.msra.mxu0 0
    %3364 = vmatprep.subr.bf16.mxu0 0
    %3365 = vmatpush1.bf16.xpose.msra.mxu0 0
    %3366 = vmatprep.subr.bf16.mxu0 0
    %3367 = vmatpush1.bf16.xpose.msra.mxu0 0
    %3368 = vmatprep.subr.bf16.mxu0 0
    %3369 = vmatpush1.bf16.xpose.msra.mxu0 0
    %3370 = vmatprep.mubr.bf16.mxu0 0
    %3371 = vmatmul.mubr.bf16.gmra.mrb[0].mxu0 %v3333
    %v3372 = vpop.f32.mrb[0].mxu0
    %v3373 = vadd.f32 0.0, %v3372
    %v3374 = vpop.f32.mrb[0].mxu0
    %v3375 = vpop.f32.mrb[0].mxu0
    %v3376 = vpop.f32.mrb[0].mxu0
    %3377 = vdwg.mxu0
    %v3378 = vsel %vm351, %v2466, -inf
    %3379 = vmax.xlane.f32.xlu0 %v3378
    %v3380 = vpop.xlane.xlu0 %3379
    %v3381 = vsel %vm351, %v2512, -inf
    %3382 = vmax.xlane.f32.xlu0 %v3381
    %v3383 = vpop.xlane.xlu0 %3382
    %v3384 = vsel %vm351, %v2753, -inf
    %3385 = vmax.xlane.f32.xlu0 %v3384
    %v3386 = vpop.xlane.xlu0 %3385
    %v3387 = vsel %vm351, %v2799, -inf
    %3388 = vmax.xlane.f32.xlu0 %v3387
    %v3389 = vpop.xlane.xlu0 %3388
    %v3390 = vsel %vm351, %v3040, -inf
    %3391 = vmax.xlane.f32.xlu0 %v3390
    %v3392 = vpop.xlane.xlu0 %3391
    %v3393 = vsel %vm351, %v3086, -inf
    %3394 = vmax.xlane.f32.xlu0 %v3393
    %v3395 = vpop.xlane.xlu0 %3394
    %v3396 = vsel %vm351, %v3327, -inf
    %3397 = vmax.xlane.f32.xlu0 %v3396
    %v3398 = vpop.xlane.xlu0 %3397
    %v3399 = vsel %vm351, %v3373, -inf
    %3400 = vmax.xlane.f32.xlu0 %v3399
    %v3401 = vpop.xlane.xlu0 %3400
    %v3402 = vsub.f32 %v2466, %v3380
    %v3403 = vsub.f32 %v2512, %v3383
    %v3404 = vsub.f32 %v2753, %v3386
    %v3405 = vsub.f32 %v2799, %v3389
    %v3406 = vsub.f32 %v3040, %v3392
    %v3407 = vsub.f32 %v3086, %v3395
    %v3408 = vsub.f32 %v3327, %v3398
    %v3409 = vsub.f32 %v3373, %v3401
    %v3410 = vmul.f32 %v3402, 1.442695
    %v3411 = vpow.pop %v3410
    %v3412 = vmul.f32 %v3403, 1.442695
    %v3413 = vpow.pop %v3412
    %v3414 = vmul.f32 %v3404, 1.442695
    %v3415 = vpow.pop %v3414
    %v3416 = vmul.f32 %v3405, 1.442695
    %v3417 = vpow.pop %v3416
    %v3418 = vmul.f32 %v3406, 1.442695
    %v3419 = vpow.pop %v3418
    %v3420 = vmul.f32 %v3407, 1.442695
    %v3421 = vpow.pop %v3420
    %v3422 = vmul.f32 %v3408, 1.442695
    %v3423 = vpow.pop %v3422
    %v3424 = vmul.f32 %v3409, 1.442695
    %v3425 = vpow.pop %v3424
    %v3426 = vsel %vm351, %v3411, 0.0
    %3427 = vadd.xlane.f32.xlu0 %v3426
    %v3428 = vpop.xlane.xlu0 %3427
    %v3429 = vsel %vm351, %v3413, 0.0
    %3430 = vadd.xlane.f32.xlu0 %v3429
    %v3431 = vpop.xlane.xlu0 %3430
    %v3432 = vsel %vm351, %v3415, 0.0
    %3433 = vadd.xlane.f32.xlu0 %v3432
    %v3434 = vpop.xlane.xlu0 %3433
    %v3435 = vsel %vm351, %v3417, 0.0
    %3436 = vadd.xlane.f32.xlu0 %v3435
    %v3437 = vpop.xlane.xlu0 %3436
    %v3438 = vsel %vm351, %v3419, 0.0
    %3439 = vadd.xlane.f32.xlu0 %v3438
    %v3440 = vpop.xlane.xlu0 %3439
    %v3441 = vsel %vm351, %v3421, 0.0
    %3442 = vadd.xlane.f32.xlu0 %v3441
    %v3443 = vpop.xlane.xlu0 %3442
    %v3444 = vsel %vm351, %v3423, 0.0
    %3445 = vadd.xlane.f32.xlu0 %v3444
    %v3446 = vpop.xlane.xlu0 %3445
    %v3447 = vsel %vm351, %v3425, 0.0
    %3448 = vadd.xlane.f32.xlu0 %v3447
    %v3449 = vpop.xlane.xlu0 %3448
    %v3450 = vrcp.pop %v3428
    %v3451 = vrcp.pop %v3431
    %v3452 = vrcp.pop %v3434
    %v3453 = vrcp.pop %v3437
    %v3454 = vrcp.pop %v3440
    %v3455 = vrcp.pop %v3443
    %v3456 = vrcp.pop %v3446
    %v3457 = vrcp.pop %v3449
    %v3458 = vmul.f32 %v3411, %v3450
    %v3459 = vmul.f32 %v3413, %v3451
    %v3460 = vmul.f32 %v3415, %v3452
    %v3461 = vmul.f32 %v3417, %v3453
    %v3462 = vmul.f32 %v3419, %v3454
    %v3463 = vmul.f32 %v3421, %v3455
    %v3464 = vmul.f32 %v3423, %v3456
    %v3465 = vmul.f32 %v3425, %v3457
    %v3466 = vpack.c.bf16 %v3458, %v3458
    %v3467 = vpack.c.bf16 %v3459, %v3459
    %v3468 = vpack.c.bf16 %v3460, %v3460
    %v3469 = vpack.c.bf16 %v3461, %v3461
    %v3470 = vpack.c.bf16 %v3462, %v3462
    %v3471 = vpack.c.bf16 %v3463, %v3463
    %v3472 = vpack.c.bf16 %v3464, %v3464
    %v3473 = vpack.c.bf16 %v3465, %v3465
    %v3474 = vlaneseq
    %v3475 = vshrl.u32 %v3474, 7
    %v3476 = vsub.s32 0, %v3475
    %v3477 = vrot.slane %v2179, %v3476
    %v3479 = vsel %vm351, %v3466, 0
    %v3482 = vsel %vm1408, %v2423, 0
    %3484 = vmatprep.subr.bf16.mxu0 0
    %3485 = vmatpush1.bf16.msra.mxu0 %v3482
    %3486 = vmatprep.subr.bf16.mxu0 0
    %3487 = vmatpush1.bf16.msra.mxu0 0
    %3488 = vmatprep.subr.bf16.mxu0 0
    %3489 = vmatpush1.bf16.msra.mxu0 0
    %3490 = vmatprep.subr.bf16.mxu0 0
    %3491 = vmatpush1.bf16.msra.mxu0 0
    %3492 = vmatprep.subr.bf16.mxu0 0
    %3493 = vmatpush1.bf16.msra.mxu0 0
    %3494 = vmatprep.subr.bf16.mxu0 0
    %3495 = vmatpush1.bf16.msra.mxu0 0
    %3496 = vmatprep.subr.bf16.mxu0 0
    %3497 = vmatpush1.bf16.msra.mxu0 0
    %3498 = vmatprep.subr.bf16.mxu0 0
    %3499 = vmatpush1.bf16.msra.mxu0 0
    %3500 = vmatprep.subr.bf16.mxu0 0
    %3501 = vmatpush1.bf16.msra.mxu0 0
    %3502 = vmatprep.subr.bf16.mxu0 0
    %3503 = vmatpush1.bf16.msra.mxu0 0
    %3504 = vmatprep.subr.bf16.mxu0 0
    %3505 = vmatpush1.bf16.msra.mxu0 0
    %3506 = vmatprep.subr.bf16.mxu0 0
    %3507 = vmatpush1.bf16.msra.mxu0 0
    %3508 = vmatprep.subr.bf16.mxu0 0
    %3509 = vmatpush1.bf16.msra.mxu0 0
    %3510 = vmatprep.subr.bf16.mxu0 0
    %3511 = vmatpush1.bf16.msra.mxu0 0
    %3512 = vmatprep.subr.bf16.mxu0 0
    %3513 = vmatpush1.bf16.msra.mxu0 0
    %3514 = vmatprep.subr.bf16.mxu0 0
    %3515 = vmatpush1.bf16.msra.mxu0 0
    %3516 = vmatprep.mubr.bf16.mxu0 0
    %3517 = vmatmul.mubr.bf16.gmra.mrb[0].mxu0 %v3479
    %v3518 = vpop.f32.mrb[0].mxu0
    %v3519 = vadd.f32 0.0, %v3518
    %v3520 = vpop.f32.mrb[0].mxu0
    %v3521 = vpop.f32.mrb[0].mxu0
    %v3522 = vpop.f32.mrb[0].mxu0
    %3523 = vdwg.mxu0
    %v3525 = vsel %vm351, %v3467, 0
    %v3528 = vsel %vm1408, %v2424, 0
    %3530 = vmatprep.subr.bf16.mxu0 0
    %3531 = vmatpush1.bf16.msra.mxu0 %v3528
    %3532 = vmatprep.subr.bf16.mxu0 0
    %3533 = vmatpush1.bf16.msra.mxu0 0
    %3534 = vmatprep.subr.bf16.mxu0 0
    %3535 = vmatpush1.bf16.msra.mxu0 0
    %3536 = vmatprep.subr.bf16.mxu0 0
    %3537 = vmatpush1.bf16.msra.mxu0 0
    %3538 = vmatprep.subr.bf16.mxu0 0
    %3539 = vmatpush1.bf16.msra.mxu0 0
    %3540 = vmatprep.subr.bf16.mxu0 0
    %3541 = vmatpush1.bf16.msra.mxu0 0
    %3542 = vmatprep.subr.bf16.mxu0 0
    %3543 = vmatpush1.bf16.msra.mxu0 0
    %3544 = vmatprep.subr.bf16.mxu0 0
    %3545 = vmatpush1.bf16.msra.mxu0 0
    %3546 = vmatprep.subr.bf16.mxu0 0
    %3547 = vmatpush1.bf16.msra.mxu0 0
    %3548 = vmatprep.subr.bf16.mxu0 0
    %3549 = vmatpush1.bf16.msra.mxu0 0
    %3550 = vmatprep.subr.bf16.mxu0 0
    %3551 = vmatpush1.bf16.msra.mxu0 0
    %3552 = vmatprep.subr.bf16.mxu0 0
    %3553 = vmatpush1.bf16.msra.mxu0 0
    %3554 = vmatprep.subr.bf16.mxu0 0
    %3555 = vmatpush1.bf16.msra.mxu0 0
    %3556 = vmatprep.subr.bf16.mxu0 0
    %3557 = vmatpush1.bf16.msra.mxu0 0
    %3558 = vmatprep.subr.bf16.mxu0 0
    %3559 = vmatpush1.bf16.msra.mxu0 0
    %3560 = vmatprep.subr.bf16.mxu0 0
    %3561 = vmatpush1.bf16.msra.mxu0 0
    %3562 = vmatprep.mubr.bf16.mxu0 0
    %3563 = vmatmul.mubr.bf16.gmra.mrb[0].mxu0 %v3525
    %v3564 = vpop.f32.mrb[0].mxu0
    %v3565 = vadd.f32 0.0, %v3564
    %v3566 = vpop.f32.mrb[0].mxu0
    %v3567 = vpop.f32.mrb[0].mxu0
    %v3568 = vpop.f32.mrb[0].mxu0
    %3569 = vdwg.mxu0
    %v3570 = vpack.c.bf16 %v3565, %v3519
    %s3571 = scalar_lea.vmem %s6, 16
    %v3572 = vld [vmem:[%s3571] sm:$0xf]
    %v3574 = vsel %vm351, %v3570, 0
    %v3577 = vsel %vm1408, %v3572, 0
    %3579 = vmatprep.subr.bf16.mxu0 0
    %3580 = vmatpush1.bf16.msra.mxu0 %v3577
    %3581 = vmatprep.subr.bf16.mxu0 0
    %3582 = vmatpush1.bf16.msra.mxu0 0
    %3583 = vmatprep.subr.bf16.mxu0 0
    %3584 = vmatpush1.bf16.msra.mxu0 0
    %3585 = vmatprep.subr.bf16.mxu0 0
    %3586 = vmatpush1.bf16.msra.mxu0 0
    %3587 = vmatprep.subr.bf16.mxu0 0
    %3588 = vmatpush1.bf16.msra.mxu0 0
    %3589 = vmatprep.subr.bf16.mxu0 0
    %3590 = vmatpush1.bf16.msra.mxu0 0
    %3591 = vmatprep.subr.bf16.mxu0 0
    %3592 = vmatpush1.bf16.msra.mxu0 0
    %3593 = vmatprep.subr.bf16.mxu0 0
    %3594 = vmatpush1.bf16.msra.mxu0 0
    %3595 = vmatprep.subr.bf16.mxu0 0
    %3596 = vmatpush1.bf16.msra.mxu0 0
    %3597 = vmatprep.subr.bf16.mxu0 0
    %3598 = vmatpush1.bf16.msra.mxu0 0
    %3599 = vmatprep.subr.bf16.mxu0 0
    %3600 = vmatpush1.bf16.msra.mxu0 0
    %3601 = vmatprep.subr.bf16.mxu0 0
    %3602 = vmatpush1.bf16.msra.mxu0 0
    %3603 = vmatprep.subr.bf16.mxu0 0
    %3604 = vmatpush1.bf16.msra.mxu0 0
    %3605 = vmatprep.subr.bf16.mxu0 0
    %3606 = vmatpush1.bf16.msra.mxu0 0
    %3607 = vmatprep.subr.bf16.mxu0 0
    %3608 = vmatpush1.bf16.msra.mxu0 0
    %3609 = vmatprep.subr.bf16.mxu0 0
    %3610 = vmatpush1.bf16.msra.mxu0 0
    %3611 = vmatprep.mubr.bf16.mxu0 0
    %3612 = vmatmul.mubr.bf16.gmra.mrb[0].mxu0 %v3574
    %v3613 = vpop.f32.mrb[0].mxu0
    %v3614 = vadd.f32 0.0, %v3613
    %v3615 = vpop.f32.mrb[0].mxu0
    %v3616 = vpop.f32.mrb[0].mxu0
    %v3617 = vadd.f32 0.0, %v3616
    %v3618 = vpop.f32.mrb[0].mxu0
    %3619 = vdwg.mxu0
    %v3620 = vadd.f32 %v3477, %v3614
    %v3621 = vadd.f32 %v3477, %v3617
    %v3623 = vsel %vm351, %v3468, 0
    %v3626 = vsel %vm1408, %v2710, 0
    %3628 = vmatprep.subr.bf16.mxu0 0
    %3629 = vmatpush1.bf16.msra.mxu0 %v3626
    %3630 = vmatprep.subr.bf16.mxu0 0
    %3631 = vmatpush1.bf16.msra.mxu0 0
    %3632 = vmatprep.subr.bf16.mxu0 0
    %3633 = vmatpush1.bf16.msra.mxu0 0
    %3634 = vmatprep.subr.bf16.mxu0 0
    %3635 = vmatpush1.bf16.msra.mxu0 0
    %3636 = vmatprep.subr.bf16.mxu0 0
    %3637 = vmatpush1.bf16.msra.mxu0 0
    %3638 = vmatprep.subr.bf16.mxu0 0
    %3639 = vmatpush1.bf16.msra.mxu0 0
    %3640 = vmatprep.subr.bf16.mxu0 0
    %3641 = vmatpush1.bf16.msra.mxu0 0
    %3642 = vmatprep.subr.bf16.mxu0 0
    %3643 = vmatpush1.bf16.msra.mxu0 0
    %3644 = vmatprep.subr.bf16.mxu0 0
    %3645 = vmatpush1.bf16.msra.mxu0 0
    %3646 = vmatprep.subr.bf16.mxu0 0
    %3647 = vmatpush1.bf16.msra.mxu0 0
    %3648 = vmatprep.subr.bf16.mxu0 0
    %3649 = vmatpush1.bf16.msra.mxu0 0
    %3650 = vmatprep.subr.bf16.mxu0 0
    %3651 = vmatpush1.bf16.msra.mxu0 0
    %3652 = vmatprep.subr.bf16.mxu0 0
    %3653 = vmatpush1.bf16.msra.mxu0 0
    %3654 = vmatprep.subr.bf16.mxu0 0
    %3655 = vmatpush1.bf16.msra.mxu0 0
    %3656 = vmatprep.subr.bf16.mxu0 0
    %3657 = vmatpush1.bf16.msra.mxu0 0
    %3658 = vmatprep.subr.bf16.mxu0 0
    %3659 = vmatpush1.bf16.msra.mxu0 0
    %3660 = vmatprep.mubr.bf16.mxu0 0
    %3661 = vmatmul.mubr.bf16.gmra.mrb[0].mxu0 %v3623
    %v3662 = vpop.f32.mrb[0].mxu0
    %v3663 = vadd.f32 0.0, %v3662
    %v3664 = vpop.f32.mrb[0].mxu0
    %v3665 = vpop.f32.mrb[0].mxu0
    %v3666 = vpop.f32.mrb[0].mxu0
    %3667 = vdwg.mxu0
    %v3669 = vsel %vm351, %v3469, 0
    %v3672 = vsel %vm1408, %v2711, 0
    %3674 = vmatprep.subr.bf16.mxu0 0
    %3675 = vmatpush1.bf16.msra.mxu0 %v3672
    %3676 = vmatprep.subr.bf16.mxu0 0
    %3677 = vmatpush1.bf16.msra.mxu0 0
    %3678 = vmatprep.subr.bf16.mxu0 0
    %3679 = vmatpush1.bf16.msra.mxu0 0
    %3680 = vmatprep.subr.bf16.mxu0 0
    %3681 = vmatpush1.bf16.msra.mxu0 0
    %3682 = vmatprep.subr.bf16.mxu0 0
    %3683 = vmatpush1.bf16.msra.mxu0 0
    %3684 = vmatprep.subr.bf16.mxu0 0
    %3685 = vmatpush1.bf16.msra.mxu0 0
    %3686 = vmatprep.subr.bf16.mxu0 0
    %3687 = vmatpush1.bf16.msra.mxu0 0
    %3688 = vmatprep.subr.bf16.mxu0 0
    %3689 = vmatpush1.bf16.msra.mxu0 0
    %3690 = vmatprep.subr.bf16.mxu0 0
    %3691 = vmatpush1.bf16.msra.mxu0 0
    %3692 = vmatprep.subr.bf16.mxu0 0
    %3693 = vmatpush1.bf16.msra.mxu0 0
    %3694 = vmatprep.subr.bf16.mxu0 0
    %3695 = vmatpush1.bf16.msra.mxu0 0
    %3696 = vmatprep.subr.bf16.mxu0 0
    %3697 = vmatpush1.bf16.msra.mxu0 0
    %3698 = vmatprep.subr.bf16.mxu0 0
    %3699 = vmatpush1.bf16.msra.mxu0 0
    %3700 = vmatprep.subr.bf16.mxu0 0
    %3701 = vmatpush1.bf16.msra.mxu0 0
    %3702 = vmatprep.subr.bf16.mxu0 0
    %3703 = vmatpush1.bf16.msra.mxu0 0
    %3704 = vmatprep.subr.bf16.mxu0 0
    %3705 = vmatpush1.bf16.msra.mxu0 0
    %3706 = vmatprep.mubr.bf16.mxu0 0
    %3707 = vmatmul.mubr.bf16.gmra.mrb[0].mxu0 %v3669
    %v3708 = vpop.f32.mrb[0].mxu0
    %v3709 = vadd.f32 0.0, %v3708
    %v3710 = vpop.f32.mrb[0].mxu0
    %v3711 = vpop.f32.mrb[0].mxu0
    %v3712 = vpop.f32.mrb[0].mxu0
    %3713 = vdwg.mxu0
    %v3714 = vpack.c.bf16 %v3709, %v3663
    %s3715 = scalar_lea.vmem %s6, 20
    %v3716 = vld [vmem:[%s3715] sm:$0xf]
    %v3718 = vsel %vm351, %v3714, 0
    %v3721 = vsel %vm1408, %v3716, 0
    %3723 = vmatprep.subr.bf16.mxu0 0
    %3724 = vmatpush1.bf16.msra.mxu0 %v3721
    %3725 = vmatprep.subr.bf16.mxu0 0
    %3726 = vmatpush1.bf16.msra.mxu0 0
    %3727 = vmatprep.subr.bf16.mxu0 0
    %3728 = vmatpush1.bf16.msra.mxu0 0
    %3729 = vmatprep.subr.bf16.mxu0 0
    %3730 = vmatpush1.bf16.msra.mxu0 0
    %3731 = vmatprep.subr.bf16.mxu0 0
    %3732 = vmatpush1.bf16.msra.mxu0 0
    %3733 = vmatprep.subr.bf16.mxu0 0
    %3734 = vmatpush1.bf16.msra.mxu0 0
    %3735 = vmatprep.subr.bf16.mxu0 0
    %3736 = vmatpush1.bf16.msra.mxu0 0
    %3737 = vmatprep.subr.bf16.mxu0 0
    %3738 = vmatpush1.bf16.msra.mxu0 0
    %3739 = vmatprep.subr.bf16.mxu0 0
    %3740 = vmatpush1.bf16.msra.mxu0 0
    %3741 = vmatprep.subr.bf16.mxu0 0
    %3742 = vmatpush1.bf16.msra.mxu0 0
    %3743 = vmatprep.subr.bf16.mxu0 0
    %3744 = vmatpush1.bf16.msra.mxu0 0
    %3745 = vmatprep.subr.bf16.mxu0 0
    %3746 = vmatpush1.bf16.msra.mxu0 0
    %3747 = vmatprep.subr.bf16.mxu0 0
    %3748 = vmatpush1.bf16.msra.mxu0 0
    %3749 = vmatprep.subr.bf16.mxu0 0
    %3750 = vmatpush1.bf16.msra.mxu0 0
    %3751 = vmatprep.subr.bf16.mxu0 0
    %3752 = vmatpush1.bf16.msra.mxu0 0
    %3753 = vmatprep.subr.bf16.mxu0 0
    %3754 = vmatpush1.bf16.msra.mxu0 0
    %3755 = vmatprep.mubr.bf16.mxu0 0
    %3756 = vmatmul.mubr.bf16.gmra.mrb[0].mxu0 %v3718
    %v3757 = vpop.f32.mrb[0].mxu0
    %v3758 = vadd.f32 0.0, %v3757
    %v3759 = vpop.f32.mrb[0].mxu0
    %v3760 = vpop.f32.mrb[0].mxu0
    %v3761 = vadd.f32 0.0, %v3760
    %v3762 = vpop.f32.mrb[0].mxu0
    %3763 = vdwg.mxu0
    %v3764 = vadd.f32 %v3620, %v3758
    %v3765 = vadd.f32 %v3621, %v3761
    %v3767 = vsel %vm351, %v3470, 0
    %v3770 = vsel %vm1408, %v2997, 0
    %3772 = vmatprep.subr.bf16.mxu0 0
    %3773 = vmatpush1.bf16.msra.mxu0 %v3770
    %3774 = vmatprep.subr.bf16.mxu0 0
    %3775 = vmatpush1.bf16.msra.mxu0 0
    %3776 = vmatprep.subr.bf16.mxu0 0
    %3777 = vmatpush1.bf16.msra.mxu0 0
    %3778 = vmatprep.subr.bf16.mxu0 0
    %3779 = vmatpush1.bf16.msra.mxu0 0
    %3780 = vmatprep.subr.bf16.mxu0 0
    %3781 = vmatpush1.bf16.msra.mxu0 0
    %3782 = vmatprep.subr.bf16.mxu0 0
    %3783 = vmatpush1.bf16.msra.mxu0 0
    %3784 = vmatprep.subr.bf16.mxu0 0
    %3785 = vmatpush1.bf16.msra.mxu0 0
    %3786 = vmatprep.subr.bf16.mxu0 0
    %3787 = vmatpush1.bf16.msra.mxu0 0
    %3788 = vmatprep.subr.bf16.mxu0 0
    %3789 = vmatpush1.bf16.msra.mxu0 0
    %3790 = vmatprep.subr.bf16.mxu0 0
    %3791 = vmatpush1.bf16.msra.mxu0 0
    %3792 = vmatprep.subr.bf16.mxu0 0
    %3793 = vmatpush1.bf16.msra.mxu0 0
    %3794 = vmatprep.subr.bf16.mxu0 0
    %3795 = vmatpush1.bf16.msra.mxu0 0
    %3796 = vmatprep.subr.bf16.mxu0 0
    %3797 = vmatpush1.bf16.msra.mxu0 0
    %3798 = vmatprep.subr.bf16.mxu0 0
    %3799 = vmatpush1.bf16.msra.mxu0 0
    %3800 = vmatprep.subr.bf16.mxu0 0
    %3801 = vmatpush1.bf16.msra.mxu0 0
    %3802 = vmatprep.subr.bf16.mxu0 0
    %3803 = vmatpush1.bf16.msra.mxu0 0
    %3804 = vmatprep.mubr.bf16.mxu0 0
    %3805 = vmatmul.mubr.bf16.gmra.mrb[0].mxu0 %v3767
    %v3806 = vpop.f32.mrb[0].mxu0
    %v3807 = vadd.f32 0.0, %v3806
    %v3808 = vpop.f32.mrb[0].mxu0
    %v3809 = vpop.f32.mrb[0].mxu0
    %v3810 = vpop.f32.mrb[0].mxu0
    %3811 = vdwg.mxu0
    %v3813 = vsel %vm351, %v3471, 0
    %v3816 = vsel %vm1408, %v2998, 0
    %3818 = vmatprep.subr.bf16.mxu0 0
    %3819 = vmatpush1.bf16.msra.mxu0 %v3816
    %3820 = vmatprep.subr.bf16.mxu0 0
    %3821 = vmatpush1.bf16.msra.mxu0 0
    %3822 = vmatprep.subr.bf16.mxu0 0
    %3823 = vmatpush1.bf16.msra.mxu0 0
    %3824 = vmatprep.subr.bf16.mxu0 0
    %3825 = vmatpush1.bf16.msra.mxu0 0
    %3826 = vmatprep.subr.bf16.mxu0 0
    %3827 = vmatpush1.bf16.msra.mxu0 0
    %3828 = vmatprep.subr.bf16.mxu0 0
    %3829 = vmatpush1.bf16.msra.mxu0 0
    %3830 = vmatprep.subr.bf16.mxu0 0
    %3831 = vmatpush1.bf16.msra.mxu0 0
    %3832 = vmatprep.subr.bf16.mxu0 0
    %3833 = vmatpush1.bf16.msra.mxu0 0
    %3834 = vmatprep.subr.bf16.mxu0 0
    %3835 = vmatpush1.bf16.msra.mxu0 0
    %3836 = vmatprep.subr.bf16.mxu0 0
    %3837 = vmatpush1.bf16.msra.mxu0 0
    %3838 = vmatprep.subr.bf16.mxu0 0
    %3839 = vmatpush1.bf16.msra.mxu0 0
    %3840 = vmatprep.subr.bf16.mxu0 0
    %3841 = vmatpush1.bf16.msra.mxu0 0
    %3842 = vmatprep.subr.bf16.mxu0 0
    %3843 = vmatpush1.bf16.msra.mxu0 0
    %3844 = vmatprep.subr.bf16.mxu0 0
    %3845 = vmatpush1.bf16.msra.mxu0 0
    %3846 = vmatprep.subr.bf16.mxu0 0
    %3847 = vmatpush1.bf16.msra.mxu0 0
    %3848 = vmatprep.subr.bf16.mxu0 0
    %3849 = vmatpush1.bf16.msra.mxu0 0
    %3850 = vmatprep.mubr.bf16.mxu0 0
    %3851 = vmatmul.mubr.bf16.gmra.mrb[0].mxu0 %v3813
    %v3852 = vpop.f32.mrb[0].mxu0
    %v3853 = vadd.f32 0.0, %v3852
    %v3854 = vpop.f32.mrb[0].mxu0
    %v3855 = vpop.f32.mrb[0].mxu0
    %v3856 = vpop.f32.mrb[0].mxu0
    %3857 = vdwg.mxu0
    %v3858 = vpack.c.bf16 %v3853, %v3807
    %s3859 = scalar_lea.vmem %s6, 24
    %v3860 = vld [vmem:[%s3859] sm:$0xf]
    %v3862 = vsel %vm351, %v3858, 0
    %v3865 = vsel %vm1408, %v3860, 0
    %3867 = vmatprep.subr.bf16.mxu0 0
    %3868 = vmatpush1.bf16.msra.mxu0 %v3865
    %3869 = vmatprep.subr.bf16.mxu0 0
    %3870 = vmatpush1.bf16.msra.mxu0 0
    %3871 = vmatprep.subr.bf16.mxu0 0
    %3872 = vmatpush1.bf16.msra.mxu0 0
    %3873 = vmatprep.subr.bf16.mxu0 0
    %3874 = vmatpush1.bf16.msra.mxu0 0
    %3875 = vmatprep.subr.bf16.mxu0 0
    %3876 = vmatpush1.bf16.msra.mxu0 0
    %3877 = vmatprep.subr.bf16.mxu0 0
    %3878 = vmatpush1.bf16.msra.mxu0 0
    %3879 = vmatprep.subr.bf16.mxu0 0
    %3880 = vmatpush1.bf16.msra.mxu0 0
    %3881 = vmatprep.subr.bf16.mxu0 0
    %3882 = vmatpush1.bf16.msra.mxu0 0
    %3883 = vmatprep.subr.bf16.mxu0 0
    %3884 = vmatpush1.bf16.msra.mxu0 0
    %3885 = vmatprep.subr.bf16.mxu0 0
    %3886 = vmatpush1.bf16.msra.mxu0 0
    %3887 = vmatprep.subr.bf16.mxu0 0
    %3888 = vmatpush1.bf16.msra.mxu0 0
    %3889 = vmatprep.subr.bf16.mxu0 0
    %3890 = vmatpush1.bf16.msra.mxu0 0
    %3891 = vmatprep.subr.bf16.mxu0 0
    %3892 = vmatpush1.bf16.msra.mxu0 0
    %3893 = vmatprep.subr.bf16.mxu0 0
    %3894 = vmatpush1.bf16.msra.mxu0 0
    %3895 = vmatprep.subr.bf16.mxu0 0
    %3896 = vmatpush1.bf16.msra.mxu0 0
    %3897 = vmatprep.subr.bf16.mxu0 0
    %3898 = vmatpush1.bf16.msra.mxu0 0
    %3899 = vmatprep.mubr.bf16.mxu0 0
    %3900 = vmatmul.mubr.bf16.gmra.mrb[0].mxu0 %v3862
    %v3901 = vpop.f32.mrb[0].mxu0
    %v3902 = vadd.f32 0.0, %v3901
    %v3903 = vpop.f32.mrb[0].mxu0
    %v3904 = vpop.f32.mrb[0].mxu0
    %v3905 = vadd.f32 0.0, %v3904
    %v3906 = vpop.f32.mrb[0].mxu0
    %3907 = vdwg.mxu0
    %v3908 = vadd.f32 %v3764, %v3902
    %v3909 = vadd.f32 %v3765, %v3905
    %v3911 = vsel %vm351, %v3472, 0
    %v3914 = vsel %vm1408, %v3284, 0
    %3916 = vmatprep.subr.bf16.mxu0 0
    %3917 = vmatpush1.bf16.msra.mxu0 %v3914
    %3918 = vmatprep.subr.bf16.mxu0 0
    %3919 = vmatpush1.bf16.msra.mxu0 0
    %3920 = vmatprep.subr.bf16.mxu0 0
    %3921 = vmatpush1.bf16.msra.mxu0 0
    %3922 = vmatprep.subr.bf16.mxu0 0
    %3923 = vmatpush1.bf16.msra.mxu0 0
    %3924 = vmatprep.subr.bf16.mxu0 0
    %3925 = vmatpush1.bf16.msra.mxu0 0
    %3926 = vmatprep.subr.bf16.mxu0 0
    %3927 = vmatpush1.bf16.msra.mxu0 0
    %3928 = vmatprep.subr.bf16.mxu0 0
    %3929 = vmatpush1.bf16.msra.mxu0 0
    %3930 = vmatprep.subr.bf16.mxu0 0
    %3931 = vmatpush1.bf16.msra.mxu0 0
    %3932 = vmatprep.subr.bf16.mxu0 0
    %3933 = vmatpush1.bf16.msra.mxu0 0
    %3934 = vmatprep.subr.bf16.mxu0 0
    %3935 = vmatpush1.bf16.msra.mxu0 0
    %3936 = vmatprep.subr.bf16.mxu0 0
    %3937 = vmatpush1.bf16.msra.mxu0 0
    %3938 = vmatprep.subr.bf16.mxu0 0
    %3939 = vmatpush1.bf16.msra.mxu0 0
    %3940 = vmatprep.subr.bf16.mxu0 0
    %3941 = vmatpush1.bf16.msra.mxu0 0
    %3942 = vmatprep.subr.bf16.mxu0 0
    %3943 = vmatpush1.bf16.msra.mxu0 0
    %3944 = vmatprep.subr.bf16.mxu0 0
    %3945 = vmatpush1.bf16.msra.mxu0 0
    %3946 = vmatprep.subr.bf16.mxu0 0
    %3947 = vmatpush1.bf16.msra.mxu0 0
    %3948 = vmatprep.mubr.bf16.mxu0 0
    %3949 = vmatmul.mubr.bf16.gmra.mrb[0].mxu0 %v3911
    %v3950 = vpop.f32.mrb[0].mxu0
    %v3951 = vadd.f32 0.0, %v3950
    %v3952 = vpop.f32.mrb[0].mxu0
    %v3953 = vpop.f32.mrb[0].mxu0
    %v3954 = vpop.f32.mrb[0].mxu0
    %3955 = vdwg.mxu0
    %v3957 = vsel %vm351, %v3473, 0
    %v3960 = vsel %vm1408, %v3285, 0
    %3962 = vmatprep.subr.bf16.mxu0 0
    %3963 = vmatpush1.bf16.msra.mxu0 %v3960
    %3964 = vmatprep.subr.bf16.mxu0 0
    %3965 = vmatpush1.bf16.msra.mxu0 0
    %3966 = vmatprep.subr.bf16.mxu0 0
    %3967 = vmatpush1.bf16.msra.mxu0 0
    %3968 = vmatprep.subr.bf16.mxu0 0
    %3969 = vmatpush1.bf16.msra.mxu0 0
    %3970 = vmatprep.subr.bf16.mxu0 0
    %3971 = vmatpush1.bf16.msra.mxu0 0
    %3972 = vmatprep.subr.bf16.mxu0 0
    %3973 = vmatpush1.bf16.msra.mxu0 0
    %3974 = vmatprep.subr.bf16.mxu0 0
    %3975 = vmatpush1.bf16.msra.mxu0 0
    %3976 = vmatprep.subr.bf16.mxu0 0
    %3977 = vmatpush1.bf16.msra.mxu0 0
    %3978 = vmatprep.subr.bf16.mxu0 0
    %3979 = vmatpush1.bf16.msra.mxu0 0
    %3980 = vmatprep.subr.bf16.mxu0 0
    %3981 = vmatpush1.bf16.msra.mxu0 0
    %3982 = vmatprep.subr.bf16.mxu0 0
    %3983 = vmatpush1.bf16.msra.mxu0 0
    %3984 = vmatprep.subr.bf16.mxu0 0
    %3985 = vmatpush1.bf16.msra.mxu0 0
    %3986 = vmatprep.subr.bf16.mxu0 0
    %3987 = vmatpush1.bf16.msra.mxu0 0
    %3988 = vmatprep.subr.bf16.mxu0 0
    %3989 = vmatpush1.bf16.msra.mxu0 0
    %3990 = vmatprep.subr.bf16.mxu0 0
    %3991 = vmatpush1.bf16.msra.mxu0 0
    %3992 = vmatprep.subr.bf16.mxu0 0
    %3993 = vmatpush1.bf16.msra.mxu0 0
    %3994 = vmatprep.mubr.bf16.mxu0 0
    %3995 = vmatmul.mubr.bf16.gmra.mrb[0].mxu0 %v3957
    %v3996 = vpop.f32.mrb[0].mxu0
    %v3997 = vadd.f32 0.0, %v3996
    %v3998 = vpop.f32.mrb[0].mxu0
    %v3999 = vpop.f32.mrb[0].mxu0
    %v4000 = vpop.f32.mrb[0].mxu0
    %4001 = vdwg.mxu0
    %v4002 = vpack.c.bf16 %v3997, %v3951
    %s4003 = scalar_lea.vmem %s6, 28
    %v4004 = vld [vmem:[%s4003] sm:$0xf]
    %v4006 = vsel %vm351, %v4002, 0
    %v4009 = vsel %vm1408, %v4004, 0
    %4011 = vmatprep.subr.bf16.mxu0 0
    %4012 = vmatpush1.bf16.msra.mxu0 %v4009
    %4013 = vmatprep.subr.bf16.mxu0 0
    %4014 = vmatpush1.bf16.msra.mxu0 0
    %4015 = vmatprep.subr.bf16.mxu0 0
    %4016 = vmatpush1.bf16.msra.mxu0 0
    %4017 = vmatprep.subr.bf16.mxu0 0
    %4018 = vmatpush1.bf16.msra.mxu0 0
    %4019 = vmatprep.subr.bf16.mxu0 0
    %4020 = vmatpush1.bf16.msra.mxu0 0
    %4021 = vmatprep.subr.bf16.mxu0 0
    %4022 = vmatpush1.bf16.msra.mxu0 0
    %4023 = vmatprep.subr.bf16.mxu0 0
    %4024 = vmatpush1.bf16.msra.mxu0 0
    %4025 = vmatprep.subr.bf16.mxu0 0
    %4026 = vmatpush1.bf16.msra.mxu0 0
    %4027 = vmatprep.subr.bf16.mxu0 0
    %4028 = vmatpush1.bf16.msra.mxu0 0
    %4029 = vmatprep.subr.bf16.mxu0 0
    %4030 = vmatpush1.bf16.msra.mxu0 0
    %4031 = vmatprep.subr.bf16.mxu0 0
    %4032 = vmatpush1.bf16.msra.mxu0 0
    %4033 = vmatprep.subr.bf16.mxu0 0
    %4034 = vmatpush1.bf16.msra.mxu0 0
    %4035 = vmatprep.subr.bf16.mxu0 0
    %4036 = vmatpush1.bf16.msra.mxu0 0
    %4037 = vmatprep.subr.bf16.mxu0 0
    %4038 = vmatpush1.bf16.msra.mxu0 0
    %4039 = vmatprep.subr.bf16.mxu0 0
    %4040 = vmatpush1.bf16.msra.mxu0 0
    %4041 = vmatprep.subr.bf16.mxu0 0
    %4042 = vmatpush1.bf16.msra.mxu0 0
    %4043 = vmatprep.mubr.bf16.mxu0 0
    %4044 = vmatmul.mubr.bf16.gmra.mrb[0].mxu0 %v4006
    %v4045 = vpop.f32.mrb[0].mxu0
    %v4046 = vadd.f32 0.0, %v4045
    %v4047 = vpop.f32.mrb[0].mxu0
    %v4048 = vpop.f32.mrb[0].mxu0
    %v4049 = vadd.f32 0.0, %v4048
    %v4050 = vpop.f32.mrb[0].mxu0
    %4051 = vdwg.mxu0
    %v4052 = vadd.f32 %v3908, %v4046
    %v4053 = vadd.f32 %v3909, %v4049
    %v4054 = vadd.f32 %v2174, %v4052
    %v4055 = vadd.f32 %v2175, %v4053
    %v4056 = vsel %vm111, %v4054, 0.0
    %4057 = vadd.xlane.f32.xlu0 %v4056
    %v4058 = vpop.xlane.xlu0 %4057
    %v4059 = vsel %vm111, %v4055, 0.0
    %4060 = vadd.xlane.f32.xlu0 %v4059
    %v4061 = vpop.xlane.xlu0 %4060
    %v4062 = vmul.f32 %v4058, %v118
    %v4063 = vmul.f32 %v4061, %v118
    %v4064 = vmul.f32 %v4054, %v4054
    %v4065 = vmul.f32 %v4055, %v4055
    %v4066 = vsel %vm111, %v4064, 0.0
    %4067 = vadd.xlane.f32.xlu0 %v4066
    %v4068 = vpop.xlane.xlu0 %4067
    %v4069 = vsel %vm111, %v4065, 0.0
    %4070 = vadd.xlane.f32.xlu0 %v4069
    %v4071 = vpop.xlane.xlu0 %4070
    %v4072 = vmul.f32 %v4068, %v118
    %v4073 = vmul.f32 %v4071, %v118
    %v4074 = vmul.f32 %v4062, %v4062
    %v4075 = vmul.f32 %v4063, %v4063
    %v4076 = vsub.f32 %v4072, %v4074
    %v4077 = vsub.f32 %v4073, %v4075
    %v4078 = vadd.f32 %v4076, 1e-05
    %v4079 = vadd.f32 %v4077, 1e-05
    %v4080 = vrsqrt.pop %v4078
    %v4081 = vrsqrt.pop %v4079
    %v4082 = vsub.f32 %v4054, %v4062
    %v4083 = vsub.f32 %v4055, %v4063
    %v4084 = vlaneseq
    %v4085 = vshrl.u32 %v4084, 7
    %v4086 = vsub.s32 0, %v4085
    %v4087 = vrot.slane %v2180, %v4086
    %v4088 = vmul.f32 %v4080, %v4087
    %v4089 = vmul.f32 %v4081, %v4087
    %v4090 = vmul.f32 %v4082, %v4088
    %v4091 = vmul.f32 %v4083, %v4089
    %v4092 = vlaneseq
    %v4093 = vshrl.u32 %v4092, 7
    %v4094 = vsub.s32 0, %v4093
    %v4095 = vrot.slane %v2181, %v4094
    %v4096 = vadd.f32 %v4090, %v4095
    %v4097 = vadd.f32 %v4091, %v4095
    %v4098 = vpack.c.bf16 %v4097, %v4096
    %s4099 = scalar_lea.vmem %s7, 16
    %v4100 = vld [vmem:[%s4099] sm:$0xf]
    %v4101 = vld [vmem:[%s4099 + $0x4] sm:$0xf]
    %v4102 = vld [vmem:[%s4099 + $0x8] sm:$0xf]
    %v4103 = vld [vmem:[%s4099 + $0xc] sm:$0xf]
    %v4104 = vlaneseq
    %v4105 = vshrl.u32 %v4104, 7
    %v4106 = vsub.s32 0, %v4105
    %v4107 = vrot.slane %v2182, %v4106
    %v4112 = vunpack.c.l.b16 %v4100
    %v4113 = vunpack.c.l.b16 %v4101
    %v4114 = vunpack.c.l.b16 %v4102
    %v4115 = vunpack.c.l.b16 %v4103
    %v4116 = vpack.c.b16 %v4113, %v4112
    %v4117 = vpack.c.b16 %v4115, %v4114
    %v4121 = vsel %vm111, %v4098, 0
    %4123 = vmatprep.subr.bf16.mxu0 0
    %4124 = vmatpush1.bf16.msra.mxu0 %v4116
    %4125 = vmatprep.subr.bf16.mxu0 0
    %4126 = vmatpush1.bf16.msra.mxu0 %v4117
    %4127 = vmatprep.subr.bf16.mxu0 0
    %4128 = vmatpush1.bf16.msra.mxu0 0
    %4129 = vmatprep.subr.bf16.mxu0 0
    %4130 = vmatpush1.bf16.msra.mxu0 0
    %4131 = vmatprep.subr.bf16.mxu0 0
    %4132 = vmatpush1.bf16.msra.mxu0 0
    %4133 = vmatprep.subr.bf16.mxu0 0
    %4134 = vmatpush1.bf16.msra.mxu0 0
    %4135 = vmatprep.subr.bf16.mxu0 0
    %4136 = vmatpush1.bf16.msra.mxu0 0
    %4137 = vmatprep.subr.bf16.mxu0 0
    %4138 = vmatpush1.bf16.msra.mxu0 0
    %4139 = vmatprep.subr.bf16.mxu0 0
    %4140 = vmatpush1.bf16.msra.mxu0 0
    %4141 = vmatprep.subr.bf16.mxu0 0
    %4142 = vmatpush1.bf16.msra.mxu0 0
    %4143 = vmatprep.subr.bf16.mxu0 0
    %4144 = vmatpush1.bf16.msra.mxu0 0
    %4145 = vmatprep.subr.bf16.mxu0 0
    %4146 = vmatpush1.bf16.msra.mxu0 0
    %4147 = vmatprep.subr.bf16.mxu0 0
    %4148 = vmatpush1.bf16.msra.mxu0 0
    %4149 = vmatprep.subr.bf16.mxu0 0
    %4150 = vmatpush1.bf16.msra.mxu0 0
    %4151 = vmatprep.subr.bf16.mxu0 0
    %4152 = vmatpush1.bf16.msra.mxu0 0
    %4153 = vmatprep.subr.bf16.mxu0 0
    %4154 = vmatpush1.bf16.msra.mxu0 0
    %4155 = vmatprep.mubr.bf16.mxu0 0
    %4156 = vmatmul.mubr.bf16.gmra.mrb[0].mxu0 %v4121
    %v4157 = vpop.f32.mrb[0].mxu0
    %v4158 = vadd.f32 %v4107, %v4157
    %v4159 = vpop.f32.mrb[0].mxu0
    %v4160 = vpop.f32.mrb[0].mxu0
    %v4161 = vadd.f32 %v4107, %v4160
    %v4162 = vpop.f32.mrb[0].mxu0
    %4163 = vdwg.mxu0
    %v4164 = vmax.f32 %v4158, 0.0
    %v4165 = vmax.f32 %v4161, 0.0
    %v4166 = vpack.c.bf16 %v4165, %v4164
    %s4167 = scalar_lea.vmem %s8, 32
    %v4168 = vld [vmem:[%s4167] sm:$0xf]
    %v4169 = vld [vmem:[%s4167 + $0x4] sm:$0xf]
    %v4170 = vld [vmem:[%s4167 + $0x8] sm:$0xf]
    %v4171 = vld [vmem:[%s4167 + $0xc] sm:$0xf]
    %v4172 = vld [vmem:[%s4167 + $0x10] sm:$0xf]
    %v4173 = vld [vmem:[%s4167 + $0x14] sm:$0xf]
    %v4174 = vld [vmem:[%s4167 + $0x18] sm:$0xf]
    %v4175 = vld [vmem:[%s4167 + $0x1c] sm:$0xf]
    %v4176 = vlaneseq
    %v4177 = vshrl.u32 %v4176, 7
    %v4178 = vsub.s32 0, %v4177
    %v4179 = vrot.slane %v2183, %v4178
    %v4188 = vunpack.c.l.b16 %v4168
    %v4189 = vunpack.c.l.b16 %v4169
    %v4190 = vunpack.c.l.b16 %v4170
    %v4191 = vunpack.c.l.b16 %v4171
    %v4192 = vunpack.c.l.b16 %v4172
    %v4193 = vunpack.c.l.b16 %v4173
    %v4194 = vunpack.c.l.b16 %v4174
    %v4195 = vunpack.c.l.b16 %v4175
    %v4196 = vpack.c.b16 %v4189, %v4188
    %v4197 = vpack.c.b16 %v4191, %v4190
    %v4198 = vpack.c.b16 %v4193, %v4192
    %v4199 = vpack.c.b16 %v4195, %v4194
    %v4205 = vsel %vm2129, %v4166, 0
    %4207 = vmatprep.subr.bf16.mxu0 0
    %4208 = vmatpush1.bf16.msra.mxu0 %v4196
    %4209 = vmatprep.subr.bf16.mxu0 0
    %4210 = vmatpush1.bf16.msra.mxu0 %v4197
    %4211 = vmatprep.subr.bf16.mxu0 0
    %4212 = vmatpush1.bf16.msra.mxu0 %v4198
    %4213 = vmatprep.subr.bf16.mxu0 0
    %4214 = vmatpush1.bf16.msra.mxu0 %v4199
    %4215 = vmatprep.subr.bf16.mxu0 0
    %4216 = vmatpush1.bf16.msra.mxu0 0
    %4217 = vmatprep.subr.bf16.mxu0 0
    %4218 = vmatpush1.bf16.msra.mxu0 0
    %4219 = vmatprep.subr.bf16.mxu0 0
    %4220 = vmatpush1.bf16.msra.mxu0 0
    %4221 = vmatprep.subr.bf16.mxu0 0
    %4222 = vmatpush1.bf16.msra.mxu0 0
    %4223 = vmatprep.subr.bf16.mxu0 0
    %4224 = vmatpush1.bf16.msra.mxu0 0
    %4225 = vmatprep.subr.bf16.mxu0 0
    %4226 = vmatpush1.bf16.msra.mxu0 0
    %4227 = vmatprep.subr.bf16.mxu0 0
    %4228 = vmatpush1.bf16.msra.mxu0 0
    %4229 = vmatprep.subr.bf16.mxu0 0
    %4230 = vmatpush1.bf16.msra.mxu0 0
    %4231 = vmatprep.subr.bf16.mxu0 0
    %4232 = vmatpush1.bf16.msra.mxu0 0
    %4233 = vmatprep.subr.bf16.mxu0 0
    %4234 = vmatpush1.bf16.msra.mxu0 0
    %4235 = vmatprep.subr.bf16.mxu0 0
    %4236 = vmatpush1.bf16.msra.mxu0 0
    %4237 = vmatprep.subr.bf16.mxu0 0
    %4238 = vmatpush1.bf16.msra.mxu0 0
    %4239 = vmatprep.mubr.bf16.mxu0 0
    %4240 = vmatmul.mubr.bf16.gmra.mrb[0].mxu0 %v4205
    %v4241 = vpop.f32.mrb[0].mxu0
    %v4242 = vadd.f32 %v4179, %v4241
    %v4243 = vpop.f32.mrb[0].mxu0
    %v4244 = vpop.f32.mrb[0].mxu0
    %v4245 = vadd.f32 %v4179, %v4244
    %v4246 = vpop.f32.mrb[0].mxu0
    %4247 = vdwg.mxu0
    %v4248 = vadd.f32 %v4054, %v4242
    %v4249 = vadd.f32 %v4055, %v4245
    %4250 = vst.msk [vmem:[#allocation2] sm:$0xff] %vm111, %v4248
    %4251 = vst.msk [vmem:[#allocation2 + $0x8] sm:$0xff] %vm111, %v4249
    %v4252 = vpack.c.bf16 %v4249, %v4248
    %v4253 = vld [vmem:[%s9] sm:$0xf]
    %v4254 = vld [vmem:[%s9 + $0x4] sm:$0xf]
    %v4255 = vld [vmem:[%s9 + $0x8] sm:$0xf]
    %v4256 = vld [vmem:[%s9 + $0xc] sm:$0xf]
    %v4257 = vld [vmem:[%s10] sm:$0x1]
    %v4259 = vlaneseq
    %v4260 = vshrl.u32 %v4259, 7
    %v4261 = vsub.s32 0, %v4260
    %v4262 = vrot.slane %v4257, %v4261
    %v4268 = vunpack.c.l.b16 %v4253
    %v4269 = vunpack.c.l.b16 %v4254
    %v4270 = vunpack.c.l.b16 %v4255
    %v4271 = vunpack.c.l.b16 %v4256
    %v4272 = vpack.c.b16 %v4269, %v4268
    %v4273 = vpack.c.b16 %v4271, %v4270
    %v4277 = vsel %vm111, %v4252, 0
    %4279 = vmatprep.subr.bf16.mxu0 0
    %4280 = vmatpush1.bf16.msra.mxu0 %v4272
    %4281 = vmatprep.subr.bf16.mxu0 0
    %4282 = vmatpush1.bf16.msra.mxu0 %v4273
    %4283 = vmatprep.subr.bf16.mxu0 0
    %4284 = vmatpush1.bf16.msra.mxu0 0
    %4285 = vmatprep.subr.bf16.mxu0 0
    %4286 = vmatpush1.bf16.msra.mxu0 0
    %4287 = vmatprep.subr.bf16.mxu0 0
    %4288 = vmatpush1.bf16.msra.mxu0 0
    %4289 = vmatprep.subr.bf16.mxu0 0
    %4290 = vmatpush1.bf16.msra.mxu0 0
    %4291 = vmatprep.subr.bf16.mxu0 0
    %4292 = vmatpush1.bf16.msra.mxu0 0
    %4293 = vmatprep.subr.bf16.mxu0 0
    %4294 = vmatpush1.bf16.msra.mxu0 0
    %4295 = vmatprep.subr.bf16.mxu0 0
    %4296 = vmatpush1.bf16.msra.mxu0 0
    %4297 = vmatprep.subr.bf16.mxu0 0
    %4298 = vmatpush1.bf16.msra.mxu0 0
    %4299 = vmatprep.subr.bf16.mxu0 0
    %4300 = vmatpush1.bf16.msra.mxu0 0
    %4301 = vmatprep.subr.bf16.mxu0 0
    %4302 = vmatpush1.bf16.msra.mxu0 0
    %4303 = vmatprep.subr.bf16.mxu0 0
    %4304 = vmatpush1.bf16.msra.mxu0 0
    %4305 = vmatprep.subr.bf16.mxu0 0
    %4306 = vmatpush1.bf16.msra.mxu0 0
    %4307 = vmatprep.subr.bf16.mxu0 0
    %4308 = vmatpush1.bf16.msra.mxu0 0
    %4309 = vmatprep.subr.bf16.mxu0 0
    %4310 = vmatpush1.bf16.msra.mxu0 0
    %4311 = vmatprep.mubr.bf16.mxu0 0
    %4312 = vmatmul.mubr.bf16.gmra.mrb[0].mxu0 %v4277
    %v4313 = vpop.f32.mrb[0].mxu0
    %v4314 = vadd.f32 %v4262, %v4313
    %v4315 = vpop.f32.mrb[0].mxu0
    %v4316 = vpop.f32.mrb[0].mxu0
    %v4317 = vadd.f32 %v4262, %v4316
    %v4318 = vpop.f32.mrb[0].mxu0
    %4319 = vdwg.mxu0
    %4320 = vst [vmem:[#allocation4] sm:$0xff] %v4314
    %4321 = vst [vmem:[#allocation4 + $0x8] sm:$0xff] %v4317
    // Predicated region
    $region50: #{tpu_custom_call.1} parent=1 // pred_check
      _
    $region51: #{tpu_custom_call.1} parent=1 // pred_check_branch
      %4323 = sbr.rel (0) target = $region53
    $region52: #{tpu_custom_call.1} parent=1 // pred_region
      %s4325 = ssub.s32 256, 256
      %4326 = vsyncadd [#allocation3], %s4325
      %s4327 = sshll.u32 [#allocation2], 4
      %s4328 = int_to_ptr.vmem [resolvable:$true] %s4327
      %4333 = dma.vmem_to_hbm [thread:$0]  %s4328, 256, %s12, [#allocation3], 128, 128, 8
    $region53: #{tpu_custom_call.1} parent=1 // pred_fallthru
      _
    // Predicated region
    $region54: #{tpu_custom_call.1} parent=1 // pred_check
      _
    $region55: #{tpu_custom_call.1} parent=1 // pred_check_branch
      %4335 = sbr.rel (0) target = $region57
    $region56: #{tpu_custom_call.1} parent=1 // pred_region
      %s4337 = ssub.s32 256, 256
      %4338 = vsyncadd [#allocation5], %s4337
      %s4339 = sshll.u32 [#allocation4], 4
      %s4340 = int_to_ptr.vmem [resolvable:$true] %s4339
      %4345 = dma.vmem_to_hbm [thread:$0]  %s4340, 256, %s13, [#allocation5], 128, 128, 8
    $region57: #{tpu_custom_call.1} parent=1 // pred_fallthru
      _
    // Predicated region
    $region58: #{tpu_custom_call.1} parent=1 // pred_check
      _
    $region59: #{tpu_custom_call.1} parent=1 // pred_check_branch
      %4347 = sbr.rel (0) target = $region61
    $region60: #{tpu_custom_call.1} parent=1 // pred_region
      %4348 = dma.done [#allocation3], 256
    $region61: #{tpu_custom_call.1} parent=1 // pred_fallthru
      _
    // Predicated region
    $region62: #{tpu_custom_call.1} parent=1 // pred_check
      _
    $region63: #{tpu_custom_call.1} parent=1 // pred_check_branch
      %4350 = sbr.rel (0) target = $region65
    $region64: #{tpu_custom_call.1} parent=1 // pred_region
      %4351 = dma.done [#allocation5], 256
    $region65: #{tpu_custom_call.1} parent=1 // pred_fallthru
      _
    %4352 = vsyncpa [#allocation3], 1
    %4353 = vsyncpa [#allocation5], 1

</llo_original>
